<compile_context>
chip_gen: v6e
topology: v6e:2x2x1
jax: 0.10.0
libtpu: 0.0.40
codegen_flags: <defaults>
</compile_context>

<pallas_src>
import jax
import jax.numpy as jnp
from jax import lax
from jax.experimental import pallas as pl
from jax.experimental.pallas import tpu as pltpu

NEG_SLOPE = 0.01
EPS = 1e-5


def _make_kernel(D, H, W, C_out_p):
    P = W + 2                 # padded plane row length
    Q = H + 2                 # padded plane rows
    QP = Q * P                # flattened padded plane size (per depth slice)
    slack = P + 1             # extra rows so every tap shift is in-bounds
    n_valid = float(D * H * W)

    def kernel(x0_ref, x1_ref, x2_ref, w_ref, mask_ref, g_ref, b_ref,
               o_ref, sum_ref, ssq_ref):
        d = pl.program_id(1)

        @pl.when(d == 0)
        def _():
            sum_ref[...] = jnp.zeros_like(sum_ref)
            ssq_ref[...] = jnp.zeros_like(ssq_ref)

        x_refs = (x0_ref, x1_ref, x2_ref)   # padded depth slices d, d+1, d+2  (L, C_in) bf16

        # Implicit im2col: every (kd, kh, kw) tap is a contiguous row window of the
        # flattened, slack-padded plane.  27 small bf16 MXU matmuls accumulate in f32.
        y = jnp.zeros((QP, C_out_p), jnp.float32)
        t = 0
        for kd in range(3):
            for kh in range(3):
                for kw in range(3):
                    start = slack + (kh - 1) * P + (kw - 1)        # static offset
                    xs = x_refs[kd][pl.ds(start, QP), :]           # (QP, C_in) bf16
                    y = y + jnp.dot(xs, w_ref[t],
                                    preferred_element_type=jnp.float32)
                    t += 1

        # TODO(synk): Dropout3d has p=0 in this block config, so it is an identity.
        # (Conv bias omitted on purpose: InstanceNorm's mean subtraction cancels it exactly.)

        # Pass 1: stash unnormalized conv output into the VMEM-resident per-sample block
        # and accumulate per-channel sum / sumsq on the MXU (mask zeroes the halo rows).
        o_ref[d] = y.astype(o_ref.dtype)
        m = mask_ref[...]                                          # (1, QP) f32, 1 on valid rows
        sum_ref[...] += jnp.dot(m, y, preferred_element_type=jnp.float32)
        ssq_ref[...] += jnp.dot(m, y * y, preferred_element_type=jnp.float32)

        # Pass 2 (last depth step): fused scale/shift + LeakyReLU over the resident block.
        @pl.when(d == D - 1)
        def _():
            mean = sum_ref[...] / n_valid
            var = jnp.maximum(ssq_ref[...] / n_valid - mean * mean, 0.0)
            scale = g_ref[...] * lax.rsqrt(var + EPS)
            shift = b_ref[...] - mean * scale

            def body(i, carry):
                z = o_ref[i].astype(jnp.float32) * scale + shift
                o_ref[i] = jnp.where(z >= 0.0, z, NEG_SLOPE * z).astype(o_ref.dtype)
                return carry

            lax.fori_loop(0, D, body, 0)

    return kernel


def _x_index_map(kd):
    def imap(n, d):
        return (n, d + kd, 0, 0)
    return imap


def conv_dropout_norm_nonlin(x, weight, bias, gamma, beta):
    """x: (N, C_in, D, H, W); weight: (C_out, C_in, 3, 3, 3). Returns (N, C_out, D, H, W)."""
    del bias  # exactly cancelled by InstanceNorm's per-(sample, channel) mean subtraction
    N, C_in, D, H, W = x.shape
    C_out = weight.shape[0]
    P, Q = W + 2, H + 2
    QP = Q * P
    slack = P + 1
    L = QP + 2 * slack
    C_out_p = ((C_out + 127) // 128) * 128   # lane-dense output / MXU result columns

    # Channels-last, spatial zero pad, flatten the (Q, P) plane, add slack rows, cast bf16.
    x_cl = jnp.transpose(x, (0, 2, 3, 4, 1))                           # (N, D, H, W, C_in)
    x_p = jnp.pad(x_cl, ((0, 0), (1, 1), (1, 1), (1, 1), (0, 0)))      # (N, D+2, Q, P, C_in)
    x_flat = x_p.reshape(N, D + 2, QP, C_in)
    x_flat = jnp.pad(x_flat, ((0, 0), (0, 0), (slack, slack), (0, 0)))
    x_flat = x_flat.astype(jnp.bfloat16)                               # (N, D+2, L, C_in)

    # Per-tap weight matrices, tap-major (kd, kh, kw); zero-pad C_out up to a lane multiple.
    w_taps = jnp.transpose(weight, (2, 3, 4, 1, 0)).reshape(27, C_in, C_out)
    w_taps = jnp.pad(w_taps, ((0, 0), (0, 0), (0, C_out_p - C_out))).astype(jnp.bfloat16)

    # Mask of valid (non-halo) rows of the flattened padded plane.
    r = jnp.arange(QP)
    valid = (r // P >= 1) & (r // P <= H) & (r % P >= 1) & (r % P <= W)
    mask_row = valid.astype(jnp.float32).reshape(1, QP)

    g_p = jnp.pad(gamma, (0, C_out_p - C_out)).astype(jnp.float32).reshape(1, C_out_p)
    b_p = jnp.pad(beta, (0, C_out_p - C_out)).astype(jnp.float32).reshape(1, C_out_p)

    kernel = _make_kernel(D, H, W, C_out_p)

    out = pl.pallas_call(
        kernel,
        out_shape=jax.ShapeDtypeStruct((N, D, QP, C_out_p), x.dtype),
        grid_spec=pltpu.PrefetchScalarGridSpec(
            num_scalar_prefetch=0,
            grid=(N, D),
            in_specs=[
                # depth halo: same array, three depth-shifted windows
                pl.BlockSpec((None, None, L, C_in), _x_index_map(0)),
                pl.BlockSpec((None, None, L, C_in), _x_index_map(1)),
                pl.BlockSpec((None, None, L, C_in), _x_index_map(2)),
                pl.BlockSpec((27, C_in, C_out_p), lambda n, d: (0, 0, 0)),
                pl.BlockSpec((1, QP), lambda n, d: (0, 0)),
                pl.BlockSpec((1, C_out_p), lambda n, d: (0, 0)),
                pl.BlockSpec((1, C_out_p), lambda n, d: (0, 0)),
            ],
            # constant over d -> per-sample output block stays resident in VMEM
            out_specs=pl.BlockSpec((None, D, QP, C_out_p), lambda n, d: (n, 0, 0, 0)),
            scratch_shapes=[pltpu.VMEM((1, C_out_p), jnp.float32),
                            pltpu.VMEM((1, C_out_p), jnp.float32)],
        ),
        compiler_params=pltpu.CompilerParams(
            dimension_semantics=("parallel", "arbitrary")),
    )(x_flat, x_flat, x_flat, w_taps, mask_row, g_p, b_p)

    # (N, D, Q*P, C_out_p) -> drop halo rows + padded channels -> NCDHW
    out = out.reshape(N, D, Q, P, C_out_p)[:, :, 1:H + 1, 1:W + 1, :C_out]
    return jnp.transpose(out, (0, 4, 1, 2, 3))


def reference(x, weight, bias, gamma, beta):
    y = lax.conv_general_dilated(
        x, weight, window_strides=(1, 1, 1),
        padding=((1, 1), (1, 1), (1, 1)),
        dimension_numbers=("NCDHW", "OIDHW", "NCDHW"))
    y = y + bias[None, :, None, None, None]
    mean = jnp.mean(y, axis=(2, 3, 4), keepdims=True)
    var = jnp.mean((y - mean) ** 2, axis=(2, 3, 4), keepdims=True)
    y = (y - mean) / jnp.sqrt(var + EPS)
    y = y * gamma[None, :, None, None, None] + beta[None, :, None, None, None]
    return jnp.where(y >= 0, y, NEG_SLOPE * y)


if __name__ == "__main__":
    key = jax.random.PRNGKey(0)
    k_x, k_w, k_b, k_g, k_bt = jax.random.split(key, 5)

    N, C_in, C_out, D, H, W = 2, 4, 8, 8, 8, 8

    x = jax.random.normal(k_x, (N, C_in, D, H, W), dtype=jnp.float32)
    weight = 0.1 * jax.random.normal(k_w, (C_out, C_in, 3, 3, 3), dtype=jnp.float32)
    bias = 0.1 * jax.random.normal(k_b, (C_out,), dtype=jnp.float32)
    gamma = 1.0 + 0.1 * jax.random.normal(k_g, (C_out,), dtype=jnp.float32)
    beta = 0.1 * jax.random.normal(k_bt, (C_out,), dtype=jnp.float32)

    out = jax.block_until_ready(conv_dropout_norm_nonlin(x, weight, bias, gamma, beta))
    ref = jax.block_until_ready(reference(x, weight, bias, gamma, beta))

    assert out.shape == (N, C_out, D, H, W)
    max_err = float(jnp.max(jnp.abs(out - ref)))
    # bf16 matmul operands (f32 accumulation) -> slightly looser tolerance than pure f32
    assert jnp.allclose(out, ref, rtol=2e-2, atol=3e-2), max_err

    print("KERNEL_OK")
</pallas_src>

<mosaic_0001>
module attributes {stable_mosaic.version = 11 : i64} {
  func.func @kernel(%arg0: i32, %arg1: i32, %arg2: memref<1x1x122x4xbf16, #tpu.memory_space<vmem>>, %arg3: memref<1x1x122x4xbf16, #tpu.memory_space<vmem>>, %arg4: memref<1x1x122x4xbf16, #tpu.memory_space<vmem>>, %arg5: memref<27x4x128xbf16, #tpu.memory_space<vmem>>, %arg6: memref<1x100xf32, #tpu.memory_space<vmem>>, %arg7: memref<1x128xf32, #tpu.memory_space<vmem>>, %arg8: memref<1x128xf32, #tpu.memory_space<vmem>>, %arg9: memref<1x8x100x128xf32, #tpu.memory_space<vmem>>, %arg10: memref<1x128xf32, #tpu.memory_space<vmem>>, %arg11: memref<1x128xf32, #tpu.memory_space<vmem>>) attributes {dimension_semantics = [#tpu.dimension_semantics<parallel>, #tpu.dimension_semantics<arbitrary>], iteration_bounds = array<i64: 2, 8>, scalar_prefetch = 0 : i64, scratch_operands = 2 : i64, tpu.core_type = #tpu.core_type<tc>, window_params = [{transform_indices = @transform_0, window_bounds = array<i64: 1, 1, 122, 4>}, {transform_indices = @transform_1, window_bounds = array<i64: 1, 1, 122, 4>}, {transform_indices = @transform_2, window_bounds = array<i64: 1, 1, 122, 4>}, {pipeline_mode = #tpu.pipeline_mode<synchronous>, transform_indices = @transform_3, window_bounds = array<i64: 27, 4, 128>}, {pipeline_mode = #tpu.pipeline_mode<synchronous>, transform_indices = @transform_4, window_bounds = array<i64: 1, 100>}, {pipeline_mode = #tpu.pipeline_mode<synchronous>, transform_indices = @transform_5, window_bounds = array<i64: 1, 128>}, {pipeline_mode = #tpu.pipeline_mode<synchronous>, transform_indices = @transform_6, window_bounds = array<i64: 1, 128>}, {transform_indices = @transform_7, window_bounds = array<i64: 1, 8, 100, 128>}]} {
    %c0_i32 = arith.constant 0 : i32
    %0 = arith.cmpi eq, %arg1, %c0_i32 : i32
    %1 = arith.extui %0 : i1 to i32
    %c0_i32_0 = arith.constant 0 : i32
    %2 = arith.cmpi ne, %1, %c0_i32_0 : i32
    scf.if %2 {
      %cst_206 = arith.constant 0.000000e+00 : f32
      %183 = vector.broadcast %cst_206 : f32 to vector<1x128xf32>
      %c0_207 = arith.constant 0 : index
      %c0_208 = arith.constant 0 : index
      %184 = vector.load %arg10[%c0_207, %c0_208] : memref<1x128xf32, #tpu.memory_space<vmem>>, vector<1x128xf32>
      tpu.vector_store %arg10[%c0_207, %c0_208], %183 {strides = array<i32>} : memref<1x128xf32, #tpu.memory_space<vmem>>, vector<1x128xf32>,
      %cst_209 = arith.constant 0.000000e+00 : f32
      %185 = vector.broadcast %cst_209 : f32 to vector<1x128xf32>
      %c0_210 = arith.constant 0 : index
      %c0_211 = arith.constant 0 : index
      %186 = vector.load %arg11[%c0_210, %c0_211] : memref<1x128xf32, #tpu.memory_space<vmem>>, vector<1x128xf32>
      tpu.vector_store %arg11[%c0_210, %c0_211], %185 {strides = array<i32>} : memref<1x128xf32, #tpu.memory_space<vmem>>, vector<1x128xf32>,
    } else {
    }
    %cst = arith.constant 0.000000e+00 : f32
    %3 = vector.broadcast %cst : f32 to vector<100x128xf32>
    %c0 = arith.constant 0 : index
    %c0_1 = arith.constant 0 : index
    %c0_2 = arith.constant 0 : index
    %c0_3 = arith.constant 0 : index
    %4 = vector.load %arg2[%c0, %c0_1, %c0_2, %c0_3] : memref<1x1x122x4xbf16, #tpu.memory_space<vmem>>, vector<1x1x100x4xbf16>
    %5 = vector.shape_cast %4 : vector<1x1x100x4xbf16> to vector<100x4xbf16>
    %c0_4 = arith.constant 0 : index
    %c0_5 = arith.constant 0 : index
    %c0_6 = arith.constant 0 : index
    %6 = vector.load %arg5[%c0_4, %c0_5, %c0_6] : memref<27x4x128xbf16, #tpu.memory_space<vmem>>, vector<1x4x128xbf16>
    %7 = vector.shape_cast %6 : vector<1x4x128xbf16> to vector<4x128xbf16>
    %cst_7 = arith.constant dense<0.000000e+00> : vector<100x128xf32>
    %8 = tpu.matmul %5, %7, %cst_7 {dimension_numbers = #tpu.dot_dimension_numbers<[1], [0], [0], [1], [0, 0, 1, 1], [], []>} : vector<100x4xbf16>, vector<4x128xbf16>, vector<100x128xf32> -> vector<100x128xf32>
    %9 = arith.addf %3, %8 : vector<100x128xf32>
    %c0_8 = arith.constant 0 : index
    %c0_9 = arith.constant 0 : index
    %c1 = arith.constant 1 : index
    %c0_10 = arith.constant 0 : index
    %10 = vector.load %arg2[%c0_8, %c0_9, %c1, %c0_10] : memref<1x1x122x4xbf16, #tpu.memory_space<vmem>>, vector<1x1x100x4xbf16>
    %11 = vector.shape_cast %10 : vector<1x1x100x4xbf16> to vector<100x4xbf16>
    %c1_11 = arith.constant 1 : index
    %c0_12 = arith.constant 0 : index
    %c0_13 = arith.constant 0 : index
    %12 = vector.load %arg5[%c1_11, %c0_12, %c0_13] : memref<27x4x128xbf16, #tpu.memory_space<vmem>>, vector<1x4x128xbf16>
    %13 = vector.shape_cast %12 : vector<1x4x128xbf16> to vector<4x128xbf16>
    %cst_14 = arith.constant dense<0.000000e+00> : vector<100x128xf32>
    %14 = tpu.matmul %11, %13, %cst_14 {dimension_numbers = #tpu.dot_dimension_numbers<[1], [0], [0], [1], [0, 0, 1, 1], [], []>} : vector<100x4xbf16>, vector<4x128xbf16>, vector<100x128xf32> -> vector<100x128xf32>
    %15 = arith.addf %9, %14 : vector<100x128xf32>
    %c0_15 = arith.constant 0 : index
    %c0_16 = arith.constant 0 : index
    %c2 = arith.constant 2 : index
    %c0_17 = arith.constant 0 : index
    %16 = vector.load %arg2[%c0_15, %c0_16, %c2, %c0_17] : memref<1x1x122x4xbf16, #tpu.memory_space<vmem>>, vector<1x1x100x4xbf16>
    %17 = vector.shape_cast %16 : vector<1x1x100x4xbf16> to vector<100x4xbf16>
    %c2_18 = arith.constant 2 : index
    %c0_19 = arith.constant 0 : index
    %c0_20 = arith.constant 0 : index
    %18 = vector.load %arg5[%c2_18, %c0_19, %c0_20] : memref<27x4x128xbf16, #tpu.memory_space<vmem>>, vector<1x4x128xbf16>
    %19 = vector.shape_cast %18 : vector<1x4x128xbf16> to vector<4x128xbf16>
    %cst_21 = arith.constant dense<0.000000e+00> : vector<100x128xf32>
    %20 = tpu.matmul %17, %19, %cst_21 {dimension_numbers = #tpu.dot_dimension_numbers<[1], [0], [0], [1], [0, 0, 1, 1], [], []>} : vector<100x4xbf16>, vector<4x128xbf16>, vector<100x128xf32> -> vector<100x128xf32>
    %21 = arith.addf %15, %20 : vector<100x128xf32>
    %c0_22 = arith.constant 0 : index
    %c0_23 = arith.constant 0 : index
    %c10 = arith.constant 10 : index
    %c0_24 = arith.constant 0 : index
    %22 = vector.load %arg2[%c0_22, %c0_23, %c10, %c0_24] : memref<1x1x122x4xbf16, #tpu.memory_space<vmem>>, vector<1x1x100x4xbf16>
    %23 = vector.shape_cast %22 : vector<1x1x100x4xbf16> to vector<100x4xbf16>
    %c3 = arith.constant 3 : index
    %c0_25 = arith.constant 0 : index
    %c0_26 = arith.constant 0 : index
    %24 = vector.load %arg5[%c3, %c0_25, %c0_26] : memref<27x4x128xbf16, #tpu.memory_space<vmem>>, vector<1x4x128xbf16>
    %25 = vector.shape_cast %24 : vector<1x4x128xbf16> to vector<4x128xbf16>
    %cst_27 = arith.constant dense<0.000000e+00> : vector<100x128xf32>
    %26 = tpu.matmul %23, %25, %cst_27 {dimension_numbers = #tpu.dot_dimension_numbers<[1], [0], [0], [1], [0, 0, 1, 1], [], []>} : vector<100x4xbf16>, vector<4x128xbf16>, vector<100x128xf32> -> vector<100x128xf32>
    %27 = arith.addf %21, %26 : vector<100x128xf32>
    %c0_28 = arith.constant 0 : index
    %c0_29 = arith.constant 0 : index
    %c11 = arith.constant 11 : index
    %c0_30 = arith.constant 0 : index
    %28 = vector.load %arg2[%c0_28, %c0_29, %c11, %c0_30] : memref<1x1x122x4xbf16, #tpu.memory_space<vmem>>, vector<1x1x100x4xbf16>
    %29 = vector.shape_cast %28 : vector<1x1x100x4xbf16> to vector<100x4xbf16>
    %c4 = arith.constant 4 : index
    %c0_31 = arith.constant 0 : index
    %c0_32 = arith.constant 0 : index
    %30 = vector.load %arg5[%c4, %c0_31, %c0_32] : memref<27x4x128xbf16, #tpu.memory_space<vmem>>, vector<1x4x128xbf16>
    %31 = vector.shape_cast %30 : vector<1x4x128xbf16> to vector<4x128xbf16>
    %cst_33 = arith.constant dense<0.000000e+00> : vector<100x128xf32>
    %32 = tpu.matmul %29, %31, %cst_33 {dimension_numbers = #tpu.dot_dimension_numbers<[1], [0], [0], [1], [0, 0, 1, 1], [], []>} : vector<100x4xbf16>, vector<4x128xbf16>, vector<100x128xf32> -> vector<100x128xf32>
    %33 = arith.addf %27, %32 : vector<100x128xf32>
    %c0_34 = arith.constant 0 : index
    %c0_35 = arith.constant 0 : index
    %c12 = arith.constant 12 : index
    %c0_36 = arith.constant 0 : index
    %34 = vector.load %arg2[%c0_34, %c0_35, %c12, %c0_36] : memref<1x1x122x4xbf16, #tpu.memory_space<vmem>>, vector<1x1x100x4xbf16>
    %35 = vector.shape_cast %34 : vector<1x1x100x4xbf16> to vector<100x4xbf16>
    %c5 = arith.constant 5 : index
    %c0_37 = arith.constant 0 : index
    %c0_38 = arith.constant 0 : index
    %36 = vector.load %arg5[%c5, %c0_37, %c0_38] : memref<27x4x128xbf16, #tpu.memory_space<vmem>>, vector<1x4x128xbf16>
    %37 = vector.shape_cast %36 : vector<1x4x128xbf16> to vector<4x128xbf16>
    %cst_39 = arith.constant dense<0.000000e+00> : vector<100x128xf32>
    %38 = tpu.matmul %35, %37, %cst_39 {dimension_numbers = #tpu.dot_dimension_numbers<[1], [0], [0], [1], [0, 0, 1, 1], [], []>} : vector<100x4xbf16>, vector<4x128xbf16>, vector<100x128xf32> -> vector<100x128xf32>
    %39 = arith.addf %33, %38 : vector<100x128xf32>
    %c0_40 = arith.constant 0 : index
    %c0_41 = arith.constant 0 : index
    %c20 = arith.constant 20 : index
    %c0_42 = arith.constant 0 : index
    %40 = vector.load %arg2[%c0_40, %c0_41, %c20, %c0_42] : memref<1x1x122x4xbf16, #tpu.memory_space<vmem>>, vector<1x1x100x4xbf16>
    %41 = vector.shape_cast %40 : vector<1x1x100x4xbf16> to vector<100x4xbf16>
    %c6 = arith.constant 6 : index
    %c0_43 = arith.constant 0 : index
    %c0_44 = arith.constant 0 : index
    %42 = vector.load %arg5[%c6, %c0_43, %c0_44] : memref<27x4x128xbf16, #tpu.memory_space<vmem>>, vector<1x4x128xbf16>
    %43 = vector.shape_cast %42 : vector<1x4x128xbf16> to vector<4x128xbf16>
    %cst_45 = arith.constant dense<0.000000e+00> : vector<100x128xf32>
    %44 = tpu.matmul %41, %43, %cst_45 {dimension_numbers = #tpu.dot_dimension_numbers<[1], [0], [0], [1], [0, 0, 1, 1], [], []>} : vector<100x4xbf16>, vector<4x128xbf16>, vector<100x128xf32> -> vector<100x128xf32>
    %45 = arith.addf %39, %44 : vector<100x128xf32>
    %c0_46 = arith.constant 0 : index
    %c0_47 = arith.constant 0 : index
    %c21 = arith.constant 21 : index
    %c0_48 = arith.constant 0 : index
    %46 = vector.load %arg2[%c0_46, %c0_47, %c21, %c0_48] : memref<1x1x122x4xbf16, #tpu.memory_space<vmem>>, vector<1x1x100x4xbf16>
    %47 = vector.shape_cast %46 : vector<1x1x100x4xbf16> to vector<100x4xbf16>
    %c7 = arith.constant 7 : index
    %c0_49 = arith.constant 0 : index
    %c0_50 = arith.constant 0 : index
    %48 = vector.load %arg5[%c7, %c0_49, %c0_50] : memref<27x4x128xbf16, #tpu.memory_space<vmem>>, vector<1x4x128xbf16>
    %49 = vector.shape_cast %48 : vector<1x4x128xbf16> to vector<4x128xbf16>
    %cst_51 = arith.constant dense<0.000000e+00> : vector<100x128xf32>
    %50 = tpu.matmul %47, %49, %cst_51 {dimension_numbers = #tpu.dot_dimension_numbers<[1], [0], [0], [1], [0, 0, 1, 1], [], []>} : vector<100x4xbf16>, vector<4x128xbf16>, vector<100x128xf32> -> vector<100x128xf32>
    %51 = arith.addf %45, %50 : vector<100x128xf32>
    %c0_52 = arith.constant 0 : index
    %c0_53 = arith.constant 0 : index
    %c22 = arith.constant 22 : index
    %c0_54 = arith.constant 0 : index
    %52 = vector.load %arg2[%c0_52, %c0_53, %c22, %c0_54] : memref<1x1x122x4xbf16, #tpu.memory_space<vmem>>, vector<1x1x100x4xbf16>
    %53 = vector.shape_cast %52 : vector<1x1x100x4xbf16> to vector<100x4xbf16>
    %c8 = arith.constant 8 : index
    %c0_55 = arith.constant 0 : index
    %c0_56 = arith.constant 0 : index
    %54 = vector.load %arg5[%c8, %c0_55, %c0_56] : memref<27x4x128xbf16, #tpu.memory_space<vmem>>, vector<1x4x128xbf16>
    %55 = vector.shape_cast %54 : vector<1x4x128xbf16> to vector<4x128xbf16>
    %cst_57 = arith.constant dense<0.000000e+00> : vector<100x128xf32>
    %56 = tpu.matmul %53, %55, %cst_57 {dimension_numbers = #tpu.dot_dimension_numbers<[1], [0], [0], [1], [0, 0, 1, 1], [], []>} : vector<100x4xbf16>, vector<4x128xbf16>, vector<100x128xf32> -> vector<100x128xf32>
    %57 = arith.addf %51, %56 : vector<100x128xf32>
    %c0_58 = arith.constant 0 : index
    %c0_59 = arith.constant 0 : index
    %c0_60 = arith.constant 0 : index
    %c0_61 = arith.constant 0 : index
    %58 = vector.load %arg3[%c0_58, %c0_59, %c0_60, %c0_61] : memref<1x1x122x4xbf16, #tpu.memory_space<vmem>>, vector<1x1x100x4xbf16>
    %59 = vector.shape_cast %58 : vector<1x1x100x4xbf16> to vector<100x4xbf16>
    %c9 = arith.constant 9 : index
    %c0_62 = arith.constant 0 : index
    %c0_63 = arith.constant 0 : index
    %60 = vector.load %arg5[%c9, %c0_62, %c0_63] : memref<27x4x128xbf16, #tpu.memory_space<vmem>>, vector<1x4x128xbf16>
    %61 = vector.shape_cast %60 : vector<1x4x128xbf16> to vector<4x128xbf16>
    %cst_64 = arith.constant dense<0.000000e+00> : vector<100x128xf32>
    %62 = tpu.matmul %59, %61, %cst_64 {dimension_numbers = #tpu.dot_dimension_numbers<[1], [0], [0], [1], [0, 0, 1, 1], [], []>} : vector<100x4xbf16>, vector<4x128xbf16>, vector<100x128xf32> -> vector<100x128xf32>
    %63 = arith.addf %57, %62 : vector<100x128xf32>
    %c0_65 = arith.constant 0 : index
    %c0_66 = arith.constant 0 : index
    %c1_67 = arith.constant 1 : index
    %c0_68 = arith.constant 0 : index
    %64 = vector.load %arg3[%c0_65, %c0_66, %c1_67, %c0_68] : memref<1x1x122x4xbf16, #tpu.memory_space<vmem>>, vector<1x1x100x4xbf16>
    %65 = vector.shape_cast %64 : vector<1x1x100x4xbf16> to vector<100x4xbf16>
    %c10_69 = arith.constant 10 : index
    %c0_70 = arith.constant 0 : index
    %c0_71 = arith.constant 0 : index
    %66 = vector.load %arg5[%c10_69, %c0_70, %c0_71] : memref<27x4x128xbf16, #tpu.memory_space<vmem>>, vector<1x4x128xbf16>
    %67 = vector.shape_cast %66 : vector<1x4x128xbf16> to vector<4x128xbf16>
    %cst_72 = arith.constant dense<0.000000e+00> : vector<100x128xf32>
    %68 = tpu.matmul %65, %67, %cst_72 {dimension_numbers = #tpu.dot_dimension_numbers<[1], [0], [0], [1], [0, 0, 1, 1], [], []>} : vector<100x4xbf16>, vector<4x128xbf16>, vector<100x128xf32> -> vector<100x128xf32>
    %69 = arith.addf %63, %68 : vector<100x128xf32>
    %c0_73 = arith.constant 0 : index
    %c0_74 = arith.constant 0 : index
    %c2_75 = arith.constant 2 : index
    %c0_76 = arith.constant 0 : index
    %70 = vector.load %arg3[%c0_73, %c0_74, %c2_75, %c0_76] : memref<1x1x122x4xbf16, #tpu.memory_space<vmem>>, vector<1x1x100x4xbf16>
    %71 = vector.shape_cast %70 : vector<1x1x100x4xbf16> to vector<100x4xbf16>
    %c11_77 = arith.constant 11 : index
    %c0_78 = arith.constant 0 : index
    %c0_79 = arith.constant 0 : index
    %72 = vector.load %arg5[%c11_77, %c0_78, %c0_79] : memref<27x4x128xbf16, #tpu.memory_space<vmem>>, vector<1x4x128xbf16>
    %73 = vector.shape_cast %72 : vector<1x4x128xbf16> to vector<4x128xbf16>
    %cst_80 = arith.constant dense<0.000000e+00> : vector<100x128xf32>
    %74 = tpu.matmul %71, %73, %cst_80 {dimension_numbers = #tpu.dot_dimension_numbers<[1], [0], [0], [1], [0, 0, 1, 1], [], []>} : vector<100x4xbf16>, vector<4x128xbf16>, vector<100x128xf32> -> vector<100x128xf32>
    %75 = arith.addf %69, %74 : vector<100x128xf32>
    %c0_81 = arith.constant 0 : index
    %c0_82 = arith.constant 0 : index
    %c10_83 = arith.constant 10 : index
    %c0_84 = arith.constant 0 : index
    %76 = vector.load %arg3[%c0_81, %c0_82, %c10_83, %c0_84] : memref<1x1x122x4xbf16, #tpu.memory_space<vmem>>, vector<1x1x100x4xbf16>
    %77 = vector.shape_cast %76 : vector<1x1x100x4xbf16> to vector<100x4xbf16>
    %c12_85 = arith.constant 12 : index
    %c0_86 = arith.constant 0 : index
    %c0_87 = arith.constant 0 : index
    %78 = vector.load %arg5[%c12_85, %c0_86, %c0_87] : memref<27x4x128xbf16, #tpu.memory_space<vmem>>, vector<1x4x128xbf16>
    %79 = vector.shape_cast %78 : vector<1x4x128xbf16> to vector<4x128xbf16>
    %cst_88 = arith.constant dense<0.000000e+00> : vector<100x128xf32>
    %80 = tpu.matmul %77, %79, %cst_88 {dimension_numbers = #tpu.dot_dimension_numbers<[1], [0], [0], [1], [0, 0, 1, 1], [], []>} : vector<100x4xbf16>, vector<4x128xbf16>, vector<100x128xf32> -> vector<100x128xf32>
    %81 = arith.addf %75, %80 : vector<100x128xf32>
    %c0_89 = arith.constant 0 : index
    %c0_90 = arith.constant 0 : index
    %c11_91 = arith.constant 11 : index
    %c0_92 = arith.constant 0 : index
    %82 = vector.load %arg3[%c0_89, %c0_90, %c11_91, %c0_92] : memref<1x1x122x4xbf16, #tpu.memory_space<vmem>>, vector<1x1x100x4xbf16>
    %83 = vector.shape_cast %82 : vector<1x1x100x4xbf16> to vector<100x4xbf16>
    %c13 = arith.constant 13 : index
    %c0_93 = arith.constant 0 : index
    %c0_94 = arith.constant 0 : index
    %84 = vector.load %arg5[%c13, %c0_93, %c0_94] : memref<27x4x128xbf16, #tpu.memory_space<vmem>>, vector<1x4x128xbf16>
    %85 = vector.shape_cast %84 : vector<1x4x128xbf16> to vector<4x128xbf16>
    %cst_95 = arith.constant dense<0.000000e+00> : vector<100x128xf32>
    %86 = tpu.matmul %83, %85, %cst_95 {dimension_numbers = #tpu.dot_dimension_numbers<[1], [0], [0], [1], [0, 0, 1, 1], [], []>} : vector<100x4xbf16>, vector<4x128xbf16>, vector<100x128xf32> -> vector<100x128xf32>
    %87 = arith.addf %81, %86 : vector<100x128xf32>
    %c0_96 = arith.constant 0 : index
    %c0_97 = arith.constant 0 : index
    %c12_98 = arith.constant 12 : index
    %c0_99 = arith.constant 0 : index
    %88 = vector.load %arg3[%c0_96, %c0_97, %c12_98, %c0_99] : memref<1x1x122x4xbf16, #tpu.memory_space<vmem>>, vector<1x1x100x4xbf16>
    %89 = vector.shape_cast %88 : vector<1x1x100x4xbf16> to vector<100x4xbf16>
    %c14 = arith.constant 14 : index
    %c0_100 = arith.constant 0 : index
    %c0_101 = arith.constant 0 : index
    %90 = vector.load %arg5[%c14, %c0_100, %c0_101] : memref<27x4x128xbf16, #tpu.memory_space<vmem>>, vector<1x4x128xbf16>
    %91 = vector.shape_cast %90 : vector<1x4x128xbf16> to vector<4x128xbf16>
    %cst_102 = arith.constant dense<0.000000e+00> : vector<100x128xf32>
    %92 = tpu.matmul %89, %91, %cst_102 {dimension_numbers = #tpu.dot_dimension_numbers<[1], [0], [0], [1], [0, 0, 1, 1], [], []>} : vector<100x4xbf16>, vector<4x128xbf16>, vector<100x128xf32> -> vector<100x128xf32>
    %93 = arith.addf %87, %92 : vector<100x128xf32>
    %c0_103 = arith.constant 0 : index
    %c0_104 = arith.constant 0 : index
    %c20_105 = arith.constant 20 : index
    %c0_106 = arith.constant 0 : index
    %94 = vector.load %arg3[%c0_103, %c0_104, %c20_105, %c0_106] : memref<1x1x122x4xbf16, #tpu.memory_space<vmem>>, vector<1x1x100x4xbf16>
    %95 = vector.shape_cast %94 : vector<1x1x100x4xbf16> to vector<100x4xbf16>
    %c15 = arith.constant 15 : index
    %c0_107 = arith.constant 0 : index
    %c0_108 = arith.constant 0 : index
    %96 = vector.load %arg5[%c15, %c0_107, %c0_108] : memref<27x4x128xbf16, #tpu.memory_space<vmem>>, vector<1x4x128xbf16>
    %97 = vector.shape_cast %96 : vector<1x4x128xbf16> to vector<4x128xbf16>
    %cst_109 = arith.constant dense<0.000000e+00> : vector<100x128xf32>
    %98 = tpu.matmul %95, %97, %cst_109 {dimension_numbers = #tpu.dot_dimension_numbers<[1], [0], [0], [1], [0, 0, 1, 1], [], []>} : vector<100x4xbf16>, vector<4x128xbf16>, vector<100x128xf32> -> vector<100x128xf32>
    %99 = arith.addf %93, %98 : vector<100x128xf32>
    %c0_110 = arith.constant 0 : index
    %c0_111 = arith.constant 0 : index
    %c21_112 = arith.constant 21 : index
    %c0_113 = arith.constant 0 : index
    %100 = vector.load %arg3[%c0_110, %c0_111, %c21_112, %c0_113] : memref<1x1x122x4xbf16, #tpu.memory_space<vmem>>, vector<1x1x100x4xbf16>
    %101 = vector.shape_cast %100 : vector<1x1x100x4xbf16> to vector<100x4xbf16>
    %c16 = arith.constant 16 : index
    %c0_114 = arith.constant 0 : index
    %c0_115 = arith.constant 0 : index
    %102 = vector.load %arg5[%c16, %c0_114, %c0_115] : memref<27x4x128xbf16, #tpu.memory_space<vmem>>, vector<1x4x128xbf16>
    %103 = vector.shape_cast %102 : vector<1x4x128xbf16> to vector<4x128xbf16>
    %cst_116 = arith.constant dense<0.000000e+00> : vector<100x128xf32>
    %104 = tpu.matmul %101, %103, %cst_116 {dimension_numbers = #tpu.dot_dimension_numbers<[1], [0], [0], [1], [0, 0, 1, 1], [], []>} : vector<100x4xbf16>, vector<4x128xbf16>, vector<100x128xf32> -> vector<100x128xf32>
    %105 = arith.addf %99, %104 : vector<100x128xf32>
    %c0_117 = arith.constant 0 : index
    %c0_118 = arith.constant 0 : index
    %c22_119 = arith.constant 22 : index
    %c0_120 = arith.constant 0 : index
    %106 = vector.load %arg3[%c0_117, %c0_118, %c22_119, %c0_120] : memref<1x1x122x4xbf16, #tpu.memory_space<vmem>>, vector<1x1x100x4xbf16>
    %107 = vector.shape_cast %106 : vector<1x1x100x4xbf16> to vector<100x4xbf16>
    %c17 = arith.constant 17 : index
    %c0_121 = arith.constant 0 : index
    %c0_122 = arith.constant 0 : index
    %108 = vector.load %arg5[%c17, %c0_121, %c0_122] : memref<27x4x128xbf16, #tpu.memory_space<vmem>>, vector<1x4x128xbf16>
    %109 = vector.shape_cast %108 : vector<1x4x128xbf16> to vector<4x128xbf16>
    %cst_123 = arith.constant dense<0.000000e+00> : vector<100x128xf32>
    %110 = tpu.matmul %107, %109, %cst_123 {dimension_numbers = #tpu.dot_dimension_numbers<[1], [0], [0], [1], [0, 0, 1, 1], [], []>} : vector<100x4xbf16>, vector<4x128xbf16>, vector<100x128xf32> -> vector<100x128xf32>
    %111 = arith.addf %105, %110 : vector<100x128xf32>
    %c0_124 = arith.constant 0 : index
    %c0_125 = arith.constant 0 : index
    %c0_126 = arith.constant 0 : index
    %c0_127 = arith.constant 0 : index
    %112 = vector.load %arg4[%c0_124, %c0_125, %c0_126, %c0_127] : memref<1x1x122x4xbf16, #tpu.memory_space<vmem>>, vector<1x1x100x4xbf16>
    %113 = vector.shape_cast %112 : vector<1x1x100x4xbf16> to vector<100x4xbf16>
    %c18 = arith.constant 18 : index
    %c0_128 = arith.constant 0 : index
    %c0_129 = arith.constant 0 : index
    %114 = vector.load %arg5[%c18, %c0_128, %c0_129] : memref<27x4x128xbf16, #tpu.memory_space<vmem>>, vector<1x4x128xbf16>
    %115 = vector.shape_cast %114 : vector<1x4x128xbf16> to vector<4x128xbf16>
    %cst_130 = arith.constant dense<0.000000e+00> : vector<100x128xf32>
    %116 = tpu.matmul %113, %115, %cst_130 {dimension_numbers = #tpu.dot_dimension_numbers<[1], [0], [0], [1], [0, 0, 1, 1], [], []>} : vector<100x4xbf16>, vector<4x128xbf16>, vector<100x128xf32> -> vector<100x128xf32>
    %117 = arith.addf %111, %116 : vector<100x128xf32>
    %c0_131 = arith.constant 0 : index
    %c0_132 = arith.constant 0 : index
    %c1_133 = arith.constant 1 : index
    %c0_134 = arith.constant 0 : index
    %118 = vector.load %arg4[%c0_131, %c0_132, %c1_133, %c0_134] : memref<1x1x122x4xbf16, #tpu.memory_space<vmem>>, vector<1x1x100x4xbf16>
    %119 = vector.shape_cast %118 : vector<1x1x100x4xbf16> to vector<100x4xbf16>
    %c19 = arith.constant 19 : index
    %c0_135 = arith.constant 0 : index
    %c0_136 = arith.constant 0 : index
    %120 = vector.load %arg5[%c19, %c0_135, %c0_136] : memref<27x4x128xbf16, #tpu.memory_space<vmem>>, vector<1x4x128xbf16>
    %121 = vector.shape_cast %120 : vector<1x4x128xbf16> to vector<4x128xbf16>
    %cst_137 = arith.constant dense<0.000000e+00> : vector<100x128xf32>
    %122 = tpu.matmul %119, %121, %cst_137 {dimension_numbers = #tpu.dot_dimension_numbers<[1], [0], [0], [1], [0, 0, 1, 1], [], []>} : vector<100x4xbf16>, vector<4x128xbf16>, vector<100x128xf32> -> vector<100x128xf32>
    %123 = arith.addf %117, %122 : vector<100x128xf32>
    %c0_138 = arith.constant 0 : index
    %c0_139 = arith.constant 0 : index
    %c2_140 = arith.constant 2 : index
    %c0_141 = arith.constant 0 : index
    %124 = vector.load %arg4[%c0_138, %c0_139, %c2_140, %c0_141] : memref<1x1x122x4xbf16, #tpu.memory_space<vmem>>, vector<1x1x100x4xbf16>
    %125 = vector.shape_cast %124 : vector<1x1x100x4xbf16> to vector<100x4xbf16>
    %c20_142 = arith.constant 20 : index
    %c0_143 = arith.constant 0 : index
    %c0_144 = arith.constant 0 : index
    %126 = vector.load %arg5[%c20_142, %c0_143, %c0_144] : memref<27x4x128xbf16, #tpu.memory_space<vmem>>, vector<1x4x128xbf16>
    %127 = vector.shape_cast %126 : vector<1x4x128xbf16> to vector<4x128xbf16>
    %cst_145 = arith.constant dense<0.000000e+00> : vector<100x128xf32>
    %128 = tpu.matmul %125, %127, %cst_145 {dimension_numbers = #tpu.dot_dimension_numbers<[1], [0], [0], [1], [0, 0, 1, 1], [], []>} : vector<100x4xbf16>, vector<4x128xbf16>, vector<100x128xf32> -> vector<100x128xf32>
    %129 = arith.addf %123, %128 : vector<100x128xf32>
    %c0_146 = arith.constant 0 : index
    %c0_147 = arith.constant 0 : index
    %c10_148 = arith.constant 10 : index
    %c0_149 = arith.constant 0 : index
    %130 = vector.load %arg4[%c0_146, %c0_147, %c10_148, %c0_149] : memref<1x1x122x4xbf16, #tpu.memory_space<vmem>>, vector<1x1x100x4xbf16>
    %131 = vector.shape_cast %130 : vector<1x1x100x4xbf16> to vector<100x4xbf16>
    %c21_150 = arith.constant 21 : index
    %c0_151 = arith.constant 0 : index
    %c0_152 = arith.constant 0 : index
    %132 = vector.load %arg5[%c21_150, %c0_151, %c0_152] : memref<27x4x128xbf16, #tpu.memory_space<vmem>>, vector<1x4x128xbf16>
    %133 = vector.shape_cast %132 : vector<1x4x128xbf16> to vector<4x128xbf16>
    %cst_153 = arith.constant dense<0.000000e+00> : vector<100x128xf32>
    %134 = tpu.matmul %131, %133, %cst_153 {dimension_numbers = #tpu.dot_dimension_numbers<[1], [0], [0], [1], [0, 0, 1, 1], [], []>} : vector<100x4xbf16>, vector<4x128xbf16>, vector<100x128xf32> -> vector<100x128xf32>
    %135 = arith.addf %129, %134 : vector<100x128xf32>
    %c0_154 = arith.constant 0 : index
    %c0_155 = arith.constant 0 : index
    %c11_156 = arith.constant 11 : index
    %c0_157 = arith.constant 0 : index
    %136 = vector.load %arg4[%c0_154, %c0_155, %c11_156, %c0_157] : memref<1x1x122x4xbf16, #tpu.memory_space<vmem>>, vector<1x1x100x4xbf16>
    %137 = vector.shape_cast %136 : vector<1x1x100x4xbf16> to vector<100x4xbf16>
    %c22_158 = arith.constant 22 : index
    %c0_159 = arith.constant 0 : index
    %c0_160 = arith.constant 0 : index
    %138 = vector.load %arg5[%c22_158, %c0_159, %c0_160] : memref<27x4x128xbf16, #tpu.memory_space<vmem>>, vector<1x4x128xbf16>
    %139 = vector.shape_cast %138 : vector<1x4x128xbf16> to vector<4x128xbf16>
    %cst_161 = arith.constant dense<0.000000e+00> : vector<100x128xf32>
    %140 = tpu.matmul %137, %139, %cst_161 {dimension_numbers = #tpu.dot_dimension_numbers<[1], [0], [0], [1], [0, 0, 1, 1], [], []>} : vector<100x4xbf16>, vector<4x128xbf16>, vector<100x128xf32> -> vector<100x128xf32>
    %141 = arith.addf %135, %140 : vector<100x128xf32>
    %c0_162 = arith.constant 0 : index
    %c0_163 = arith.constant 0 : index
    %c12_164 = arith.constant 12 : index
    %c0_165 = arith.constant 0 : index
    %142 = vector.load %arg4[%c0_162, %c0_163, %c12_164, %c0_165] : memref<1x1x122x4xbf16, #tpu.memory_space<vmem>>, vector<1x1x100x4xbf16>
    %143 = vector.shape_cast %142 : vector<1x1x100x4xbf16> to vector<100x4xbf16>
    %c23 = arith.constant 23 : index
    %c0_166 = arith.constant 0 : index
    %c0_167 = arith.constant 0 : index
    %144 = vector.load %arg5[%c23, %c0_166, %c0_167] : memref<27x4x128xbf16, #tpu.memory_space<vmem>>, vector<1x4x128xbf16>
    %145 = vector.shape_cast %144 : vector<1x4x128xbf16> to vector<4x128xbf16>
    %cst_168 = arith.constant dense<0.000000e+00> : vector<100x128xf32>
    %146 = tpu.matmul %143, %145, %cst_168 {dimension_numbers = #tpu.dot_dimension_numbers<[1], [0], [0], [1], [0, 0, 1, 1], [], []>} : vector<100x4xbf16>, vector<4x128xbf16>, vector<100x128xf32> -> vector<100x128xf32>
    %147 = arith.addf %141, %146 : vector<100x128xf32>
    %c0_169 = arith.constant 0 : index
    %c0_170 = arith.constant 0 : index
    %c20_171 = arith.constant 20 : index
    %c0_172 = arith.constant 0 : index
    %148 = vector.load %arg4[%c0_169, %c0_170, %c20_171, %c0_172] : memref<1x1x122x4xbf16, #tpu.memory_space<vmem>>, vector<1x1x100x4xbf16>
    %149 = vector.shape_cast %148 : vector<1x1x100x4xbf16> to vector<100x4xbf16>
    %c24 = arith.constant 24 : index
    %c0_173 = arith.constant 0 : index
    %c0_174 = arith.constant 0 : index
    %150 = vector.load %arg5[%c24, %c0_173, %c0_174] : memref<27x4x128xbf16, #tpu.memory_space<vmem>>, vector<1x4x128xbf16>
    %151 = vector.shape_cast %150 : vector<1x4x128xbf16> to vector<4x128xbf16>
    %cst_175 = arith.constant dense<0.000000e+00> : vector<100x128xf32>
    %152 = tpu.matmul %149, %151, %cst_175 {dimension_numbers = #tpu.dot_dimension_numbers<[1], [0], [0], [1], [0, 0, 1, 1], [], []>} : vector<100x4xbf16>, vector<4x128xbf16>, vector<100x128xf32> -> vector<100x128xf32>
    %153 = arith.addf %147, %152 : vector<100x128xf32>
    %c0_176 = arith.constant 0 : index
    %c0_177 = arith.constant 0 : index
    %c21_178 = arith.constant 21 : index
    %c0_179 = arith.constant 0 : index
    %154 = vector.load %arg4[%c0_176, %c0_177, %c21_178, %c0_179] : memref<1x1x122x4xbf16, #tpu.memory_space<vmem>>, vector<1x1x100x4xbf16>
    %155 = vector.shape_cast %154 : vector<1x1x100x4xbf16> to vector<100x4xbf16>
    %c25 = arith.constant 25 : index
    %c0_180 = arith.constant 0 : index
    %c0_181 = arith.constant 0 : index
    %156 = vector.load %arg5[%c25, %c0_180, %c0_181] : memref<27x4x128xbf16, #tpu.memory_space<vmem>>, vector<1x4x128xbf16>
    %157 = vector.shape_cast %156 : vector<1x4x128xbf16> to vector<4x128xbf16>
    %cst_182 = arith.constant dense<0.000000e+00> : vector<100x128xf32>
    %158 = tpu.matmul %155, %157, %cst_182 {dimension_numbers = #tpu.dot_dimension_numbers<[1], [0], [0], [1], [0, 0, 1, 1], [], []>} : vector<100x4xbf16>, vector<4x128xbf16>, vector<100x128xf32> -> vector<100x128xf32>
    %159 = arith.addf %153, %158 : vector<100x128xf32>
    %c0_183 = arith.constant 0 : index
    %c0_184 = arith.constant 0 : index
    %c22_185 = arith.constant 22 : index
    %c0_186 = arith.constant 0 : index
    %160 = vector.load %arg4[%c0_183, %c0_184, %c22_185, %c0_186] : memref<1x1x122x4xbf16, #tpu.memory_space<vmem>>, vector<1x1x100x4xbf16>
    %161 = vector.shape_cast %160 : vector<1x1x100x4xbf16> to vector<100x4xbf16>
    %c26 = arith.constant 26 : index
    %c0_187 = arith.constant 0 : index
    %c0_188 = arith.constant 0 : index
    %162 = vector.load %arg5[%c26, %c0_187, %c0_188] : memref<27x4x128xbf16, #tpu.memory_space<vmem>>, vector<1x4x128xbf16>
    %163 = vector.shape_cast %162 : vector<1x4x128xbf16> to vector<4x128xbf16>
    %cst_189 = arith.constant dense<0.000000e+00> : vector<100x128xf32>
    %164 = tpu.matmul %161, %163, %cst_189 {dimension_numbers = #tpu.dot_dimension_numbers<[1], [0], [0], [1], [0, 0, 1, 1], [], []>} : vector<100x4xbf16>, vector<4x128xbf16>, vector<100x128xf32> -> vector<100x128xf32>
    %165 = arith.addf %159, %164 : vector<100x128xf32>
    %c0_190 = arith.constant 0 : index
    %166 = arith.index_cast %arg1 : i32 to index
    %c0_191 = arith.constant 0 : index
    %c0_192 = arith.constant 0 : index
    %167 = vector.load %arg9[%c0_190, %166, %c0_191, %c0_192] : memref<1x8x100x128xf32, #tpu.memory_space<vmem>>, vector<1x1x100x128xf32>
    %168 = vector.shape_cast %167 : vector<1x1x100x128xf32> to vector<100x128xf32>
    %169 = vector.shape_cast %165 : vector<100x128xf32> to vector<1x1x100x128xf32>
    tpu.vector_store %arg9[%c0_190, %166, %c0_191, %c0_192], %169 {strides = array<i32>} : memref<1x8x100x128xf32, #tpu.memory_space<vmem>>, vector<1x1x100x128xf32>,
    %c0_193 = arith.constant 0 : index
    %c0_194 = arith.constant 0 : index
    %170 = vector.load %arg6[%c0_193, %c0_194] : memref<1x100xf32, #tpu.memory_space<vmem>>, vector<1x100xf32>
    %c0_195 = arith.constant 0 : index
    %c0_196 = arith.constant 0 : index
    %171 = vector.load %arg10[%c0_195, %c0_196] : memref<1x128xf32, #tpu.memory_space<vmem>>, vector<1x128xf32>
    %cst_197 = arith.constant dense<0.000000e+00> : vector<1x128xf32>
    %172 = tpu.matmul %170, %165, %cst_197 {dimension_numbers = #tpu.dot_dimension_numbers<[1], [0], [0], [1], [0, 0, 1, 1], [], []>} : vector<1x100xf32>, vector<100x128xf32>, vector<1x128xf32> -> vector<1x128xf32>
    %173 = arith.addf %171, %172 : vector<1x128xf32>
    %c0_198 = arith.constant 0 : index
    %c0_199 = arith.constant 0 : index
    %174 = vector.load %arg10[%c0_198, %c0_199] : memref<1x128xf32, #tpu.memory_space<vmem>>, vector<1x128xf32>
    tpu.vector_store %arg10[%c0_198, %c0_199], %173 {strides = array<i32>} : memref<1x128xf32, #tpu.memory_space<vmem>>, vector<1x128xf32>,
    %c0_200 = arith.constant 0 : index
    %c0_201 = arith.constant 0 : index
    %175 = vector.load %arg11[%c0_200, %c0_201] : memref<1x128xf32, #tpu.memory_space<vmem>>, vector<1x128xf32>
    %176 = arith.mulf %165, %165 : vector<100x128xf32>
    %cst_202 = arith.constant dense<0.000000e+00> : vector<1x128xf32>
    %177 = tpu.matmul %170, %176, %cst_202 {dimension_numbers = #tpu.dot_dimension_numbers<[1], [0], [0], [1], [0, 0, 1, 1], [], []>} : vector<1x100xf32>, vector<100x128xf32>, vector<1x128xf32> -> vector<1x128xf32>
    %178 = arith.addf %175, %177 : vector<1x128xf32>
    %c0_203 = arith.constant 0 : index
    %c0_204 = arith.constant 0 : index
    %179 = vector.load %arg11[%c0_203, %c0_204] : memref<1x128xf32, #tpu.memory_space<vmem>>, vector<1x128xf32>
    tpu.vector_store %arg11[%c0_203, %c0_204], %178 {strides = array<i32>} : memref<1x128xf32, #tpu.memory_space<vmem>>, vector<1x128xf32>,
    %c7_i32 = arith.constant 7 : i32
    %180 = arith.cmpi eq, %arg1, %c7_i32 : i32
    %181 = arith.extui %180 : i1 to i32
    %c0_i32_205 = arith.constant 0 : i32
    %182 = arith.cmpi ne, %181, %c0_i32_205 : i32
    scf.if %182 {
      %c0_206 = arith.constant 0 : index
      %c0_207 = arith.constant 0 : index
      %183 = vector.load %arg10[%c0_206, %c0_207] : memref<1x128xf32, #tpu.memory_space<vmem>>, vector<1x128xf32>
      %cst_208 = arith.constant 5.120000e+02 : f32
      %184 = vector.broadcast %cst_208 : f32 to vector<1x128xf32>
      %185 = arith.divf %183, %184 : vector<1x128xf32>
      %c0_209 = arith.constant 0 : index
      %c0_210 = arith.constant 0 : index
      %186 = vector.load %arg11[%c0_209, %c0_210] : memref<1x128xf32, #tpu.memory_space<vmem>>, vector<1x128xf32>
      %cst_211 = arith.constant 5.120000e+02 : f32
      %187 = vector.broadcast %cst_211 : f32 to vector<1x128xf32>
      %188 = arith.divf %186, %187 : vector<1x128xf32>
      %189 = arith.mulf %185, %185 : vector<1x128xf32>
      %190 = arith.subf %188, %189 : vector<1x128xf32>
      %cst_212 = arith.constant 0.000000e+00 : f32
      %191 = vector.broadcast %cst_212 : f32 to vector<1x128xf32>
      %192 = arith.maximumf %190, %191 : vector<1x128xf32>
      %c0_213 = arith.constant 0 : index
      %c0_214 = arith.constant 0 : index
      %193 = vector.load %arg7[%c0_213, %c0_214] : memref<1x128xf32, #tpu.memory_space<vmem>>, vector<1x128xf32>
      %cst_215 = arith.constant 9.99999974E-6 : f32
      %194 = vector.broadcast %cst_215 : f32 to vector<1x128xf32>
      %195 = arith.addf %192, %194 : vector<1x128xf32>
      %196 = math.rsqrt %195 : vector<1x128xf32>
      %197 = arith.mulf %193, %196 : vector<1x128xf32>
      %c0_216 = arith.constant 0 : index
      %c0_217 = arith.constant 0 : index
      %198 = vector.load %arg8[%c0_216, %c0_217] : memref<1x128xf32, #tpu.memory_space<vmem>>, vector<1x128xf32>
      %199 = arith.mulf %185, %197 : vector<1x128xf32>
      %200 = arith.subf %198, %199 : vector<1x128xf32>
      %c0_i32_218 = arith.constant 0 : i32
      %c8_i32 = arith.constant 8 : i32
      %201 = arith.addi %c0_i32_218, %c8_i32 : i32
      %c1_i32 = arith.constant 1 : i32
      scf.for %arg12 = %c0_i32_218 to %201 step %c1_i32  : i32 {
        %c0_220 = arith.constant 0 : index
        %202 = arith.index_cast %arg12 : i32 to index
        %c0_221 = arith.constant 0 : index
        %c0_222 = arith.constant 0 : index
        %203 = vector.load %arg9[%c0_220, %202, %c0_221, %c0_222] : memref<1x8x100x128xf32, #tpu.memory_space<vmem>>, vector<1x1x100x128xf32>
        %204 = vector.shape_cast %203 : vector<1x1x100x128xf32> to vector<100x128xf32>
        %205 = vector.broadcast %197 : vector<1x128xf32> to vector<100x128xf32>
        %206 = arith.mulf %204, %205 : vector<100x128xf32>
        %207 = vector.broadcast %200 : vector<1x128xf32> to vector<100x128xf32>
        %208 = arith.addf %206, %207 : vector<100x128xf32>
        %cst_223 = arith.constant 0.000000e+00 : f32
        %209 = vector.broadcast %cst_223 : f32 to vector<100x128xf32>
        %210 = arith.cmpf oge, %208, %209 : vector<100x128xf32>
        %cst_224 = arith.constant 0.00999999977 : f32
        %211 = vector.broadcast %cst_224 : f32 to vector<100x128xf32>
        %212 = arith.mulf %211, %208 : vector<100x128xf32>
        %213 = arith.select %210, %208, %212 : vector<100x128xi1>, vector<100x128xf32>
        %c0_225 = arith.constant 0 : index
        %214 = arith.index_cast %arg12 : i32 to index
        %c0_226 = arith.constant 0 : index
        %c0_227 = arith.constant 0 : index
        %215 = vector.load %arg9[%c0_225, %214, %c0_226, %c0_227] : memref<1x8x100x128xf32, #tpu.memory_space<vmem>>, vector<1x1x100x128xf32>
        %216 = vector.shape_cast %215 : vector<1x1x100x128xf32> to vector<100x128xf32>
        %217 = vector.shape_cast %213 : vector<100x128xf32> to vector<1x1x100x128xf32>
        tpu.vector_store %arg9[%c0_225, %214, %c0_226, %c0_227], %217 {strides = array<i32>} : memref<1x8x100x128xf32, #tpu.memory_space<vmem>>, vector<1x1x100x128xf32>,
      }
      %c8_i32_219 = arith.constant 8 : i32
    } else {
    }
    return
  }
  func.func @transform_0(%arg0: i32, %arg1: i32) -> (i32, i32, i32, i32) {
    %c0_i32 = arith.constant 0 : i32
    %0 = arith.addi %arg1, %c0_i32 : i32
    %c0_i32_0 = arith.constant 0 : i32
    %c0_i32_1 = arith.constant 0 : i32
    %c0_i32_2 = arith.constant 0 : i32
    return %arg0, %0, %c0_i32_0, %c0_i32_1 : i32, i32, i32, i32
  }
  func.func @transform_1(%arg0: i32, %arg1: i32) -> (i32, i32, i32, i32) {
    %c1_i32 = arith.constant 1 : i32
    %0 = arith.addi %arg1, %c1_i32 : i32
    %c0_i32 = arith.constant 0 : i32
    %c0_i32_0 = arith.constant 0 : i32
    %c0_i32_1 = arith.constant 0 : i32
    return %arg0, %0, %c0_i32, %c0_i32_0 : i32, i32, i32, i32
  }
  func.func @transform_2(%arg0: i32, %arg1: i32) -> (i32, i32, i32, i32) {
    %c2_i32 = arith.constant 2 : i32
    %0 = arith.addi %arg1, %c2_i32 : i32
    %c0_i32 = arith.constant 0 : i32
    %c0_i32_0 = arith.constant 0 : i32
    %c0_i32_1 = arith.constant 0 : i32
    return %arg0, %0, %c0_i32, %c0_i32_0 : i32, i32, i32, i32
  }
  func.func @transform_3(%arg0: i32, %arg1: i32) -> (i32, i32, i32) {
    %c0_i32 = arith.constant 0 : i32
    %c0_i32_0 = arith.constant 0 : i32
    %c0_i32_1 = arith.constant 0 : i32
    %c0_i32_2 = arith.constant 0 : i32
    return %c0_i32, %c0_i32_0, %c0_i32_1 : i32, i32, i32
  }
  func.func @transform_4(%arg0: i32, %arg1: i32) -> (i32, i32) {
    %c0_i32 = arith.constant 0 : i32
    %c0_i32_0 = arith.constant 0 : i32
    %c0_i32_1 = arith.constant 0 : i32
    return %c0_i32, %c0_i32_0 : i32, i32
  }
  func.func @transform_5(%arg0: i32, %arg1: i32) -> (i32, i32) {
    %c0_i32 = arith.constant 0 : i32
    %c0_i32_0 = arith.constant 0 : i32
    %c0_i32_1 = arith.constant 0 : i32
    return %c0_i32, %c0_i32_0 : i32, i32
  }
  func.func @transform_6(%arg0: i32, %arg1: i32) -> (i32, i32) {
    %c0_i32 = arith.constant 0 : i32
    %c0_i32_0 = arith.constant 0 : i32
    %c0_i32_1 = arith.constant 0 : i32
    return %c0_i32, %c0_i32_0 : i32, i32
  }
  func.func @transform_7(%arg0: i32, %arg1: i32) -> (i32, i32, i32, i32) {
    %c0_i32 = arith.constant 0 : i32
    %c0_i32_0 = arith.constant 0 : i32
    %c0_i32_1 = arith.constant 0 : i32
    %c0_i32_2 = arith.constant 0 : i32
    return %arg0, %c0_i32, %c0_i32_0, %c0_i32_1 : i32, i32, i32, i32
  }
}

</mosaic_0001>

<llo_original>
// kernel: tpu_custom_call.1
$region0: #{tpu_custom_call.1}
  #allocation0 [shape = 'u32[]', space=smem, size = 0x4, offset = 0x4, fixed_abs, tag = 'smem constant byte address 0x4 - core index']
  #allocation1 [shape = 'u32[144,128]{1,0:T(1,128)}', space=vmem, size = 0x12000, scoped, tag = 'internal scratch']
  #allocation2 [shape = 'f32[1,128]{1,0:T(1,128)}', space=vmem, size = 0x200, scoped, tag = 'scratch operand']
  #allocation3 [shape = 'f32[1,128]{1,0:T(1,128)}', space=vmem, size = 0x200, scoped, tag = 'scratch operand']
  %s0 = inlined_call_operand.vmem [shape: bf16[2,10,122,4], index: 0, kind: input, shape index: {}]
  %s1 = inlined_call_operand.vmem [shape: bf16[2,10,122,4], index: 1, kind: input, shape index: {}]
  %s2 = inlined_call_operand.vmem [shape: bf16[2,10,122,4], index: 2, kind: input, shape index: {}]
  %s3 = inlined_call_operand.vmem [shape: bf16[27,4,128], index: 3, kind: input, shape index: {}]
  %s4 = inlined_call_operand.vmem [shape: f32[1,100], index: 4, kind: input, shape index: {}]
  %s5 = inlined_call_operand.vmem [shape: f32[1,128], index: 5, kind: input, shape index: {}]
  %s6 = inlined_call_operand.vmem [shape: f32[1,128], index: 6, kind: input, shape index: {}]
  %s7 = inlined_call_operand.vmem [shape: f32[2,8,100,128], index: 7, kind: output, shape index: {}]
  %s8 = sld [smem:[#allocation0]]
  $region76: #{tpu_custom_call.1} parent=0
    _
  %s10 = ssub.s32 1, %s8
  %s11 = scalar_select 0, %s10, %s8
  loop: start=0, step=1, limit=18
  $region2: #{tpu_custom_call.1} parent=0 // loop_pre_header
    _
  $region3: #{tpu_custom_call.1} parent=0 // loop_header
    %s13 = sphi 0, %s17
    %p14 = scmp.ge.s32.totalorder %s13, 18
    %s20 = sphi 0, %s32
    %s21 = sphi 0, %s28
    %s22 = sphi 0, %s20
    %s23 = sphi 0, %s21
    %s24 = sphi 0, %s22
    %s25 = sphi 0, %s23
    %s37 = sphi 0, %s39
    %s40 = sphi 0, %s37
    %s41 = sphi 0, %s40
    %s57 = sphi 0, %s41
    %s67 = sphi 0, %s69
    %s70 = sphi 0, %s67
    %s71 = sphi 0, %s70
    %s87 = sphi 0, %s71
    %s97 = sphi 0, %s99
    %s100 = sphi 0, %s97
    %s101 = sphi 0, %s100
    %s117 = sphi 0, %s101
    %s121 = sphi 0, %s121
    %s123 = sphi 0, %s121
    %s124 = sphi 0, %s123
    %s138 = sphi 0, %s124
    %s142 = sphi 0, %s142
    %s144 = sphi 0, %s142
    %s145 = sphi 0, %s144
    %s159 = sphi 0, %s145
    %s163 = sphi 0, %s163
    %s165 = sphi 0, %s163
    %s166 = sphi 0, %s165
    %s180 = sphi 0, %s166
    %s184 = sphi 0, %s184
    %s186 = sphi 0, %s184
    %s187 = sphi 0, %s186
    %s201 = sphi 0, %s187
    %s207 = sphi 0, %s209
    %s210 = sphi 0, %s207
    %s211 = sphi 0, %s210
    %s227 = sphi 0, %s211
  $region4: #{tpu_custom_call.1} parent=0 // loop_header_branch
    %16 = sbr.rel (%p14) target = $region8
  $region5: #{tpu_custom_call.1} parent=0 // loop_body
    %s18 = ssub.s32 %s13, 1
    %s19 = ssub.s32 %s13, 2
    %s26 = sadd.s32 1, %s21
    %p27 = scmp.ge.s32.totalorder %s26, 8
    %s28 = scalar_select %p27, 0, %s26
    %s29 = sadd.s32 1, %s20
    %s30 = scalar_select %p27, %s29, %s20
    %p31 = scmp.ge.s32.totalorder %s30, 2
    %s32 = scalar_select %p31, 0, %s30
    %s33 = ssub.s32 %s20, %s32
    %s34 = ssub.s32 %s21, %s28
    %s35 = sor.u32 %s33, %s34
    %p36 = scmp.eq.s32.totalorder %s35, 0
    %s38 = sadd.s32 %s37, 1
    %s39 = scalar_select %p36, %s37, %s38
    %p42 = pneg %p36
    %p43 = scmp.eq.s32.totalorder %s13, 15
    %p44 = por %p42, %p43
    %p45 = scmp.ne.s32.totalorder %s37, %s40
    %p46 = scmp.eq.s32.totalorder %s13, 0
    %p47 = por %p45, %p46
    %p48 = scmp.ne.s32.totalorder %s37, %s40
    %p49 = scmp.eq.s32.totalorder %s18, 15
    %p50 = por %p48, %p49
    %p51 = scmp.ne.s32.totalorder %s40, %s41
    %p52 = scmp.eq.s32.totalorder %s18, 0
    %p53 = por %p51, %p52
    %p54 = scmp.ne.s32.totalorder %s40, %s41
    %p55 = scmp.eq.s32.totalorder %s19, 15
    %p56 = por %p54, %p55
    %p58 = scmp.ne.s32.totalorder %s41, %s57
    %p59 = scmp.eq.s32.totalorder %s19, 0
    %p60 = por %p58, %p59
    %s61 = sadd.s32 %s21, 1
    %s62 = sadd.s32 %s28, 1
    %s63 = ssub.s32 %s20, %s32
    %s64 = ssub.s32 %s61, %s62
    %s65 = sor.u32 %s63, %s64
    %p66 = scmp.eq.s32.totalorder %s65, 0
    %s68 = sadd.s32 %s67, 1
    %s69 = scalar_select %p66, %s67, %s68
    %p72 = pneg %p66
    %p73 = scmp.eq.s32.totalorder %s13, 15
    %p74 = por %p72, %p73
    %p75 = scmp.ne.s32.totalorder %s67, %s70
    %p76 = scmp.eq.s32.totalorder %s13, 0
    %p77 = por %p75, %p76
    %p78 = scmp.ne.s32.totalorder %s67, %s70
    %p79 = scmp.eq.s32.totalorder %s18, 15
    %p80 = por %p78, %p79
    %p81 = scmp.ne.s32.totalorder %s70, %s71
    %p82 = scmp.eq.s32.totalorder %s18, 0
    %p83 = por %p81, %p82
    %p84 = scmp.ne.s32.totalorder %s70, %s71
    %p85 = scmp.eq.s32.totalorder %s19, 15
    %p86 = por %p84, %p85
    %p88 = scmp.ne.s32.totalorder %s71, %s87
    %p89 = scmp.eq.s32.totalorder %s19, 0
    %p90 = por %p88, %p89
    %s91 = sadd.s32 %s21, 2
    %s92 = sadd.s32 %s28, 2
    %s93 = ssub.s32 %s20, %s32
    %s94 = ssub.s32 %s91, %s92
    %s95 = sor.u32 %s93, %s94
    %p96 = scmp.eq.s32.totalorder %s95, 0
    %s98 = sadd.s32 %s97, 1
    %s99 = scalar_select %p96, %s97, %s98
    %p102 = pneg %p96
    %p103 = scmp.eq.s32.totalorder %s13, 15
    %p104 = por %p102, %p103
    %p105 = scmp.ne.s32.totalorder %s97, %s100
    %p106 = scmp.eq.s32.totalorder %s13, 0
    %p107 = por %p105, %p106
    %p108 = scmp.ne.s32.totalorder %s97, %s100
    %p109 = scmp.eq.s32.totalorder %s18, 15
    %p110 = por %p108, %p109
    %p111 = scmp.ne.s32.totalorder %s100, %s101
    %p112 = scmp.eq.s32.totalorder %s18, 0
    %p113 = por %p111, %p112
    %p114 = scmp.ne.s32.totalorder %s100, %s101
    %p115 = scmp.eq.s32.totalorder %s19, 15
    %p116 = por %p114, %p115
    %p118 = scmp.ne.s32.totalorder %s101, %s117
    %p119 = scmp.eq.s32.totalorder %s19, 0
    %p120 = por %p118, %p119
    %s122 = sadd.s32 %s121, 1
    %p125 = scmp.eq.s32.totalorder %s13, 15
    %p126 = scmp.ne.s32.totalorder %s121, %s123
    %p127 = scmp.eq.s32.totalorder %s13, 0
    %p128 = por %p126, %p127
    %p129 = scmp.ne.s32.totalorder %s121, %s123
    %p130 = scmp.eq.s32.totalorder %s18, 15
    %p131 = por %p129, %p130
    %p132 = scmp.ne.s32.totalorder %s123, %s124
    %p133 = scmp.eq.s32.totalorder %s18, 0
    %p134 = por %p132, %p133
    %p135 = scmp.ne.s32.totalorder %s123, %s124
    %p136 = scmp.eq.s32.totalorder %s19, 15
    %p137 = por %p135, %p136
    %p139 = scmp.ne.s32.totalorder %s124, %s138
    %p140 = scmp.eq.s32.totalorder %s19, 0
    %p141 = por %p139, %p140
    %s143 = sadd.s32 %s142, 1
    %p146 = scmp.eq.s32.totalorder %s13, 15
    %p147 = scmp.ne.s32.totalorder %s142, %s144
    %p148 = scmp.eq.s32.totalorder %s13, 0
    %p149 = por %p147, %p148
    %p150 = scmp.ne.s32.totalorder %s142, %s144
    %p151 = scmp.eq.s32.totalorder %s18, 15
    %p152 = por %p150, %p151
    %p153 = scmp.ne.s32.totalorder %s144, %s145
    %p154 = scmp.eq.s32.totalorder %s18, 0
    %p155 = por %p153, %p154
    %p156 = scmp.ne.s32.totalorder %s144, %s145
    %p157 = scmp.eq.s32.totalorder %s19, 15
    %p158 = por %p156, %p157
    %p160 = scmp.ne.s32.totalorder %s145, %s159
    %p161 = scmp.eq.s32.totalorder %s19, 0
    %p162 = por %p160, %p161
    %s164 = sadd.s32 %s163, 1
    %p167 = scmp.eq.s32.totalorder %s13, 15
    %p168 = scmp.ne.s32.totalorder %s163, %s165
    %p169 = scmp.eq.s32.totalorder %s13, 0
    %p170 = por %p168, %p169
    %p171 = scmp.ne.s32.totalorder %s163, %s165
    %p172 = scmp.eq.s32.totalorder %s18, 15
    %p173 = por %p171, %p172
    %p174 = scmp.ne.s32.totalorder %s165, %s166
    %p175 = scmp.eq.s32.totalorder %s18, 0
    %p176 = por %p174, %p175
    %p177 = scmp.ne.s32.totalorder %s165, %s166
    %p178 = scmp.eq.s32.totalorder %s19, 15
    %p179 = por %p177, %p178
    %p181 = scmp.ne.s32.totalorder %s166, %s180
    %p182 = scmp.eq.s32.totalorder %s19, 0
    %p183 = por %p181, %p182
    %s185 = sadd.s32 %s184, 1
    %p188 = scmp.eq.s32.totalorder %s13, 15
    %p189 = scmp.ne.s32.totalorder %s184, %s186
    %p190 = scmp.eq.s32.totalorder %s13, 0
    %p191 = por %p189, %p190
    %p192 = scmp.ne.s32.totalorder %s184, %s186
    %p193 = scmp.eq.s32.totalorder %s18, 15
    %p194 = por %p192, %p193
    %p195 = scmp.ne.s32.totalorder %s186, %s187
    %p196 = scmp.eq.s32.totalorder %s18, 0
    %p197 = por %p195, %p196
    %p198 = scmp.ne.s32.totalorder %s186, %s187
    %p199 = scmp.eq.s32.totalorder %s19, 15
    %p200 = por %p198, %p199
    %p202 = scmp.ne.s32.totalorder %s187, %s201
    %p203 = scmp.eq.s32.totalorder %s19, 0
    %p204 = por %p202, %p203
    %s205 = ssub.s32 %s20, %s32
    %p206 = scmp.eq.s32.totalorder %s205, 0
    %s208 = sadd.s32 %s207, 1
    %s209 = scalar_select %p206, %s207, %s208
    %p212 = pneg %p206
    %p213 = scmp.eq.s32.totalorder %s13, 15
    %p214 = por %p212, %p213
    %p215 = scmp.ne.s32.totalorder %s207, %s210
    %p216 = scmp.eq.s32.totalorder %s13, 0
    %p217 = por %p215, %p216
    %p218 = scmp.ne.s32.totalorder %s207, %s210
    %p219 = scmp.eq.s32.totalorder %s18, 15
    %p220 = por %p218, %p219
    %p221 = scmp.ne.s32.totalorder %s210, %s211
    %p222 = scmp.eq.s32.totalorder %s18, 0
    %p223 = por %p221, %p222
    %p224 = scmp.ne.s32.totalorder %s210, %s211
    %p225 = scmp.eq.s32.totalorder %s19, 15
    %p226 = por %p224, %p225
    %p228 = scmp.ne.s32.totalorder %s211, %s227
    %p229 = scmp.eq.s32.totalorder %s19, 0
    %p230 = por %p228, %p229
    %p231 = scmp.le.s32.totalorder 1, %s13
    %p232 = scmp.lt.s32.totalorder %s13, 17
    %p233 = pnand %p231, %p232
    %p234 = pneg %p233
    // Predicated region
    $region9: #{tpu_custom_call.1} parent=5 // pred_check
      _
    $region10: #{tpu_custom_call.1} parent=5 // pred_check_branch
      %236 = sbr.rel (%p233) target = $region12
    $region11: #{tpu_custom_call.1} parent=5 // pred_region
      %s237 = ssub.s32 %s13, 1
      // Predicated region
      $region13: #{tpu_custom_call.1} parent=11 // pred_check
        %p238 = pneg %p134
      $region14: #{tpu_custom_call.1} parent=11 // pred_check_branch
        %240 = sbr.rel (%p238) target = $region16
      $region15: #{tpu_custom_call.1} parent=11 // pred_region
        _
      $region16: #{tpu_custom_call.1} parent=11 // pred_fallthru
        _
      // Predicated region
      $region17: #{tpu_custom_call.1} parent=11 // pred_check
        %p241 = pneg %p155
      $region18: #{tpu_custom_call.1} parent=11 // pred_check_branch
        %243 = sbr.rel (%p241) target = $region20
      $region19: #{tpu_custom_call.1} parent=11 // pred_region
        _
      $region20: #{tpu_custom_call.1} parent=11 // pred_fallthru
        _
      // Predicated region
      $region21: #{tpu_custom_call.1} parent=11 // pred_check
        %p244 = pneg %p176
      $region22: #{tpu_custom_call.1} parent=11 // pred_check_branch
        %246 = sbr.rel (%p244) target = $region24
      $region23: #{tpu_custom_call.1} parent=11 // pred_region
        _
      $region24: #{tpu_custom_call.1} parent=11 // pred_fallthru
        _
      // Predicated region
      $region25: #{tpu_custom_call.1} parent=11 // pred_check
        %p247 = pneg %p197
      $region26: #{tpu_custom_call.1} parent=11 // pred_check_branch
        %249 = sbr.rel (%p247) target = $region28
      $region27: #{tpu_custom_call.1} parent=11 // pred_region
        _
      $region28: #{tpu_custom_call.1} parent=11 // pred_fallthru
        _
    $region12: #{tpu_custom_call.1} parent=5 // pred_fallthru
      _
    %p250 = scmp.lt.s32.totalorder %s13, 16
    // Predicated region
    $region29: #{tpu_custom_call.1} parent=5 // pred_check
      %p251 = pneg %p250
    $region30: #{tpu_custom_call.1} parent=5 // pred_check_branch
      %253 = sbr.rel (%p251) target = $region32
    $region31: #{tpu_custom_call.1} parent=5 // pred_region
      // Predicated region
      $region33: #{tpu_custom_call.1} parent=31 // pred_check
        %p254 = pneg %p47
      $region34: #{tpu_custom_call.1} parent=31 // pred_check_branch
        %256 = sbr.rel (%p254) target = $region36
      $region35: #{tpu_custom_call.1} parent=31 // pred_region
        %p257 = scmp.lt.s32.totalorder %s20, 1
        %s258 = scalar_select %p257, %s20, 1
        %p259 = scmp.lt.s32.totalorder %s21, 9
        %s260 = scalar_select %p259, %s21, 9
        %s261 = smul.addr %s260, 16
        %s262 = smul.addr %s258, 160
        %s263 = sadd.s32 %s261, %s262
        %s264 = smul.addr %s263, 4
        %s265 = scalar_lea.vmem %s0, %s264
      $region36: #{tpu_custom_call.1} parent=31 // pred_fallthru
        _
      // Predicated region
      $region37: #{tpu_custom_call.1} parent=31 // pred_check
        %p266 = pneg %p77
      $region38: #{tpu_custom_call.1} parent=31 // pred_check_branch
        %268 = sbr.rel (%p266) target = $region40
      $region39: #{tpu_custom_call.1} parent=31 // pred_region
        %s269 = sadd.s32 %s21, 1
        %p270 = scmp.lt.s32.totalorder %s20, 1
        %s271 = scalar_select %p270, %s20, 1
        %p272 = scmp.lt.s32.totalorder %s269, 9
        %s273 = scalar_select %p272, %s269, 9
        %s274 = smul.addr %s273, 16
        %s275 = smul.addr %s271, 160
        %s276 = sadd.s32 %s274, %s275
        %s277 = smul.addr %s276, 4
        %s278 = scalar_lea.vmem %s1, %s277
        %s279 = sadd.s32 %s21, 1
      $region40: #{tpu_custom_call.1} parent=31 // pred_fallthru
        _
      // Predicated region
      $region41: #{tpu_custom_call.1} parent=31 // pred_check
        %p280 = pneg %p107
      $region42: #{tpu_custom_call.1} parent=31 // pred_check_branch
        %282 = sbr.rel (%p280) target = $region44
      $region43: #{tpu_custom_call.1} parent=31 // pred_region
        %s283 = sadd.s32 %s21, 2
        %p284 = scmp.lt.s32.totalorder %s20, 1
        %s285 = scalar_select %p284, %s20, 1
        %p286 = scmp.lt.s32.totalorder %s283, 9
        %s287 = scalar_select %p286, %s283, 9
        %s288 = smul.addr %s287, 16
        %s289 = smul.addr %s285, 160
        %s290 = sadd.s32 %s288, %s289
        %s291 = smul.addr %s290, 4
        %s292 = scalar_lea.vmem %s2, %s291
        %s293 = sadd.s32 %s21, 2
      $region44: #{tpu_custom_call.1} parent=31 // pred_fallthru
        _
    $region32: #{tpu_custom_call.1} parent=5 // pred_fallthru
      _
    %p294 = scmp.le.s32.totalorder 1, %s13
    %p295 = scmp.lt.s32.totalorder %s13, 17
    %p296 = pnand %p294, %p295
    %p297 = pneg %p296
    // Predicated region
    $region45: #{tpu_custom_call.1} parent=5 // pred_check
      _
    $region46: #{tpu_custom_call.1} parent=5 // pred_check_branch
      %299 = sbr.rel (%p296) target = $region48
    $region47: #{tpu_custom_call.1} parent=5 // pred_region
      %s300 = ssub.s32 %s13, 1
      %p301 = scmp.lt.s32.totalorder %s22, 1
      %s302 = scalar_select %p301, %s22, 1
      %p303 = scmp.lt.s32.totalorder %s23, 9
      %s304 = scalar_select %p303, %s23, 9
      %s305 = smul.addr %s304, 16
      %s306 = smul.addr %s302, 160
      %s307 = sadd.s32 %s305, %s306
      %s308 = smul.addr %s307, 4
      %s309 = scalar_lea.vmem %s0, %s308
      %p310 = pneg %p53
      %p311 = pneg %p50
      %s312 = sadd.s32 %s23, 1
      %p313 = scmp.lt.s32.totalorder %s22, 1
      %s314 = scalar_select %p313, %s22, 1
      %p315 = scmp.lt.s32.totalorder %s312, 9
      %s316 = scalar_select %p315, %s312, 9
      %s317 = smul.addr %s316, 16
      %s318 = smul.addr %s314, 160
      %s319 = sadd.s32 %s317, %s318
      %s320 = smul.addr %s319, 4
      %s321 = scalar_lea.vmem %s1, %s320
      %p322 = pneg %p83
      %p323 = pneg %p80
      %s324 = sadd.s32 %s23, 2
      %p325 = scmp.lt.s32.totalorder %s22, 1
      %s326 = scalar_select %p325, %s22, 1
      %p327 = scmp.lt.s32.totalorder %s324, 9
      %s328 = scalar_select %p327, %s324, 9
      %s329 = smul.addr %s328, 16
      %s330 = smul.addr %s326, 160
      %s331 = sadd.s32 %s329, %s330
      %s332 = smul.addr %s331, 4
      %s333 = scalar_lea.vmem %s2, %s332
      %p334 = pneg %p113
      %p335 = pneg %p110
      %p336 = pneg %p134
      %p337 = pneg %p131
      %p338 = pneg %p155
      %p339 = pneg %p152
      %p340 = pneg %p176
      %p341 = pneg %p173
      %p342 = pneg %p197
      %p343 = pneg %p194
      %p344 = pneg %p223
      %p345 = pneg %p220
      %p346 = scmp.lt.s32.totalorder %s22, 1
      %s347 = scalar_select %p346, %s22, 1
      %s348 = smul.addr %s347, 104
      %s349 = smul.addr %s348, 8
      %s350 = scalar_lea.vmem %s7, %s349
      %p351 = scmp.lt.s32.totalorder %s22, 1
      %s352 = scalar_select %p351, %s22, 1
      %p353 = scmp.lt.s32.totalorder %s23, 9
      %s354 = scalar_select %p353, %s23, 9
      %s355 = smul.addr %s354, 16
      %s356 = smul.addr %s352, 160
      %s357 = sadd.s32 %s355, %s356
      %s358 = smul.addr %s357, 4
      %s359 = scalar_lea.vmem %s0, %s358
      %s360 = sadd.s32 %s23, 1
      %p361 = scmp.lt.s32.totalorder %s22, 1
      %s362 = scalar_select %p361, %s22, 1
      %p363 = scmp.lt.s32.totalorder %s360, 9
      %s364 = scalar_select %p363, %s360, 9
      %s365 = smul.addr %s364, 16
      %s366 = smul.addr %s362, 160
      %s367 = sadd.s32 %s365, %s366
      %s368 = smul.addr %s367, 4
      %s369 = scalar_lea.vmem %s1, %s368
      %s370 = sadd.s32 %s23, 1
      %s371 = sadd.s32 %s23, 2
      %p372 = scmp.lt.s32.totalorder %s22, 1
      %s373 = scalar_select %p372, %s22, 1
      %p374 = scmp.lt.s32.totalorder %s371, 9
      %s375 = scalar_select %p374, %s371, 9
      %s376 = smul.addr %s375, 16
      %s377 = smul.addr %s373, 160
      %s378 = sadd.s32 %s376, %s377
      %s379 = smul.addr %s378, 4
      %s380 = scalar_lea.vmem %s2, %s379
      %s381 = sadd.s32 %s23, 2
      %p382 = scmp.lt.s32.totalorder %s22, 1
      %s383 = scalar_select %p382, %s22, 1
      %s384 = smul.addr %s383, 104
      %s385 = smul.addr %s384, 8
      %s386 = scalar_lea.vmem %s7, %s385
      %p388 = scmp.eq.s32.totalorder %s23, 0
      // Predicated region
      $region49: #{tpu_custom_call.1} parent=47 // pred_check
        %p389 = pneg %p388
      $region50: #{tpu_custom_call.1} parent=47 // pred_check_branch
        %391 = sbr.rel (%p389) target = $region52
      $region51: #{tpu_custom_call.1} parent=47 // pred_region
        %392 = vst [vmem:[#allocation2] sm:$0x1] 0.0
        %393 = vst [vmem:[#allocation3] sm:$0x1] 0.0
      $region52: #{tpu_custom_call.1} parent=47 // pred_fallthru
        _
      %v394 = vld [vmem:[%s359] sm:$0xf]
      %v395 = vld [vmem:[%s359 + $0x4] sm:$0xf]
      %v396 = vld [vmem:[%s359 + $0x8] sm:$0xf]
      %v397 = vld [vmem:[%s359 + $0xc] sm:$0xf]
      %v398 = vld [vmem:[%s359 + $0x10] sm:$0xf]
      %v399 = vld [vmem:[%s359 + $0x14] sm:$0xf]
      %v400 = vld [vmem:[%s359 + $0x18] sm:$0xf]
      %v401 = vld [vmem:[%s359 + $0x1c] sm:$0xf]
      %v402 = vld [vmem:[%s359 + $0x20] sm:$0xf]
      %v403 = vld [vmem:[%s359 + $0x24] sm:$0xf]
      %v404 = vld [vmem:[%s359 + $0x28] sm:$0xf]
      %v405 = vld [vmem:[%s359 + $0x2c] sm:$0xf]
      %v406 = vld [vmem:[%s359 + $0x30] sm:$0x3]
      %v407 = vld [vmem:[%s3] sm:$0x3]
      %v408 = vld [vmem:[%s359 + $0x30] sm:$0x7]
      %s409 = scalar_lea.vmem %s3, 2
      %v410 = vld [vmem:[%s409] sm:$0x3]
      %v424 = vunpack.c.l.b16 %v394
      %v425 = vunpack.c.l.b16 %v395
      %v426 = vunpack.c.l.b16 %v396
      %v427 = vunpack.c.l.b16 %v397
      %v428 = vunpack.c.l.b16 %v398
      %v429 = vunpack.c.l.b16 %v399
      %v430 = vunpack.c.l.b16 %v400
      %v431 = vunpack.c.l.b16 %v401
      %v432 = vunpack.c.l.b16 %v402
      %v433 = vunpack.c.l.b16 %v403
      %v434 = vunpack.c.l.b16 %v404
      %v435 = vunpack.c.l.b16 %v405
      %v436 = vunpack.c.l.b16 %v408
      %v437 = vpack.c.b16 %v425, %v424
      %v438 = vpack.c.b16 %v427, %v426
      %v439 = vpack.c.b16 %v429, %v428
      %v440 = vpack.c.b16 %v431, %v430
      %v441 = vpack.c.b16 %v433, %v432
      %v442 = vpack.c.b16 %v435, %v434
      %v443 = vpack.c.b16 %v436, %v436
      %vm444 = vsmask.f32 7424
      %v446 = vshrl.u32 %v437, 16
      %v448 = vshll.u32 %v437, 16
      %v450 = vrot.slane %v448, 1
      %v451 = vor.u32 %v446, %v450
      %v453 = vshll.u32 %v438, 16
      %v455 = vrot.slane %v453, 1
      %v456 = vsel %vm444, %v451, %v455
      %v457 = vshrl.u32 %v438, 16
      %v459 = vor.u32 %v457, %v455
      %v461 = vshll.u32 %v439, 16
      %v463 = vrot.slane %v461, 1
      %v464 = vsel %vm444, %v459, %v463
      %v465 = vshrl.u32 %v439, 16
      %v467 = vor.u32 %v465, %v463
      %v469 = vshll.u32 %v440, 16
      %v471 = vrot.slane %v469, 1
      %v472 = vsel %vm444, %v467, %v471
      %v473 = vshrl.u32 %v440, 16
      %v475 = vor.u32 %v473, %v471
      %v477 = vshll.u32 %v441, 16
      %v479 = vrot.slane %v477, 1
      %v480 = vsel %vm444, %v475, %v479
      %v481 = vshrl.u32 %v441, 16
      %v483 = vor.u32 %v481, %v479
      %v485 = vshll.u32 %v442, 16
      %v487 = vrot.slane %v485, 1
      %v488 = vsel %vm444, %v483, %v487
      %v489 = vshrl.u32 %v442, 16
      %v491 = vor.u32 %v489, %v487
      %v493 = vshll.u32 %v443, 16
      %v495 = vrot.slane %v493, 1
      %v496 = vsel %vm444, %v491, %v495
      %v497 = vshrl.u32 %v443, 16
      %v499 = vor.u32 %v497, %v495
      %vm500 = vcmask 31744
      %v502 = vsel %vm500, %v456, 0
      %v505 = vsel %vm500, %v464, 0
      %v508 = vsel %vm500, %v472, 0
      %v511 = vsel %vm500, %v480, 0
      %v514 = vsel %vm500, %v488, 0
      %v517 = vsel %vm500, %v496, 0
      %v520 = vsel %vm500, %v499, 0
      %vm522 = vcmask 1041408
      %v524 = vsel %vm522, %v410, 0
      %526 = vmatprep.subr.bf16.mxu0 0
      %527 = vmatpush1.bf16.msra.mxu0 0
      %528 = vmatprep.subr.bf16.mxu0 0
      %529 = vmatpush1.bf16.msra.mxu0 0
      %530 = vmatprep.subr.bf16.mxu0 0
      %531 = vmatpush1.bf16.msra.mxu0 0
      %532 = vmatprep.subr.bf16.mxu0 0
      %533 = vmatpush1.bf16.msra.mxu0 0
      %534 = vmatprep.subr.bf16.mxu0 0
      %535 = vmatpush1.bf16.msra.mxu0 0
      %536 = vmatprep.subr.bf16.mxu0 0
      %537 = vmatpush1.bf16.msra.mxu0 0
      %538 = vmatprep.subr.bf16.mxu0 0
      %539 = vmatpush1.bf16.msra.mxu0 0
      %540 = vmatprep.subr.bf16.mxu0 0
      %541 = vmatpush1.bf16.msra.mxu0 %v524
      %542 = vmatprep.subr.bf16.mxu0 0
      %543 = vmatpush2.bf16.msra.mxu0 0
      %544 = vmatprep.subr.bf16.mxu0 0
      %545 = vmatpush2.bf16.msra.mxu0 0
      %546 = vmatprep.subr.bf16.mxu0 0
      %547 = vmatpush2.bf16.msra.mxu0 0
      %548 = vmatprep.subr.bf16.mxu0 0
      %549 = vmatpush2.bf16.msra.mxu0 0
      %550 = vmatprep.subr.bf16.mxu0 0
      %551 = vmatpush2.bf16.msra.mxu0 0
      %552 = vmatprep.subr.bf16.mxu0 0
      %553 = vmatpush2.bf16.msra.mxu0 0
      %554 = vmatprep.subr.bf16.mxu0 0
      %555 = vmatpush2.bf16.msra.mxu0 0
      %556 = vmatprep.subr.bf16.mxu0 0
      %557 = vmatpush2.bf16.msra.mxu0 0
      %558 = vmatprep.mubr.bf16.mxu0 0
      %559 = vmatmul.mubr.bf16.gmra.mxu0 %v502
      %v560 = vpop.f32.mrf.mxu0
      %v561 = vadd.f32 0.0, %v560
      %v562 = vpop.f32.mrf.mxu0
      %v563 = vpop.f32.mrf.mxu0
      %v564 = vadd.f32 0.0, %v563
      %v565 = vpop.f32.mrf.mxu0
      %566 = vmatprep.mubr.bf16.mxu0 0
      %567 = vmatmul.mubr.bf16.gmra.mxu0 %v505
      %v568 = vpop.f32.mrf.mxu0
      %v569 = vadd.f32 0.0, %v568
      %v570 = vpop.f32.mrf.mxu0
      %v571 = vpop.f32.mrf.mxu0
      %v572 = vadd.f32 0.0, %v571
      %v573 = vpop.f32.mrf.mxu0
      %574 = vmatprep.mubr.bf16.mxu0 0
      %575 = vmatmul.mubr.bf16.gmra.mxu0 %v508
      %v576 = vpop.f32.mrf.mxu0
      %v577 = vadd.f32 0.0, %v576
      %v578 = vpop.f32.mrf.mxu0
      %v579 = vpop.f32.mrf.mxu0
      %v580 = vadd.f32 0.0, %v579
      %v581 = vpop.f32.mrf.mxu0
      %582 = vmatprep.mubr.bf16.mxu0 0
      %583 = vmatmul.mubr.bf16.gmra.mxu0 %v511
      %v584 = vpop.f32.mrf.mxu0
      %v585 = vadd.f32 0.0, %v584
      %v586 = vpop.f32.mrf.mxu0
      %v587 = vpop.f32.mrf.mxu0
      %v588 = vadd.f32 0.0, %v587
      %v589 = vpop.f32.mrf.mxu0
      %590 = vmatprep.mubr.bf16.mxu0 0
      %591 = vmatmul.mubr.bf16.gmra.mxu0 %v514
      %v592 = vpop.f32.mrf.mxu0
      %v593 = vadd.f32 0.0, %v592
      %v594 = vpop.f32.mrf.mxu0
      %v595 = vpop.f32.mrf.mxu0
      %v596 = vadd.f32 0.0, %v595
      %v597 = vpop.f32.mrf.mxu0
      %598 = vmatprep.mubr.bf16.mxu0 0
      %599 = vmatmul.mubr.bf16.gmra.mxu0 %v517
      %v600 = vpop.f32.mrf.mxu0
      %v601 = vadd.f32 0.0, %v600
      %v602 = vpop.f32.mrf.mxu0
      %v603 = vpop.f32.mrf.mxu0
      %v604 = vadd.f32 0.0, %v603
      %v605 = vpop.f32.mrf.mxu0
      %606 = vmatprep.mubr.bf16.mxu0 0
      %607 = vmatmul.mubr.bf16.gmra.mxu0 %v520
      %v608 = vpop.f32.mrf.mxu0
      %v609 = vadd.f32 0.0, %v608
      %v610 = vpop.f32.mrf.mxu0
      %v611 = vpop.f32.mrf.mxu0
      %v612 = vpop.f32.mrf.mxu0
      %613 = vdwg.mxu0
      %v615 = vunpack.c.l.b16 %v406
      %v616 = vpack.c.b16 %v615, %v615
      %v617 = vsel %vm500, %v437, 0
      %v619 = vsel %vm500, %v438, 0
      %v621 = vsel %vm500, %v439, 0
      %v623 = vsel %vm500, %v440, 0
      %v625 = vsel %vm500, %v441, 0
      %v627 = vsel %vm500, %v442, 0
      %v630 = vsel %vm500, %v616, 0
      %v633 = vsel %vm522, %v407, 0
      %635 = vmatprep.subr.bf16.mxu0 0
      %636 = vmatpush1.bf16.msra.mxu0 0
      %637 = vmatprep.subr.bf16.mxu0 0
      %638 = vmatpush1.bf16.msra.mxu0 0
      %639 = vmatprep.subr.bf16.mxu0 0
      %640 = vmatpush1.bf16.msra.mxu0 0
      %641 = vmatprep.subr.bf16.mxu0 0
      %642 = vmatpush1.bf16.msra.mxu0 0
      %643 = vmatprep.subr.bf16.mxu0 0
      %644 = vmatpush1.bf16.msra.mxu0 0
      %645 = vmatprep.subr.bf16.mxu0 0
      %646 = vmatpush1.bf16.msra.mxu0 0
      %647 = vmatprep.subr.bf16.mxu0 0
      %648 = vmatpush1.bf16.msra.mxu0 0
      %649 = vmatprep.subr.bf16.mxu0 0
      %650 = vmatpush1.bf16.msra.mxu0 %v633
      %651 = vmatprep.subr.bf16.mxu0 0
      %652 = vmatpush2.bf16.msra.mxu0 0
      %653 = vmatprep.subr.bf16.mxu0 0
      %654 = vmatpush2.bf16.msra.mxu0 0
      %655 = vmatprep.subr.bf16.mxu0 0
      %656 = vmatpush2.bf16.msra.mxu0 0
      %657 = vmatprep.subr.bf16.mxu0 0
      %658 = vmatpush2.bf16.msra.mxu0 0
      %659 = vmatprep.subr.bf16.mxu0 0
      %660 = vmatpush2.bf16.msra.mxu0 0
      %661 = vmatprep.subr.bf16.mxu0 0
      %662 = vmatpush2.bf16.msra.mxu0 0
      %663 = vmatprep.subr.bf16.mxu0 0
      %664 = vmatpush2.bf16.msra.mxu0 0
      %665 = vmatprep.subr.bf16.mxu0 0
      %666 = vmatpush2.bf16.msra.mxu0 0
      %667 = vmatprep.mubr.bf16.mxu0 0
      %668 = vmatmul.mubr.bf16.gmra.mxu0 %v617
      %v669 = vpop.f32.mrf.mxu0
      %v670 = vadd.f32 %v561, %v669
      %v671 = vpop.f32.mrf.mxu0
      %v672 = vpop.f32.mrf.mxu0
      %v673 = vadd.f32 %v564, %v672
      %v674 = vpop.f32.mrf.mxu0
      %675 = vmatprep.mubr.bf16.mxu0 0
      %676 = vmatmul.mubr.bf16.gmra.mxu0 %v619
      %v677 = vpop.f32.mrf.mxu0
      %v678 = vadd.f32 %v569, %v677
      %v679 = vpop.f32.mrf.mxu0
      %v680 = vpop.f32.mrf.mxu0
      %v681 = vadd.f32 %v572, %v680
      %v682 = vpop.f32.mrf.mxu0
      %683 = vmatprep.mubr.bf16.mxu0 0
      %684 = vmatmul.mubr.bf16.gmra.mxu0 %v621
      %v685 = vpop.f32.mrf.mxu0
      %v686 = vadd.f32 %v577, %v685
      %v687 = vpop.f32.mrf.mxu0
      %v688 = vpop.f32.mrf.mxu0
      %v689 = vadd.f32 %v580, %v688
      %v690 = vpop.f32.mrf.mxu0
      %691 = vmatprep.mubr.bf16.mxu0 0
      %692 = vmatmul.mubr.bf16.gmra.mxu0 %v623
      %v693 = vpop.f32.mrf.mxu0
      %v694 = vadd.f32 %v585, %v693
      %v695 = vpop.f32.mrf.mxu0
      %v696 = vpop.f32.mrf.mxu0
      %v697 = vadd.f32 %v588, %v696
      %v698 = vpop.f32.mrf.mxu0
      %699 = vmatprep.mubr.bf16.mxu0 0
      %700 = vmatmul.mubr.bf16.gmra.mxu0 %v625
      %v701 = vpop.f32.mrf.mxu0
      %v702 = vadd.f32 %v593, %v701
      %v703 = vpop.f32.mrf.mxu0
      %v704 = vpop.f32.mrf.mxu0
      %v705 = vadd.f32 %v596, %v704
      %v706 = vpop.f32.mrf.mxu0
      %707 = vmatprep.mubr.bf16.mxu0 0
      %708 = vmatmul.mubr.bf16.gmra.mxu0 %v627
      %v709 = vpop.f32.mrf.mxu0
      %v710 = vadd.f32 %v601, %v709
      %v711 = vpop.f32.mrf.mxu0
      %v712 = vpop.f32.mrf.mxu0
      %v713 = vadd.f32 %v604, %v712
      %v714 = vpop.f32.mrf.mxu0
      %715 = vmatprep.mubr.bf16.mxu0 0
      %716 = vmatmul.mubr.bf16.gmra.mxu0 %v630
      %v717 = vpop.f32.mrf.mxu0
      %v718 = vadd.f32 %v609, %v717
      %v719 = vpop.f32.mrf.mxu0
      %v720 = vpop.f32.mrf.mxu0
      %v721 = vpop.f32.mrf.mxu0
      %722 = vdwg.mxu0
      %v723 = vld [vmem:[%s359] sm:$0xe]
      %s724 = scalar_lea.vmem %s3, 4
      %v725 = vld [vmem:[%s724] sm:$0x3]
      %v727 = vunpack.c.l.b16 %v723
      %v728 = vpack.c.b16 %v425, %v727
      %vm729 = vcmask 1046528
      %v730 = vrot.slane %v728, 1
      %v731 = vrot.slane %v438, 1
      %v732 = vsel %vm729, %v730, %v731
      %v733 = vrot.slane %v439, 1
      %v734 = vsel %vm729, %v731, %v733
      %v735 = vrot.slane %v440, 1
      %v736 = vsel %vm729, %v733, %v735
      %v737 = vrot.slane %v441, 1
      %v738 = vsel %vm729, %v735, %v737
      %v739 = vrot.slane %v442, 1
      %v740 = vsel %vm729, %v737, %v739
      %v741 = vrot.slane %v443, 1
      %v742 = vsel %vm729, %v739, %v741
      %v744 = vsel %vm500, %v732, 0
      %v747 = vsel %vm500, %v734, 0
      %v750 = vsel %vm500, %v736, 0
      %v753 = vsel %vm500, %v738, 0
      %v756 = vsel %vm500, %v740, 0
      %v759 = vsel %vm500, %v742, 0
      %v762 = vsel %vm500, %v741, 0
      %v765 = vsel %vm522, %v725, 0
      %767 = vmatprep.subr.bf16.mxu0 0
      %768 = vmatpush1.bf16.msra.mxu0 0
      %769 = vmatprep.subr.bf16.mxu0 0
      %770 = vmatpush1.bf16.msra.mxu0 0
      %771 = vmatprep.subr.bf16.mxu0 0
      %772 = vmatpush1.bf16.msra.mxu0 0
      %773 = vmatprep.subr.bf16.mxu0 0
      %774 = vmatpush1.bf16.msra.mxu0 0
      %775 = vmatprep.subr.bf16.mxu0 0
      %776 = vmatpush1.bf16.msra.mxu0 0
      %777 = vmatprep.subr.bf16.mxu0 0
      %778 = vmatpush1.bf16.msra.mxu0 0
      %779 = vmatprep.subr.bf16.mxu0 0
      %780 = vmatpush1.bf16.msra.mxu0 0
      %781 = vmatprep.subr.bf16.mxu0 0
      %782 = vmatpush1.bf16.msra.mxu0 %v765
      %783 = vmatprep.subr.bf16.mxu0 0
      %784 = vmatpush2.bf16.msra.mxu0 0
      %785 = vmatprep.subr.bf16.mxu0 0
      %786 = vmatpush2.bf16.msra.mxu0 0
      %787 = vmatprep.subr.bf16.mxu0 0
      %788 = vmatpush2.bf16.msra.mxu0 0
      %789 = vmatprep.subr.bf16.mxu0 0
      %790 = vmatpush2.bf16.msra.mxu0 0
      %791 = vmatprep.subr.bf16.mxu0 0
      %792 = vmatpush2.bf16.msra.mxu0 0
      %793 = vmatprep.subr.bf16.mxu0 0
      %794 = vmatpush2.bf16.msra.mxu0 0
      %795 = vmatprep.subr.bf16.mxu0 0
      %796 = vmatpush2.bf16.msra.mxu0 0
      %797 = vmatprep.subr.bf16.mxu0 0
      %798 = vmatpush2.bf16.msra.mxu0 0
      %799 = vmatprep.mubr.bf16.mxu0 0
      %800 = vmatmul.mubr.bf16.gmra.mxu0 %v744
      %v801 = vpop.f32.mrf.mxu0
      %v802 = vadd.f32 0.0, %v801
      %v803 = vpop.f32.mrf.mxu0
      %v804 = vpop.f32.mrf.mxu0
      %v805 = vadd.f32 0.0, %v804
      %v806 = vpop.f32.mrf.mxu0
      %807 = vmatprep.mubr.bf16.mxu0 0
      %808 = vmatmul.mubr.bf16.gmra.mxu0 %v747
      %v809 = vpop.f32.mrf.mxu0
      %v810 = vadd.f32 0.0, %v809
      %v811 = vpop.f32.mrf.mxu0
      %v812 = vpop.f32.mrf.mxu0
      %v813 = vadd.f32 0.0, %v812
      %v814 = vpop.f32.mrf.mxu0
      %815 = vmatprep.mubr.bf16.mxu0 0
      %816 = vmatmul.mubr.bf16.gmra.mxu0 %v750
      %v817 = vpop.f32.mrf.mxu0
      %v818 = vadd.f32 0.0, %v817
      %v819 = vpop.f32.mrf.mxu0
      %v820 = vpop.f32.mrf.mxu0
      %v821 = vadd.f32 0.0, %v820
      %v822 = vpop.f32.mrf.mxu0
      %823 = vmatprep.mubr.bf16.mxu0 0
      %824 = vmatmul.mubr.bf16.gmra.mxu0 %v753
      %v825 = vpop.f32.mrf.mxu0
      %v826 = vadd.f32 0.0, %v825
      %v827 = vpop.f32.mrf.mxu0
      %v828 = vpop.f32.mrf.mxu0
      %v829 = vadd.f32 0.0, %v828
      %v830 = vpop.f32.mrf.mxu0
      %831 = vmatprep.mubr.bf16.mxu0 0
      %832 = vmatmul.mubr.bf16.gmra.mxu0 %v756
      %v833 = vpop.f32.mrf.mxu0
      %v834 = vadd.f32 0.0, %v833
      %v835 = vpop.f32.mrf.mxu0
      %v836 = vpop.f32.mrf.mxu0
      %v837 = vadd.f32 0.0, %v836
      %v838 = vpop.f32.mrf.mxu0
      %839 = vmatprep.mubr.bf16.mxu0 0
      %840 = vmatmul.mubr.bf16.gmra.mxu0 %v759
      %v841 = vpop.f32.mrf.mxu0
      %v842 = vadd.f32 0.0, %v841
      %v843 = vpop.f32.mrf.mxu0
      %v844 = vpop.f32.mrf.mxu0
      %v845 = vadd.f32 0.0, %v844
      %v846 = vpop.f32.mrf.mxu0
      %847 = vmatprep.mubr.bf16.mxu0 0
      %848 = vmatmul.mubr.bf16.gmra.mxu0 %v762
      %v849 = vpop.f32.mrf.mxu0
      %v850 = vadd.f32 0.0, %v849
      %v851 = vpop.f32.mrf.mxu0
      %v852 = vpop.f32.mrf.mxu0
      %v853 = vpop.f32.mrf.mxu0
      %854 = vdwg.mxu0
      %v855 = vadd.f32 %v670, %v802
      %v856 = vadd.f32 %v673, %v805
      %v857 = vadd.f32 %v678, %v810
      %v858 = vadd.f32 %v681, %v813
      %v859 = vadd.f32 %v686, %v818
      %v860 = vadd.f32 %v689, %v821
      %v861 = vadd.f32 %v694, %v826
      %v862 = vadd.f32 %v697, %v829
      %v863 = vadd.f32 %v702, %v834
      %v864 = vadd.f32 %v705, %v837
      %v865 = vadd.f32 %v710, %v842
      %v866 = vadd.f32 %v713, %v845
      %v867 = vadd.f32 %v718, %v850
      %v868 = vld [vmem:[%s359 + $0x4] sm:$0xe]
      %v869 = vld [vmem:[%s359 + $0x8] sm:$0xf]
      %v870 = vld [vmem:[%s359 + $0xc] sm:$0xf]
      %v871 = vld [vmem:[%s359 + $0x10] sm:$0xf]
      %v872 = vld [vmem:[%s359 + $0x14] sm:$0xf]
      %v873 = vld [vmem:[%s359 + $0x18] sm:$0xf]
      %v874 = vld [vmem:[%s359 + $0x1c] sm:$0xf]
      %v875 = vld [vmem:[%s359 + $0x20] sm:$0xf]
      %v876 = vld [vmem:[%s359 + $0x24] sm:$0xf]
      %v877 = vld [vmem:[%s359 + $0x28] sm:$0xf]
      %v878 = vld [vmem:[%s359 + $0x2c] sm:$0xf]
      %v879 = vld [vmem:[%s359 + $0x30] sm:$0xf]
      %v880 = vld [vmem:[%s359 + $0x34] sm:$0x7]
      %s881 = scalar_lea.vmem %s3, 6
      %v882 = vld [vmem:[%s881] sm:$0x3]
      %v896 = vunpack.c.l.b16 %v868
      %v897 = vunpack.c.l.b16 %v869
      %v898 = vunpack.c.l.b16 %v870
      %v899 = vunpack.c.l.b16 %v871
      %v900 = vunpack.c.l.b16 %v872
      %v901 = vunpack.c.l.b16 %v873
      %v902 = vunpack.c.l.b16 %v874
      %v903 = vunpack.c.l.b16 %v875
      %v904 = vunpack.c.l.b16 %v876
      %v905 = vunpack.c.l.b16 %v877
      %v906 = vunpack.c.l.b16 %v878
      %v907 = vunpack.c.l.b16 %v879
      %v908 = vunpack.c.l.b16 %v880
      %v909 = vpack.c.b16 %v897, %v896
      %v910 = vpack.c.b16 %v899, %v898
      %v911 = vpack.c.b16 %v901, %v900
      %v912 = vpack.c.b16 %v903, %v902
      %v913 = vpack.c.b16 %v905, %v904
      %v914 = vpack.c.b16 %v907, %v906
      %v915 = vpack.c.b16 %v908, %v908
      %v916 = vrot.slane %v909, 1
      %v917 = vrot.slane %v910, 1
      %v918 = vsel %vm729, %v916, %v917
      %v919 = vrot.slane %v911, 1
      %v920 = vsel %vm729, %v917, %v919
      %v921 = vrot.slane %v912, 1
      %v922 = vsel %vm729, %v919, %v921
      %v923 = vrot.slane %v913, 1
      %v924 = vsel %vm729, %v921, %v923
      %v925 = vrot.slane %v914, 1
      %v926 = vsel %vm729, %v923, %v925
      %v927 = vrot.slane %v915, 1
      %v928 = vsel %vm729, %v925, %v927
      %v930 = vsel %vm500, %v918, 0
      %v933 = vsel %vm500, %v920, 0
      %v936 = vsel %vm500, %v922, 0
      %v939 = vsel %vm500, %v924, 0
      %v942 = vsel %vm500, %v926, 0
      %v945 = vsel %vm500, %v928, 0
      %v948 = vsel %vm500, %v927, 0
      %v951 = vsel %vm522, %v882, 0
      %953 = vmatprep.subr.bf16.mxu0 0
      %954 = vmatpush1.bf16.msra.mxu0 0
      %955 = vmatprep.subr.bf16.mxu0 0
      %956 = vmatpush1.bf16.msra.mxu0 0
      %957 = vmatprep.subr.bf16.mxu0 0
      %958 = vmatpush1.bf16.msra.mxu0 0
      %959 = vmatprep.subr.bf16.mxu0 0
      %960 = vmatpush1.bf16.msra.mxu0 0
      %961 = vmatprep.subr.bf16.mxu0 0
      %962 = vmatpush1.bf16.msra.mxu0 0
      %963 = vmatprep.subr.bf16.mxu0 0
      %964 = vmatpush1.bf16.msra.mxu0 0
      %965 = vmatprep.subr.bf16.mxu0 0
      %966 = vmatpush1.bf16.msra.mxu0 0
      %967 = vmatprep.subr.bf16.mxu0 0
      %968 = vmatpush1.bf16.msra.mxu0 %v951
      %969 = vmatprep.subr.bf16.mxu0 0
      %970 = vmatpush2.bf16.msra.mxu0 0
      %971 = vmatprep.subr.bf16.mxu0 0
      %972 = vmatpush2.bf16.msra.mxu0 0
      %973 = vmatprep.subr.bf16.mxu0 0
      %974 = vmatpush2.bf16.msra.mxu0 0
      %975 = vmatprep.subr.bf16.mxu0 0
      %976 = vmatpush2.bf16.msra.mxu0 0
      %977 = vmatprep.subr.bf16.mxu0 0
      %978 = vmatpush2.bf16.msra.mxu0 0
      %979 = vmatprep.subr.bf16.mxu0 0
      %980 = vmatpush2.bf16.msra.mxu0 0
      %981 = vmatprep.subr.bf16.mxu0 0
      %982 = vmatpush2.bf16.msra.mxu0 0
      %983 = vmatprep.subr.bf16.mxu0 0
      %984 = vmatpush2.bf16.msra.mxu0 0
      %985 = vmatprep.mubr.bf16.mxu0 0
      %986 = vmatmul.mubr.bf16.gmra.mxu0 %v930
      %v987 = vpop.f32.mrf.mxu0
      %v988 = vadd.f32 0.0, %v987
      %v989 = vpop.f32.mrf.mxu0
      %v990 = vpop.f32.mrf.mxu0
      %v991 = vadd.f32 0.0, %v990
      %v992 = vpop.f32.mrf.mxu0
      %993 = vmatprep.mubr.bf16.mxu0 0
      %994 = vmatmul.mubr.bf16.gmra.mxu0 %v933
      %v995 = vpop.f32.mrf.mxu0
      %v996 = vadd.f32 0.0, %v995
      %v997 = vpop.f32.mrf.mxu0
      %v998 = vpop.f32.mrf.mxu0
      %v999 = vadd.f32 0.0, %v998
      %v1000 = vpop.f32.mrf.mxu0
      %1001 = vmatprep.mubr.bf16.mxu0 0
      %1002 = vmatmul.mubr.bf16.gmra.mxu0 %v936
      %v1003 = vpop.f32.mrf.mxu0
      %v1004 = vadd.f32 0.0, %v1003
      %v1005 = vpop.f32.mrf.mxu0
      %v1006 = vpop.f32.mrf.mxu0
      %v1007 = vadd.f32 0.0, %v1006
      %v1008 = vpop.f32.mrf.mxu0
      %1009 = vmatprep.mubr.bf16.mxu0 0
      %1010 = vmatmul.mubr.bf16.gmra.mxu0 %v939
      %v1011 = vpop.f32.mrf.mxu0
      %v1012 = vadd.f32 0.0, %v1011
      %v1013 = vpop.f32.mrf.mxu0
      %v1014 = vpop.f32.mrf.mxu0
      %v1015 = vadd.f32 0.0, %v1014
      %v1016 = vpop.f32.mrf.mxu0
      %1017 = vmatprep.mubr.bf16.mxu0 0
      %1018 = vmatmul.mubr.bf16.gmra.mxu0 %v942
      %v1019 = vpop.f32.mrf.mxu0
      %v1020 = vadd.f32 0.0, %v1019
      %v1021 = vpop.f32.mrf.mxu0
      %v1022 = vpop.f32.mrf.mxu0
      %v1023 = vadd.f32 0.0, %v1022
      %v1024 = vpop.f32.mrf.mxu0
      %1025 = vmatprep.mubr.bf16.mxu0 0
      %1026 = vmatmul.mubr.bf16.gmra.mxu0 %v945
      %v1027 = vpop.f32.mrf.mxu0
      %v1028 = vadd.f32 0.0, %v1027
      %v1029 = vpop.f32.mrf.mxu0
      %v1030 = vpop.f32.mrf.mxu0
      %v1031 = vadd.f32 0.0, %v1030
      %v1032 = vpop.f32.mrf.mxu0
      %1033 = vmatprep.mubr.bf16.mxu0 0
      %1034 = vmatmul.mubr.bf16.gmra.mxu0 %v948
      %v1035 = vpop.f32.mrf.mxu0
      %v1036 = vadd.f32 0.0, %v1035
      %v1037 = vpop.f32.mrf.mxu0
      %v1038 = vpop.f32.mrf.mxu0
      %v1039 = vpop.f32.mrf.mxu0
      %1040 = vdwg.mxu0
      %v1041 = vadd.f32 %v855, %v988
      %v1042 = vadd.f32 %v856, %v991
      %v1043 = vadd.f32 %v857, %v996
      %v1044 = vadd.f32 %v858, %v999
      %v1045 = vadd.f32 %v859, %v1004
      %v1046 = vadd.f32 %v860, %v1007
      %v1047 = vadd.f32 %v861, %v1012
      %v1048 = vadd.f32 %v862, %v1015
      %v1049 = vadd.f32 %v863, %v1020
      %v1050 = vadd.f32 %v864, %v1023
      %v1051 = vadd.f32 %v865, %v1028
      %v1052 = vadd.f32 %v866, %v1031
      %v1053 = vadd.f32 %v867, %v1036
      %v1054 = vld [vmem:[%s359 + $0x34] sm:$0xf]
      %s1055 = scalar_lea.vmem %s3, 8
      %v1056 = vld [vmem:[%s1055] sm:$0x3]
      %v1058 = vunpack.c.l.b16 %v1054
      %v1059 = vpack.c.b16 %v1058, %v1058
      %vm1060 = vsmask.f32 6400
      %v1062 = vshrl.u32 %v909, 16
      %v1064 = vrot.slane %v1062, 1
      %v1065 = vshll.u32 %v909, 16
      %v1067 = vrot.slane %v1065, 2
      %v1068 = vor.u32 %v1064, %v1067
      %v1070 = vshrl.u32 %v910, 16
      %v1072 = vrot.slane %v1070, 1
      %v1073 = vshll.u32 %v910, 16
      %v1075 = vrot.slane %v1073, 2
      %v1076 = vor.u32 %v1072, %v1075
      %v1077 = vsel %vm1060, %v1068, %v1076
      %v1079 = vshrl.u32 %v911, 16
      %v1081 = vrot.slane %v1079, 1
      %v1082 = vshll.u32 %v911, 16
      %v1084 = vrot.slane %v1082, 2
      %v1085 = vor.u32 %v1081, %v1084
      %v1086 = vsel %vm1060, %v1076, %v1085
      %v1088 = vshrl.u32 %v912, 16
      %v1090 = vrot.slane %v1088, 1
      %v1091 = vshll.u32 %v912, 16
      %v1093 = vrot.slane %v1091, 2
      %v1094 = vor.u32 %v1090, %v1093
      %v1095 = vsel %vm1060, %v1085, %v1094
      %v1097 = vshrl.u32 %v913, 16
      %v1099 = vrot.slane %v1097, 1
      %v1100 = vshll.u32 %v913, 16
      %v1102 = vrot.slane %v1100, 2
      %v1103 = vor.u32 %v1099, %v1102
      %v1104 = vsel %vm1060, %v1094, %v1103
      %v1106 = vshrl.u32 %v914, 16
      %v1108 = vrot.slane %v1106, 1
      %v1109 = vshll.u32 %v914, 16
      %v1111 = vrot.slane %v1109, 2
      %v1112 = vor.u32 %v1108, %v1111
      %v1113 = vsel %vm1060, %v1103, %v1112
      %v1115 = vshrl.u32 %v1059, 16
      %v1117 = vrot.slane %v1115, 1
      %v1118 = vshll.u32 %v1059, 16
      %v1120 = vrot.slane %v1118, 2
      %v1121 = vor.u32 %v1117, %v1120
      %v1122 = vsel %vm1060, %v1112, %v1121
      %v1124 = vsel %vm500, %v1077, 0
      %v1127 = vsel %vm500, %v1086, 0
      %v1130 = vsel %vm500, %v1095, 0
      %v1133 = vsel %vm500, %v1104, 0
      %v1136 = vsel %vm500, %v1113, 0
      %v1139 = vsel %vm500, %v1122, 0
      %v1142 = vsel %vm500, %v1121, 0
      %v1145 = vsel %vm522, %v1056, 0
      %1147 = vmatprep.subr.bf16.mxu0 0
      %1148 = vmatpush1.bf16.msra.mxu0 0
      %1149 = vmatprep.subr.bf16.mxu0 0
      %1150 = vmatpush1.bf16.msra.mxu0 0
      %1151 = vmatprep.subr.bf16.mxu0 0
      %1152 = vmatpush1.bf16.msra.mxu0 0
      %1153 = vmatprep.subr.bf16.mxu0 0
      %1154 = vmatpush1.bf16.msra.mxu0 0
      %1155 = vmatprep.subr.bf16.mxu0 0
      %1156 = vmatpush1.bf16.msra.mxu0 0
      %1157 = vmatprep.subr.bf16.mxu0 0
      %1158 = vmatpush1.bf16.msra.mxu0 0
      %1159 = vmatprep.subr.bf16.mxu0 0
      %1160 = vmatpush1.bf16.msra.mxu0 0
      %1161 = vmatprep.subr.bf16.mxu0 0
      %1162 = vmatpush1.bf16.msra.mxu0 %v1145
      %1163 = vmatprep.subr.bf16.mxu0 0
      %1164 = vmatpush2.bf16.msra.mxu0 0
      %1165 = vmatprep.subr.bf16.mxu0 0
      %1166 = vmatpush2.bf16.msra.mxu0 0
      %1167 = vmatprep.subr.bf16.mxu0 0
      %1168 = vmatpush2.bf16.msra.mxu0 0
      %1169 = vmatprep.subr.bf16.mxu0 0
      %1170 = vmatpush2.bf16.msra.mxu0 0
      %1171 = vmatprep.subr.bf16.mxu0 0
      %1172 = vmatpush2.bf16.msra.mxu0 0
      %1173 = vmatprep.subr.bf16.mxu0 0
      %1174 = vmatpush2.bf16.msra.mxu0 0
      %1175 = vmatprep.subr.bf16.mxu0 0
      %1176 = vmatpush2.bf16.msra.mxu0 0
      %1177 = vmatprep.subr.bf16.mxu0 0
      %1178 = vmatpush2.bf16.msra.mxu0 0
      %1179 = vmatprep.mubr.bf16.mxu0 0
      %1180 = vmatmul.mubr.bf16.gmra.mxu0 %v1124
      %v1181 = vpop.f32.mrf.mxu0
      %v1182 = vadd.f32 0.0, %v1181
      %v1183 = vpop.f32.mrf.mxu0
      %v1184 = vpop.f32.mrf.mxu0
      %v1185 = vadd.f32 0.0, %v1184
      %v1186 = vpop.f32.mrf.mxu0
      %1187 = vmatprep.mubr.bf16.mxu0 0
      %1188 = vmatmul.mubr.bf16.gmra.mxu0 %v1127
      %v1189 = vpop.f32.mrf.mxu0
      %v1190 = vadd.f32 0.0, %v1189
      %v1191 = vpop.f32.mrf.mxu0
      %v1192 = vpop.f32.mrf.mxu0
      %v1193 = vadd.f32 0.0, %v1192
      %v1194 = vpop.f32.mrf.mxu0
      %1195 = vmatprep.mubr.bf16.mxu0 0
      %1196 = vmatmul.mubr.bf16.gmra.mxu0 %v1130
      %v1197 = vpop.f32.mrf.mxu0
      %v1198 = vadd.f32 0.0, %v1197
      %v1199 = vpop.f32.mrf.mxu0
      %v1200 = vpop.f32.mrf.mxu0
      %v1201 = vadd.f32 0.0, %v1200
      %v1202 = vpop.f32.mrf.mxu0
      %1203 = vmatprep.mubr.bf16.mxu0 0
      %1204 = vmatmul.mubr.bf16.gmra.mxu0 %v1133
      %v1205 = vpop.f32.mrf.mxu0
      %v1206 = vadd.f32 0.0, %v1205
      %v1207 = vpop.f32.mrf.mxu0
      %v1208 = vpop.f32.mrf.mxu0
      %v1209 = vadd.f32 0.0, %v1208
      %v1210 = vpop.f32.mrf.mxu0
      %1211 = vmatprep.mubr.bf16.mxu0 0
      %1212 = vmatmul.mubr.bf16.gmra.mxu0 %v1136
      %v1213 = vpop.f32.mrf.mxu0
      %v1214 = vadd.f32 0.0, %v1213
      %v1215 = vpop.f32.mrf.mxu0
      %v1216 = vpop.f32.mrf.mxu0
      %v1217 = vadd.f32 0.0, %v1216
      %v1218 = vpop.f32.mrf.mxu0
      %1219 = vmatprep.mubr.bf16.mxu0 0
      %1220 = vmatmul.mubr.bf16.gmra.mxu0 %v1139
      %v1221 = vpop.f32.mrf.mxu0
      %v1222 = vadd.f32 0.0, %v1221
      %v1223 = vpop.f32.mrf.mxu0
      %v1224 = vpop.f32.mrf.mxu0
      %v1225 = vadd.f32 0.0, %v1224
      %v1226 = vpop.f32.mrf.mxu0
      %1227 = vmatprep.mubr.bf16.mxu0 0
      %1228 = vmatmul.mubr.bf16.gmra.mxu0 %v1142
      %v1229 = vpop.f32.mrf.mxu0
      %v1230 = vadd.f32 0.0, %v1229
      %v1231 = vpop.f32.mrf.mxu0
      %v1232 = vpop.f32.mrf.mxu0
      %v1233 = vpop.f32.mrf.mxu0
      %1234 = vdwg.mxu0
      %v1235 = vadd.f32 %v1041, %v1182
      %v1236 = vadd.f32 %v1042, %v1185
      %v1237 = vadd.f32 %v1043, %v1190
      %v1238 = vadd.f32 %v1044, %v1193
      %v1239 = vadd.f32 %v1045, %v1198
      %v1240 = vadd.f32 %v1046, %v1201
      %v1241 = vadd.f32 %v1047, %v1206
      %v1242 = vadd.f32 %v1048, %v1209
      %v1243 = vadd.f32 %v1049, %v1214
      %v1244 = vadd.f32 %v1050, %v1217
      %v1245 = vadd.f32 %v1051, %v1222
      %v1246 = vadd.f32 %v1052, %v1225
      %v1247 = vadd.f32 %v1053, %v1230
      %v1248 = vld [vmem:[%s359 + $0x4] sm:$0xc]
      %s1249 = scalar_lea.vmem %s3, 10
      %v1250 = vld [vmem:[%s1249] sm:$0x3]
      %v1252 = vunpack.c.l.b16 %v1248
      %v1253 = vpack.c.b16 %v897, %v1252
      %vm1254 = vcmask 1045504
      %v1255 = vrot.slane %v1253, 2
      %v1256 = vrot.slane %v910, 2
      %v1257 = vsel %vm1254, %v1255, %v1256
      %v1258 = vrot.slane %v911, 2
      %v1259 = vsel %vm1254, %v1256, %v1258
      %v1260 = vrot.slane %v912, 2
      %v1261 = vsel %vm1254, %v1258, %v1260
      %v1262 = vrot.slane %v913, 2
      %v1263 = vsel %vm1254, %v1260, %v1262
      %v1264 = vrot.slane %v914, 2
      %v1265 = vsel %vm1254, %v1262, %v1264
      %v1266 = vrot.slane %v1059, 2
      %v1267 = vsel %vm1254, %v1264, %v1266
      %v1269 = vsel %vm500, %v1257, 0
      %v1272 = vsel %vm500, %v1259, 0
      %v1275 = vsel %vm500, %v1261, 0
      %v1278 = vsel %vm500, %v1263, 0
      %v1281 = vsel %vm500, %v1265, 0
      %v1284 = vsel %vm500, %v1267, 0
      %v1287 = vsel %vm500, %v1266, 0
      %v1290 = vsel %vm522, %v1250, 0
      %1292 = vmatprep.subr.bf16.mxu0 0
      %1293 = vmatpush1.bf16.msra.mxu0 0
      %1294 = vmatprep.subr.bf16.mxu0 0
      %1295 = vmatpush1.bf16.msra.mxu0 0
      %1296 = vmatprep.subr.bf16.mxu0 0
      %1297 = vmatpush1.bf16.msra.mxu0 0
      %1298 = vmatprep.subr.bf16.mxu0 0
      %1299 = vmatpush1.bf16.msra.mxu0 0
      %1300 = vmatprep.subr.bf16.mxu0 0
      %1301 = vmatpush1.bf16.msra.mxu0 0
      %1302 = vmatprep.subr.bf16.mxu0 0
      %1303 = vmatpush1.bf16.msra.mxu0 0
      %1304 = vmatprep.subr.bf16.mxu0 0
      %1305 = vmatpush1.bf16.msra.mxu0 0
      %1306 = vmatprep.subr.bf16.mxu0 0
      %1307 = vmatpush1.bf16.msra.mxu0 %v1290
      %1308 = vmatprep.subr.bf16.mxu0 0
      %1309 = vmatpush2.bf16.msra.mxu0 0
      %1310 = vmatprep.subr.bf16.mxu0 0
      %1311 = vmatpush2.bf16.msra.mxu0 0
      %1312 = vmatprep.subr.bf16.mxu0 0
      %1313 = vmatpush2.bf16.msra.mxu0 0
      %1314 = vmatprep.subr.bf16.mxu0 0
      %1315 = vmatpush2.bf16.msra.mxu0 0
      %1316 = vmatprep.subr.bf16.mxu0 0
      %1317 = vmatpush2.bf16.msra.mxu0 0
      %1318 = vmatprep.subr.bf16.mxu0 0
      %1319 = vmatpush2.bf16.msra.mxu0 0
      %1320 = vmatprep.subr.bf16.mxu0 0
      %1321 = vmatpush2.bf16.msra.mxu0 0
      %1322 = vmatprep.subr.bf16.mxu0 0
      %1323 = vmatpush2.bf16.msra.mxu0 0
      %1324 = vmatprep.mubr.bf16.mxu0 0
      %1325 = vmatmul.mubr.bf16.gmra.mxu0 %v1269
      %v1326 = vpop.f32.mrf.mxu0
      %v1327 = vadd.f32 0.0, %v1326
      %v1328 = vpop.f32.mrf.mxu0
      %v1329 = vpop.f32.mrf.mxu0
      %v1330 = vadd.f32 0.0, %v1329
      %v1331 = vpop.f32.mrf.mxu0
      %1332 = vmatprep.mubr.bf16.mxu0 0
      %1333 = vmatmul.mubr.bf16.gmra.mxu0 %v1272
      %v1334 = vpop.f32.mrf.mxu0
      %v1335 = vadd.f32 0.0, %v1334
      %v1336 = vpop.f32.mrf.mxu0
      %v1337 = vpop.f32.mrf.mxu0
      %v1338 = vadd.f32 0.0, %v1337
      %v1339 = vpop.f32.mrf.mxu0
      %1340 = vmatprep.mubr.bf16.mxu0 0
      %1341 = vmatmul.mubr.bf16.gmra.mxu0 %v1275
      %v1342 = vpop.f32.mrf.mxu0
      %v1343 = vadd.f32 0.0, %v1342
      %v1344 = vpop.f32.mrf.mxu0
      %v1345 = vpop.f32.mrf.mxu0
      %v1346 = vadd.f32 0.0, %v1345
      %v1347 = vpop.f32.mrf.mxu0
      %1348 = vmatprep.mubr.bf16.mxu0 0
      %1349 = vmatmul.mubr.bf16.gmra.mxu0 %v1278
      %v1350 = vpop.f32.mrf.mxu0
      %v1351 = vadd.f32 0.0, %v1350
      %v1352 = vpop.f32.mrf.mxu0
      %v1353 = vpop.f32.mrf.mxu0
      %v1354 = vadd.f32 0.0, %v1353
      %v1355 = vpop.f32.mrf.mxu0
      %1356 = vmatprep.mubr.bf16.mxu0 0
      %1357 = vmatmul.mubr.bf16.gmra.mxu0 %v1281
      %v1358 = vpop.f32.mrf.mxu0
      %v1359 = vadd.f32 0.0, %v1358
      %v1360 = vpop.f32.mrf.mxu0
      %v1361 = vpop.f32.mrf.mxu0
      %v1362 = vadd.f32 0.0, %v1361
      %v1363 = vpop.f32.mrf.mxu0
      %1364 = vmatprep.mubr.bf16.mxu0 0
      %1365 = vmatmul.mubr.bf16.gmra.mxu0 %v1284
      %v1366 = vpop.f32.mrf.mxu0
      %v1367 = vadd.f32 0.0, %v1366
      %v1368 = vpop.f32.mrf.mxu0
      %v1369 = vpop.f32.mrf.mxu0
      %v1370 = vadd.f32 0.0, %v1369
      %v1371 = vpop.f32.mrf.mxu0
      %1372 = vmatprep.mubr.bf16.mxu0 0
      %1373 = vmatmul.mubr.bf16.gmra.mxu0 %v1287
      %v1374 = vpop.f32.mrf.mxu0
      %v1375 = vadd.f32 0.0, %v1374
      %v1376 = vpop.f32.mrf.mxu0
      %v1377 = vpop.f32.mrf.mxu0
      %v1378 = vpop.f32.mrf.mxu0
      %1379 = vdwg.mxu0
      %v1380 = vadd.f32 %v1235, %v1327
      %v1381 = vadd.f32 %v1236, %v1330
      %v1382 = vadd.f32 %v1237, %v1335
      %v1383 = vadd.f32 %v1238, %v1338
      %v1384 = vadd.f32 %v1239, %v1343
      %v1385 = vadd.f32 %v1240, %v1346
      %v1386 = vadd.f32 %v1241, %v1351
      %v1387 = vadd.f32 %v1242, %v1354
      %v1388 = vadd.f32 %v1243, %v1359
      %v1389 = vadd.f32 %v1244, %v1362
      %v1390 = vadd.f32 %v1245, %v1367
      %v1391 = vadd.f32 %v1246, %v1370
      %v1392 = vadd.f32 %v1247, %v1375
      %v1393 = vld [vmem:[%s359 + $0x8] sm:$0xc]
      %v1394 = vld [vmem:[%s359 + $0xc] sm:$0xf]
      %v1395 = vld [vmem:[%s359 + $0x10] sm:$0xf]
      %v1396 = vld [vmem:[%s359 + $0x14] sm:$0xf]
      %v1397 = vld [vmem:[%s359 + $0x18] sm:$0xf]
      %v1398 = vld [vmem:[%s359 + $0x1c] sm:$0xf]
      %v1399 = vld [vmem:[%s359 + $0x20] sm:$0xf]
      %v1400 = vld [vmem:[%s359 + $0x24] sm:$0xf]
      %v1401 = vld [vmem:[%s359 + $0x28] sm:$0xf]
      %v1402 = vld [vmem:[%s359 + $0x2c] sm:$0xf]
      %v1403 = vld [vmem:[%s359 + $0x30] sm:$0xf]
      %v1404 = vld [vmem:[%s359 + $0x34] sm:$0xf]
      %v1405 = vld [vmem:[%s359 + $0x38] sm:$0xf]
      %s1406 = scalar_lea.vmem %s3, 12
      %v1407 = vld [vmem:[%s1406] sm:$0x3]
      %v1421 = vunpack.c.l.b16 %v1393
      %v1422 = vunpack.c.l.b16 %v1394
      %v1423 = vunpack.c.l.b16 %v1395
      %v1424 = vunpack.c.l.b16 %v1396
      %v1425 = vunpack.c.l.b16 %v1397
      %v1426 = vunpack.c.l.b16 %v1398
      %v1427 = vunpack.c.l.b16 %v1399
      %v1428 = vunpack.c.l.b16 %v1400
      %v1429 = vunpack.c.l.b16 %v1401
      %v1430 = vunpack.c.l.b16 %v1402
      %v1431 = vunpack.c.l.b16 %v1403
      %v1432 = vunpack.c.l.b16 %v1404
      %v1433 = vunpack.c.l.b16 %v1405
      %v1434 = vpack.c.b16 %v1422, %v1421
      %v1435 = vpack.c.b16 %v1424, %v1423
      %v1436 = vpack.c.b16 %v1426, %v1425
      %v1437 = vpack.c.b16 %v1428, %v1427
      %v1438 = vpack.c.b16 %v1430, %v1429
      %v1439 = vpack.c.b16 %v1432, %v1431
      %v1440 = vpack.c.b16 %v1433, %v1433
      %v1441 = vrot.slane %v1434, 2
      %v1442 = vrot.slane %v1435, 2
      %v1443 = vsel %vm1254, %v1441, %v1442
      %v1444 = vrot.slane %v1436, 2
      %v1445 = vsel %vm1254, %v1442, %v1444
      %v1446 = vrot.slane %v1437, 2
      %v1447 = vsel %vm1254, %v1444, %v1446
      %v1448 = vrot.slane %v1438, 2
      %v1449 = vsel %vm1254, %v1446, %v1448
      %v1450 = vrot.slane %v1439, 2
      %v1451 = vsel %vm1254, %v1448, %v1450
      %v1452 = vrot.slane %v1440, 2
      %v1453 = vsel %vm1254, %v1450, %v1452
      %v1455 = vsel %vm500, %v1443, 0
      %v1458 = vsel %vm500, %v1445, 0
      %v1461 = vsel %vm500, %v1447, 0
      %v1464 = vsel %vm500, %v1449, 0
      %v1467 = vsel %vm500, %v1451, 0
      %v1470 = vsel %vm500, %v1453, 0
      %v1473 = vsel %vm500, %v1452, 0
      %v1476 = vsel %vm522, %v1407, 0
      %1478 = vmatprep.subr.bf16.mxu0 0
      %1479 = vmatpush1.bf16.msra.mxu0 0
      %1480 = vmatprep.subr.bf16.mxu0 0
      %1481 = vmatpush1.bf16.msra.mxu0 0
      %1482 = vmatprep.subr.bf16.mxu0 0
      %1483 = vmatpush1.bf16.msra.mxu0 0
      %1484 = vmatprep.subr.bf16.mxu0 0
      %1485 = vmatpush1.bf16.msra.mxu0 0
      %1486 = vmatprep.subr.bf16.mxu0 0
      %1487 = vmatpush1.bf16.msra.mxu0 0
      %1488 = vmatprep.subr.bf16.mxu0 0
      %1489 = vmatpush1.bf16.msra.mxu0 0
      %1490 = vmatprep.subr.bf16.mxu0 0
      %1491 = vmatpush1.bf16.msra.mxu0 0
      %1492 = vmatprep.subr.bf16.mxu0 0
      %1493 = vmatpush1.bf16.msra.mxu0 %v1476
      %1494 = vmatprep.subr.bf16.mxu0 0
      %1495 = vmatpush2.bf16.msra.mxu0 0
      %1496 = vmatprep.subr.bf16.mxu0 0
      %1497 = vmatpush2.bf16.msra.mxu0 0
      %1498 = vmatprep.subr.bf16.mxu0 0
      %1499 = vmatpush2.bf16.msra.mxu0 0
      %1500 = vmatprep.subr.bf16.mxu0 0
      %1501 = vmatpush2.bf16.msra.mxu0 0
      %1502 = vmatprep.subr.bf16.mxu0 0
      %1503 = vmatpush2.bf16.msra.mxu0 0
      %1504 = vmatprep.subr.bf16.mxu0 0
      %1505 = vmatpush2.bf16.msra.mxu0 0
      %1506 = vmatprep.subr.bf16.mxu0 0
      %1507 = vmatpush2.bf16.msra.mxu0 0
      %1508 = vmatprep.subr.bf16.mxu0 0
      %1509 = vmatpush2.bf16.msra.mxu0 0
      %1510 = vmatprep.mubr.bf16.mxu0 0
      %1511 = vmatmul.mubr.bf16.gmra.mxu0 %v1455
      %v1512 = vpop.f32.mrf.mxu0
      %v1513 = vadd.f32 0.0, %v1512
      %v1514 = vpop.f32.mrf.mxu0
      %v1515 = vpop.f32.mrf.mxu0
      %v1516 = vadd.f32 0.0, %v1515
      %v1517 = vpop.f32.mrf.mxu0
      %1518 = vmatprep.mubr.bf16.mxu0 0
      %1519 = vmatmul.mubr.bf16.gmra.mxu0 %v1458
      %v1520 = vpop.f32.mrf.mxu0
      %v1521 = vadd.f32 0.0, %v1520
      %v1522 = vpop.f32.mrf.mxu0
      %v1523 = vpop.f32.mrf.mxu0
      %v1524 = vadd.f32 0.0, %v1523
      %v1525 = vpop.f32.mrf.mxu0
      %1526 = vmatprep.mubr.bf16.mxu0 0
      %1527 = vmatmul.mubr.bf16.gmra.mxu0 %v1461
      %v1528 = vpop.f32.mrf.mxu0
      %v1529 = vadd.f32 0.0, %v1528
      %v1530 = vpop.f32.mrf.mxu0
      %v1531 = vpop.f32.mrf.mxu0
      %v1532 = vadd.f32 0.0, %v1531
      %v1533 = vpop.f32.mrf.mxu0
      %1534 = vmatprep.mubr.bf16.mxu0 0
      %1535 = vmatmul.mubr.bf16.gmra.mxu0 %v1464
      %v1536 = vpop.f32.mrf.mxu0
      %v1537 = vadd.f32 0.0, %v1536
      %v1538 = vpop.f32.mrf.mxu0
      %v1539 = vpop.f32.mrf.mxu0
      %v1540 = vadd.f32 0.0, %v1539
      %v1541 = vpop.f32.mrf.mxu0
      %1542 = vmatprep.mubr.bf16.mxu0 0
      %1543 = vmatmul.mubr.bf16.gmra.mxu0 %v1467
      %v1544 = vpop.f32.mrf.mxu0
      %v1545 = vadd.f32 0.0, %v1544
      %v1546 = vpop.f32.mrf.mxu0
      %v1547 = vpop.f32.mrf.mxu0
      %v1548 = vadd.f32 0.0, %v1547
      %v1549 = vpop.f32.mrf.mxu0
      %1550 = vmatprep.mubr.bf16.mxu0 0
      %1551 = vmatmul.mubr.bf16.gmra.mxu0 %v1470
      %v1552 = vpop.f32.mrf.mxu0
      %v1553 = vadd.f32 0.0, %v1552
      %v1554 = vpop.f32.mrf.mxu0
      %v1555 = vpop.f32.mrf.mxu0
      %v1556 = vadd.f32 0.0, %v1555
      %v1557 = vpop.f32.mrf.mxu0
      %1558 = vmatprep.mubr.bf16.mxu0 0
      %1559 = vmatmul.mubr.bf16.gmra.mxu0 %v1473
      %v1560 = vpop.f32.mrf.mxu0
      %v1561 = vadd.f32 0.0, %v1560
      %v1562 = vpop.f32.mrf.mxu0
      %v1563 = vpop.f32.mrf.mxu0
      %v1564 = vpop.f32.mrf.mxu0
      %1565 = vdwg.mxu0
      %v1566 = vadd.f32 %v1380, %v1513
      %v1567 = vadd.f32 %v1381, %v1516
      %v1568 = vadd.f32 %v1382, %v1521
      %v1569 = vadd.f32 %v1383, %v1524
      %v1570 = vadd.f32 %v1384, %v1529
      %v1571 = vadd.f32 %v1385, %v1532
      %v1572 = vadd.f32 %v1386, %v1537
      %v1573 = vadd.f32 %v1387, %v1540
      %v1574 = vadd.f32 %v1388, %v1545
      %v1575 = vadd.f32 %v1389, %v1548
      %v1576 = vadd.f32 %v1390, %v1553
      %v1577 = vadd.f32 %v1391, %v1556
      %v1578 = vadd.f32 %v1392, %v1561
      %v1579 = vld [vmem:[%s359 + $0x8] sm:$0xc]
      %v1580 = vld [vmem:[%s359 + $0xc] sm:$0xf]
      %v1581 = vld [vmem:[%s359 + $0x10] sm:$0xf]
      %v1582 = vld [vmem:[%s359 + $0x14] sm:$0xf]
      %v1583 = vld [vmem:[%s359 + $0x18] sm:$0xf]
      %v1584 = vld [vmem:[%s359 + $0x1c] sm:$0xf]
      %v1585 = vld [vmem:[%s359 + $0x20] sm:$0xf]
      %v1586 = vld [vmem:[%s359 + $0x24] sm:$0xf]
      %v1587 = vld [vmem:[%s359 + $0x28] sm:$0xf]
      %v1588 = vld [vmem:[%s359 + $0x2c] sm:$0xf]
      %v1589 = vld [vmem:[%s359 + $0x30] sm:$0xf]
      %v1590 = vld [vmem:[%s359 + $0x34] sm:$0xf]
      %v1591 = vld [vmem:[%s359 + $0x38] sm:$0xf]
      %v1592 = vld [vmem:[%s359 + $0x3c] sm:$0x1]
      %s1593 = scalar_lea.vmem %s3, 14
      %v1594 = vld [vmem:[%s1593] sm:$0x3]
      %v1609 = vunpack.c.l.b16 %v1579
      %v1610 = vunpack.c.l.b16 %v1580
      %v1611 = vunpack.c.l.b16 %v1581
      %v1612 = vunpack.c.l.b16 %v1582
      %v1613 = vunpack.c.l.b16 %v1583
      %v1614 = vunpack.c.l.b16 %v1584
      %v1615 = vunpack.c.l.b16 %v1585
      %v1616 = vunpack.c.l.b16 %v1586
      %v1617 = vunpack.c.l.b16 %v1587
      %v1618 = vunpack.c.l.b16 %v1588
      %v1619 = vunpack.c.l.b16 %v1589
      %v1620 = vunpack.c.l.b16 %v1590
      %v1621 = vunpack.c.l.b16 %v1591
      %v1622 = vunpack.c.l.b16 %v1592
      %v1623 = vpack.c.b16 %v1610, %v1609
      %v1624 = vpack.c.b16 %v1612, %v1611
      %v1625 = vpack.c.b16 %v1614, %v1613
      %v1626 = vpack.c.b16 %v1616, %v1615
      %v1627 = vpack.c.b16 %v1618, %v1617
      %v1628 = vpack.c.b16 %v1620, %v1619
      %v1629 = vpack.c.b16 %v1622, %v1621
      %vm1630 = vsmask.f32 5376
      %v1632 = vshrl.u32 %v1623, 16
      %v1634 = vrot.slane %v1632, 2
      %v1635 = vshll.u32 %v1623, 16
      %v1637 = vrot.slane %v1635, 3
      %v1638 = vor.u32 %v1634, %v1637
      %v1640 = vshrl.u32 %v1624, 16
      %v1642 = vrot.slane %v1640, 2
      %v1643 = vshll.u32 %v1624, 16
      %v1645 = vrot.slane %v1643, 3
      %v1646 = vor.u32 %v1642, %v1645
      %v1647 = vsel %vm1630, %v1638, %v1646
      %v1649 = vshrl.u32 %v1625, 16
      %v1651 = vrot.slane %v1649, 2
      %v1652 = vshll.u32 %v1625, 16
      %v1654 = vrot.slane %v1652, 3
      %v1655 = vor.u32 %v1651, %v1654
      %v1656 = vsel %vm1630, %v1646, %v1655
      %v1658 = vshrl.u32 %v1626, 16
      %v1660 = vrot.slane %v1658, 2
      %v1661 = vshll.u32 %v1626, 16
      %v1663 = vrot.slane %v1661, 3
      %v1664 = vor.u32 %v1660, %v1663
      %v1665 = vsel %vm1630, %v1655, %v1664
      %v1667 = vshrl.u32 %v1627, 16
      %v1669 = vrot.slane %v1667, 2
      %v1670 = vshll.u32 %v1627, 16
      %v1672 = vrot.slane %v1670, 3
      %v1673 = vor.u32 %v1669, %v1672
      %v1674 = vsel %vm1630, %v1664, %v1673
      %v1676 = vshrl.u32 %v1628, 16
      %v1678 = vrot.slane %v1676, 2
      %v1679 = vshll.u32 %v1628, 16
      %v1681 = vrot.slane %v1679, 3
      %v1682 = vor.u32 %v1678, %v1681
      %v1683 = vsel %vm1630, %v1673, %v1682
      %v1685 = vshrl.u32 %v1629, 16
      %v1687 = vrot.slane %v1685, 2
      %v1688 = vshll.u32 %v1629, 16
      %v1690 = vrot.slane %v1688, 3
      %v1691 = vor.u32 %v1687, %v1690
      %v1692 = vsel %vm1630, %v1682, %v1691
      %v1694 = vsel %vm500, %v1647, 0
      %v1697 = vsel %vm500, %v1656, 0
      %v1700 = vsel %vm500, %v1665, 0
      %v1703 = vsel %vm500, %v1674, 0
      %v1706 = vsel %vm500, %v1683, 0
      %v1709 = vsel %vm500, %v1692, 0
      %v1712 = vsel %vm500, %v1691, 0
      %v1715 = vsel %vm522, %v1594, 0
      %1717 = vmatprep.subr.bf16.mxu0 0
      %1718 = vmatpush1.bf16.msra.mxu0 0
      %1719 = vmatprep.subr.bf16.mxu0 0
      %1720 = vmatpush1.bf16.msra.mxu0 0
      %1721 = vmatprep.subr.bf16.mxu0 0
      %1722 = vmatpush1.bf16.msra.mxu0 0
      %1723 = vmatprep.subr.bf16.mxu0 0
      %1724 = vmatpush1.bf16.msra.mxu0 0
      %1725 = vmatprep.subr.bf16.mxu0 0
      %1726 = vmatpush1.bf16.msra.mxu0 0
      %1727 = vmatprep.subr.bf16.mxu0 0
      %1728 = vmatpush1.bf16.msra.mxu0 0
      %1729 = vmatprep.subr.bf16.mxu0 0
      %1730 = vmatpush1.bf16.msra.mxu0 0
      %1731 = vmatprep.subr.bf16.mxu0 0
      %1732 = vmatpush1.bf16.msra.mxu0 %v1715
      %1733 = vmatprep.subr.bf16.mxu0 0
      %1734 = vmatpush2.bf16.msra.mxu0 0
      %1735 = vmatprep.subr.bf16.mxu0 0
      %1736 = vmatpush2.bf16.msra.mxu0 0
      %1737 = vmatprep.subr.bf16.mxu0 0
      %1738 = vmatpush2.bf16.msra.mxu0 0
      %1739 = vmatprep.subr.bf16.mxu0 0
      %1740 = vmatpush2.bf16.msra.mxu0 0
      %1741 = vmatprep.subr.bf16.mxu0 0
      %1742 = vmatpush2.bf16.msra.mxu0 0
      %1743 = vmatprep.subr.bf16.mxu0 0
      %1744 = vmatpush2.bf16.msra.mxu0 0
      %1745 = vmatprep.subr.bf16.mxu0 0
      %1746 = vmatpush2.bf16.msra.mxu0 0
      %1747 = vmatprep.subr.bf16.mxu0 0
      %1748 = vmatpush2.bf16.msra.mxu0 0
      %1749 = vmatprep.mubr.bf16.mxu0 0
      %1750 = vmatmul.mubr.bf16.gmra.mxu0 %v1694
      %v1751 = vpop.f32.mrf.mxu0
      %v1752 = vadd.f32 0.0, %v1751
      %v1753 = vpop.f32.mrf.mxu0
      %v1754 = vpop.f32.mrf.mxu0
      %v1755 = vadd.f32 0.0, %v1754
      %v1756 = vpop.f32.mrf.mxu0
      %1757 = vmatprep.mubr.bf16.mxu0 0
      %1758 = vmatmul.mubr.bf16.gmra.mxu0 %v1697
      %v1759 = vpop.f32.mrf.mxu0
      %v1760 = vadd.f32 0.0, %v1759
      %v1761 = vpop.f32.mrf.mxu0
      %v1762 = vpop.f32.mrf.mxu0
      %v1763 = vadd.f32 0.0, %v1762
      %v1764 = vpop.f32.mrf.mxu0
      %1765 = vmatprep.mubr.bf16.mxu0 0
      %1766 = vmatmul.mubr.bf16.gmra.mxu0 %v1700
      %v1767 = vpop.f32.mrf.mxu0
      %v1768 = vadd.f32 0.0, %v1767
      %v1769 = vpop.f32.mrf.mxu0
      %v1770 = vpop.f32.mrf.mxu0
      %v1771 = vadd.f32 0.0, %v1770
      %v1772 = vpop.f32.mrf.mxu0
      %1773 = vmatprep.mubr.bf16.mxu0 0
      %1774 = vmatmul.mubr.bf16.gmra.mxu0 %v1703
      %v1775 = vpop.f32.mrf.mxu0
      %v1776 = vadd.f32 0.0, %v1775
      %v1777 = vpop.f32.mrf.mxu0
      %v1778 = vpop.f32.mrf.mxu0
      %v1779 = vadd.f32 0.0, %v1778
      %v1780 = vpop.f32.mrf.mxu0
      %1781 = vmatprep.mubr.bf16.mxu0 0
      %1782 = vmatmul.mubr.bf16.gmra.mxu0 %v1706
      %v1783 = vpop.f32.mrf.mxu0
      %v1784 = vadd.f32 0.0, %v1783
      %v1785 = vpop.f32.mrf.mxu0
      %v1786 = vpop.f32.mrf.mxu0
      %v1787 = vadd.f32 0.0, %v1786
      %v1788 = vpop.f32.mrf.mxu0
      %1789 = vmatprep.mubr.bf16.mxu0 0
      %1790 = vmatmul.mubr.bf16.gmra.mxu0 %v1709
      %v1791 = vpop.f32.mrf.mxu0
      %v1792 = vadd.f32 0.0, %v1791
      %v1793 = vpop.f32.mrf.mxu0
      %v1794 = vpop.f32.mrf.mxu0
      %v1795 = vadd.f32 0.0, %v1794
      %v1796 = vpop.f32.mrf.mxu0
      %1797 = vmatprep.mubr.bf16.mxu0 0
      %1798 = vmatmul.mubr.bf16.gmra.mxu0 %v1712
      %v1799 = vpop.f32.mrf.mxu0
      %v1800 = vadd.f32 0.0, %v1799
      %v1801 = vpop.f32.mrf.mxu0
      %v1802 = vpop.f32.mrf.mxu0
      %v1803 = vpop.f32.mrf.mxu0
      %1804 = vdwg.mxu0
      %v1805 = vadd.f32 %v1566, %v1752
      %v1806 = vadd.f32 %v1567, %v1755
      %v1807 = vadd.f32 %v1568, %v1760
      %v1808 = vadd.f32 %v1569, %v1763
      %v1809 = vadd.f32 %v1570, %v1768
      %v1810 = vadd.f32 %v1571, %v1771
      %v1811 = vadd.f32 %v1572, %v1776
      %v1812 = vadd.f32 %v1573, %v1779
      %v1813 = vadd.f32 %v1574, %v1784
      %v1814 = vadd.f32 %v1575, %v1787
      %v1815 = vadd.f32 %v1576, %v1792
      %v1816 = vadd.f32 %v1577, %v1795
      %v1817 = vadd.f32 %v1578, %v1800
      %v1818 = vld [vmem:[%s359 + $0x8] sm:$0x8]
      %s1819 = scalar_lea.vmem %s3, 16
      %v1820 = vld [vmem:[%s1819] sm:$0x3]
      %v1822 = vunpack.c.l.b16 %v1818
      %v1823 = vpack.c.b16 %v1610, %v1822
      %vm1824 = vcmask 1044480
      %v1825 = vrot.slane %v1823, 3
      %v1826 = vrot.slane %v1624, 3
      %v1827 = vsel %vm1824, %v1825, %v1826
      %v1828 = vrot.slane %v1625, 3
      %v1829 = vsel %vm1824, %v1826, %v1828
      %v1830 = vrot.slane %v1626, 3
      %v1831 = vsel %vm1824, %v1828, %v1830
      %v1832 = vrot.slane %v1627, 3
      %v1833 = vsel %vm1824, %v1830, %v1832
      %v1834 = vrot.slane %v1628, 3
      %v1835 = vsel %vm1824, %v1832, %v1834
      %v1836 = vrot.slane %v1629, 3
      %v1837 = vsel %vm1824, %v1834, %v1836
      %v1839 = vsel %vm500, %v1827, 0
      %v1842 = vsel %vm500, %v1829, 0
      %v1845 = vsel %vm500, %v1831, 0
      %v1848 = vsel %vm500, %v1833, 0
      %v1851 = vsel %vm500, %v1835, 0
      %v1854 = vsel %vm500, %v1837, 0
      %v1857 = vsel %vm500, %v1836, 0
      %v1860 = vsel %vm522, %v1820, 0
      %1862 = vmatprep.subr.bf16.mxu0 0
      %1863 = vmatpush1.bf16.msra.mxu0 0
      %1864 = vmatprep.subr.bf16.mxu0 0
      %1865 = vmatpush1.bf16.msra.mxu0 0
      %1866 = vmatprep.subr.bf16.mxu0 0
      %1867 = vmatpush1.bf16.msra.mxu0 0
      %1868 = vmatprep.subr.bf16.mxu0 0
      %1869 = vmatpush1.bf16.msra.mxu0 0
      %1870 = vmatprep.subr.bf16.mxu0 0
      %1871 = vmatpush1.bf16.msra.mxu0 0
      %1872 = vmatprep.subr.bf16.mxu0 0
      %1873 = vmatpush1.bf16.msra.mxu0 0
      %1874 = vmatprep.subr.bf16.mxu0 0
      %1875 = vmatpush1.bf16.msra.mxu0 0
      %1876 = vmatprep.subr.bf16.mxu0 0
      %1877 = vmatpush1.bf16.msra.mxu0 %v1860
      %1878 = vmatprep.subr.bf16.mxu0 0
      %1879 = vmatpush2.bf16.msra.mxu0 0
      %1880 = vmatprep.subr.bf16.mxu0 0
      %1881 = vmatpush2.bf16.msra.mxu0 0
      %1882 = vmatprep.subr.bf16.mxu0 0
      %1883 = vmatpush2.bf16.msra.mxu0 0
      %1884 = vmatprep.subr.bf16.mxu0 0
      %1885 = vmatpush2.bf16.msra.mxu0 0
      %1886 = vmatprep.subr.bf16.mxu0 0
      %1887 = vmatpush2.bf16.msra.mxu0 0
      %1888 = vmatprep.subr.bf16.mxu0 0
      %1889 = vmatpush2.bf16.msra.mxu0 0
      %1890 = vmatprep.subr.bf16.mxu0 0
      %1891 = vmatpush2.bf16.msra.mxu0 0
      %1892 = vmatprep.subr.bf16.mxu0 0
      %1893 = vmatpush2.bf16.msra.mxu0 0
      %1894 = vmatprep.mubr.bf16.mxu0 0
      %1895 = vmatmul.mubr.bf16.gmra.mxu0 %v1839
      %v1896 = vpop.f32.mrf.mxu0
      %v1897 = vadd.f32 0.0, %v1896
      %v1898 = vpop.f32.mrf.mxu0
      %v1899 = vpop.f32.mrf.mxu0
      %v1900 = vadd.f32 0.0, %v1899
      %v1901 = vpop.f32.mrf.mxu0
      %1902 = vmatprep.mubr.bf16.mxu0 0
      %1903 = vmatmul.mubr.bf16.gmra.mxu0 %v1842
      %v1904 = vpop.f32.mrf.mxu0
      %v1905 = vadd.f32 0.0, %v1904
      %v1906 = vpop.f32.mrf.mxu0
      %v1907 = vpop.f32.mrf.mxu0
      %v1908 = vadd.f32 0.0, %v1907
      %v1909 = vpop.f32.mrf.mxu0
      %1910 = vmatprep.mubr.bf16.mxu0 0
      %1911 = vmatmul.mubr.bf16.gmra.mxu0 %v1845
      %v1912 = vpop.f32.mrf.mxu0
      %v1913 = vadd.f32 0.0, %v1912
      %v1914 = vpop.f32.mrf.mxu0
      %v1915 = vpop.f32.mrf.mxu0
      %v1916 = vadd.f32 0.0, %v1915
      %v1917 = vpop.f32.mrf.mxu0
      %1918 = vmatprep.mubr.bf16.mxu0 0
      %1919 = vmatmul.mubr.bf16.gmra.mxu0 %v1848
      %v1920 = vpop.f32.mrf.mxu0
      %v1921 = vadd.f32 0.0, %v1920
      %v1922 = vpop.f32.mrf.mxu0
      %v1923 = vpop.f32.mrf.mxu0
      %v1924 = vadd.f32 0.0, %v1923
      %v1925 = vpop.f32.mrf.mxu0
      %1926 = vmatprep.mubr.bf16.mxu0 0
      %1927 = vmatmul.mubr.bf16.gmra.mxu0 %v1851
      %v1928 = vpop.f32.mrf.mxu0
      %v1929 = vadd.f32 0.0, %v1928
      %v1930 = vpop.f32.mrf.mxu0
      %v1931 = vpop.f32.mrf.mxu0
      %v1932 = vadd.f32 0.0, %v1931
      %v1933 = vpop.f32.mrf.mxu0
      %1934 = vmatprep.mubr.bf16.mxu0 0
      %1935 = vmatmul.mubr.bf16.gmra.mxu0 %v1854
      %v1936 = vpop.f32.mrf.mxu0
      %v1937 = vadd.f32 0.0, %v1936
      %v1938 = vpop.f32.mrf.mxu0
      %v1939 = vpop.f32.mrf.mxu0
      %v1940 = vadd.f32 0.0, %v1939
      %v1941 = vpop.f32.mrf.mxu0
      %1942 = vmatprep.mubr.bf16.mxu0 0
      %1943 = vmatmul.mubr.bf16.gmra.mxu0 %v1857
      %v1944 = vpop.f32.mrf.mxu0
      %v1945 = vadd.f32 0.0, %v1944
      %v1946 = vpop.f32.mrf.mxu0
      %v1947 = vpop.f32.mrf.mxu0
      %v1948 = vpop.f32.mrf.mxu0
      %1949 = vdwg.mxu0
      %v1950 = vadd.f32 %v1805, %v1897
      %v1951 = vadd.f32 %v1806, %v1900
      %v1952 = vadd.f32 %v1807, %v1905
      %v1953 = vadd.f32 %v1808, %v1908
      %v1954 = vadd.f32 %v1809, %v1913
      %v1955 = vadd.f32 %v1810, %v1916
      %v1956 = vadd.f32 %v1811, %v1921
      %v1957 = vadd.f32 %v1812, %v1924
      %v1958 = vadd.f32 %v1813, %v1929
      %v1959 = vadd.f32 %v1814, %v1932
      %v1960 = vadd.f32 %v1815, %v1937
      %v1961 = vadd.f32 %v1816, %v1940
      %v1962 = vadd.f32 %v1817, %v1945
      %v1963 = vld [vmem:[%s369] sm:$0xf]
      %v1964 = vld [vmem:[%s369 + $0x4] sm:$0xf]
      %v1965 = vld [vmem:[%s369 + $0x8] sm:$0xf]
      %v1966 = vld [vmem:[%s369 + $0xc] sm:$0xf]
      %v1967 = vld [vmem:[%s369 + $0x10] sm:$0xf]
      %v1968 = vld [vmem:[%s369 + $0x14] sm:$0xf]
      %v1969 = vld [vmem:[%s369 + $0x18] sm:$0xf]
      %v1970 = vld [vmem:[%s369 + $0x1c] sm:$0xf]
      %v1971 = vld [vmem:[%s369 + $0x20] sm:$0xf]
      %v1972 = vld [vmem:[%s369 + $0x24] sm:$0xf]
      %v1973 = vld [vmem:[%s369 + $0x28] sm:$0xf]
      %v1974 = vld [vmem:[%s369 + $0x2c] sm:$0xf]
      %v1975 = vld [vmem:[%s369 + $0x30] sm:$0x3]
      %s1976 = scalar_lea.vmem %s3, 18
      %v1977 = vld [vmem:[%s1976] sm:$0x3]
      %v1991 = vunpack.c.l.b16 %v1963
      %v1992 = vunpack.c.l.b16 %v1964
      %v1993 = vunpack.c.l.b16 %v1965
      %v1994 = vunpack.c.l.b16 %v1966
      %v1995 = vunpack.c.l.b16 %v1967
      %v1996 = vunpack.c.l.b16 %v1968
      %v1997 = vunpack.c.l.b16 %v1969
      %v1998 = vunpack.c.l.b16 %v1970
      %v1999 = vunpack.c.l.b16 %v1971
      %v2000 = vunpack.c.l.b16 %v1972
      %v2001 = vunpack.c.l.b16 %v1973
      %v2002 = vunpack.c.l.b16 %v1974
      %v2003 = vunpack.c.l.b16 %v1975
      %v2004 = vpack.c.b16 %v1992, %v1991
      %v2005 = vpack.c.b16 %v1994, %v1993
      %v2006 = vpack.c.b16 %v1996, %v1995
      %v2007 = vpack.c.b16 %v1998, %v1997
      %v2008 = vpack.c.b16 %v2000, %v1999
      %v2009 = vpack.c.b16 %v2002, %v2001
      %v2010 = vpack.c.b16 %v2003, %v2003
      %v2012 = vsel %vm500, %v2004, 0
      %v2015 = vsel %vm500, %v2005, 0
      %v2018 = vsel %vm500, %v2006, 0
      %v2021 = vsel %vm500, %v2007, 0
      %v2024 = vsel %vm500, %v2008, 0
      %v2027 = vsel %vm500, %v2009, 0
      %v2030 = vsel %vm500, %v2010, 0
      %v2033 = vsel %vm522, %v1977, 0
      %2035 = vmatprep.subr.bf16.mxu0 0
      %2036 = vmatpush1.bf16.msra.mxu0 0
      %2037 = vmatprep.subr.bf16.mxu0 0
      %2038 = vmatpush1.bf16.msra.mxu0 0
      %2039 = vmatprep.subr.bf16.mxu0 0
      %2040 = vmatpush1.bf16.msra.mxu0 0
      %2041 = vmatprep.subr.bf16.mxu0 0
      %2042 = vmatpush1.bf16.msra.mxu0 0
      %2043 = vmatprep.subr.bf16.mxu0 0
      %2044 = vmatpush1.bf16.msra.mxu0 0
      %2045 = vmatprep.subr.bf16.mxu0 0
      %2046 = vmatpush1.bf16.msra.mxu0 0
      %2047 = vmatprep.subr.bf16.mxu0 0
      %2048 = vmatpush1.bf16.msra.mxu0 0
      %2049 = vmatprep.subr.bf16.mxu0 0
      %2050 = vmatpush1.bf16.msra.mxu0 %v2033
      %2051 = vmatprep.subr.bf16.mxu0 0
      %2052 = vmatpush2.bf16.msra.mxu0 0
      %2053 = vmatprep.subr.bf16.mxu0 0
      %2054 = vmatpush2.bf16.msra.mxu0 0
      %2055 = vmatprep.subr.bf16.mxu0 0
      %2056 = vmatpush2.bf16.msra.mxu0 0
      %2057 = vmatprep.subr.bf16.mxu0 0
      %2058 = vmatpush2.bf16.msra.mxu0 0
      %2059 = vmatprep.subr.bf16.mxu0 0
      %2060 = vmatpush2.bf16.msra.mxu0 0
      %2061 = vmatprep.subr.bf16.mxu0 0
      %2062 = vmatpush2.bf16.msra.mxu0 0
      %2063 = vmatprep.subr.bf16.mxu0 0
      %2064 = vmatpush2.bf16.msra.mxu0 0
      %2065 = vmatprep.subr.bf16.mxu0 0
      %2066 = vmatpush2.bf16.msra.mxu0 0
      %2067 = vmatprep.mubr.bf16.mxu0 0
      %2068 = vmatmul.mubr.bf16.gmra.mxu0 %v2012
      %v2069 = vpop.f32.mrf.mxu0
      %v2070 = vadd.f32 0.0, %v2069
      %v2071 = vpop.f32.mrf.mxu0
      %v2072 = vpop.f32.mrf.mxu0
      %v2073 = vadd.f32 0.0, %v2072
      %v2074 = vpop.f32.mrf.mxu0
      %2075 = vmatprep.mubr.bf16.mxu0 0
      %2076 = vmatmul.mubr.bf16.gmra.mxu0 %v2015
      %v2077 = vpop.f32.mrf.mxu0
      %v2078 = vadd.f32 0.0, %v2077
      %v2079 = vpop.f32.mrf.mxu0
      %v2080 = vpop.f32.mrf.mxu0
      %v2081 = vadd.f32 0.0, %v2080
      %v2082 = vpop.f32.mrf.mxu0
      %2083 = vmatprep.mubr.bf16.mxu0 0
      %2084 = vmatmul.mubr.bf16.gmra.mxu0 %v2018
      %v2085 = vpop.f32.mrf.mxu0
      %v2086 = vadd.f32 0.0, %v2085
      %v2087 = vpop.f32.mrf.mxu0
      %v2088 = vpop.f32.mrf.mxu0
      %v2089 = vadd.f32 0.0, %v2088
      %v2090 = vpop.f32.mrf.mxu0
      %2091 = vmatprep.mubr.bf16.mxu0 0
      %2092 = vmatmul.mubr.bf16.gmra.mxu0 %v2021
      %v2093 = vpop.f32.mrf.mxu0
      %v2094 = vadd.f32 0.0, %v2093
      %v2095 = vpop.f32.mrf.mxu0
      %v2096 = vpop.f32.mrf.mxu0
      %v2097 = vadd.f32 0.0, %v2096
      %v2098 = vpop.f32.mrf.mxu0
      %2099 = vmatprep.mubr.bf16.mxu0 0
      %2100 = vmatmul.mubr.bf16.gmra.mxu0 %v2024
      %v2101 = vpop.f32.mrf.mxu0
      %v2102 = vadd.f32 0.0, %v2101
      %v2103 = vpop.f32.mrf.mxu0
      %v2104 = vpop.f32.mrf.mxu0
      %v2105 = vadd.f32 0.0, %v2104
      %v2106 = vpop.f32.mrf.mxu0
      %2107 = vmatprep.mubr.bf16.mxu0 0
      %2108 = vmatmul.mubr.bf16.gmra.mxu0 %v2027
      %v2109 = vpop.f32.mrf.mxu0
      %v2110 = vadd.f32 0.0, %v2109
      %v2111 = vpop.f32.mrf.mxu0
      %v2112 = vpop.f32.mrf.mxu0
      %v2113 = vadd.f32 0.0, %v2112
      %v2114 = vpop.f32.mrf.mxu0
      %2115 = vmatprep.mubr.bf16.mxu0 0
      %2116 = vmatmul.mubr.bf16.gmra.mxu0 %v2030
      %v2117 = vpop.f32.mrf.mxu0
      %v2118 = vadd.f32 0.0, %v2117
      %v2119 = vpop.f32.mrf.mxu0
      %v2120 = vpop.f32.mrf.mxu0
      %v2121 = vpop.f32.mrf.mxu0
      %2122 = vdwg.mxu0
      %v2123 = vadd.f32 %v1950, %v2070
      %v2124 = vadd.f32 %v1951, %v2073
      %v2125 = vadd.f32 %v1952, %v2078
      %v2126 = vadd.f32 %v1953, %v2081
      %v2127 = vadd.f32 %v1954, %v2086
      %v2128 = vadd.f32 %v1955, %v2089
      %v2129 = vadd.f32 %v1956, %v2094
      %v2130 = vadd.f32 %v1957, %v2097
      %v2131 = vadd.f32 %v1958, %v2102
      %v2132 = vadd.f32 %v1959, %v2105
      %v2133 = vadd.f32 %v1960, %v2110
      %v2134 = vadd.f32 %v1961, %v2113
      %v2135 = vadd.f32 %v1962, %v2118
      %v2136 = vld [vmem:[%s369 + $0x30] sm:$0x7]
      %s2137 = scalar_lea.vmem %s3, 20
      %v2138 = vld [vmem:[%s2137] sm:$0x3]
      %v2140 = vunpack.c.l.b16 %v2136
      %v2141 = vpack.c.b16 %v2140, %v2140
      %v2142 = vshrl.u32 %v2004, 16
      %v2144 = vshll.u32 %v2004, 16
      %v2146 = vrot.slane %v2144, 1
      %v2147 = vor.u32 %v2142, %v2146
      %v2148 = vshll.u32 %v2005, 16
      %v2150 = vrot.slane %v2148, 1
      %v2151 = vsel %vm444, %v2147, %v2150
      %v2152 = vshrl.u32 %v2005, 16
      %v2154 = vor.u32 %v2152, %v2150
      %v2155 = vshll.u32 %v2006, 16
      %v2157 = vrot.slane %v2155, 1
      %v2158 = vsel %vm444, %v2154, %v2157
      %v2159 = vshrl.u32 %v2006, 16
      %v2161 = vor.u32 %v2159, %v2157
      %v2162 = vshll.u32 %v2007, 16
      %v2164 = vrot.slane %v2162, 1
      %v2165 = vsel %vm444, %v2161, %v2164
      %v2166 = vshrl.u32 %v2007, 16
      %v2168 = vor.u32 %v2166, %v2164
      %v2169 = vshll.u32 %v2008, 16
      %v2171 = vrot.slane %v2169, 1
      %v2172 = vsel %vm444, %v2168, %v2171
      %v2173 = vshrl.u32 %v2008, 16
      %v2175 = vor.u32 %v2173, %v2171
      %v2176 = vshll.u32 %v2009, 16
      %v2178 = vrot.slane %v2176, 1
      %v2179 = vsel %vm444, %v2175, %v2178
      %v2180 = vshrl.u32 %v2009, 16
      %v2182 = vor.u32 %v2180, %v2178
      %v2184 = vshll.u32 %v2141, 16
      %v2186 = vrot.slane %v2184, 1
      %v2187 = vsel %vm444, %v2182, %v2186
      %v2188 = vshrl.u32 %v2141, 16
      %v2190 = vor.u32 %v2188, %v2186
      %v2192 = vsel %vm500, %v2151, 0
      %v2195 = vsel %vm500, %v2158, 0
      %v2198 = vsel %vm500, %v2165, 0
      %v2201 = vsel %vm500, %v2172, 0
      %v2204 = vsel %vm500, %v2179, 0
      %v2207 = vsel %vm500, %v2187, 0
      %v2210 = vsel %vm500, %v2190, 0
      %v2213 = vsel %vm522, %v2138, 0
      %2215 = vmatprep.subr.bf16.mxu0 0
      %2216 = vmatpush1.bf16.msra.mxu0 0
      %2217 = vmatprep.subr.bf16.mxu0 0
      %2218 = vmatpush1.bf16.msra.mxu0 0
      %2219 = vmatprep.subr.bf16.mxu0 0
      %2220 = vmatpush1.bf16.msra.mxu0 0
      %2221 = vmatprep.subr.bf16.mxu0 0
      %2222 = vmatpush1.bf16.msra.mxu0 0
      %2223 = vmatprep.subr.bf16.mxu0 0
      %2224 = vmatpush1.bf16.msra.mxu0 0
      %2225 = vmatprep.subr.bf16.mxu0 0
      %2226 = vmatpush1.bf16.msra.mxu0 0
      %2227 = vmatprep.subr.bf16.mxu0 0
      %2228 = vmatpush1.bf16.msra.mxu0 0
      %2229 = vmatprep.subr.bf16.mxu0 0
      %2230 = vmatpush1.bf16.msra.mxu0 %v2213
      %2231 = vmatprep.subr.bf16.mxu0 0
      %2232 = vmatpush2.bf16.msra.mxu0 0
      %2233 = vmatprep.subr.bf16.mxu0 0
      %2234 = vmatpush2.bf16.msra.mxu0 0
      %2235 = vmatprep.subr.bf16.mxu0 0
      %2236 = vmatpush2.bf16.msra.mxu0 0
      %2237 = vmatprep.subr.bf16.mxu0 0
      %2238 = vmatpush2.bf16.msra.mxu0 0
      %2239 = vmatprep.subr.bf16.mxu0 0
      %2240 = vmatpush2.bf16.msra.mxu0 0
      %2241 = vmatprep.subr.bf16.mxu0 0
      %2242 = vmatpush2.bf16.msra.mxu0 0
      %2243 = vmatprep.subr.bf16.mxu0 0
      %2244 = vmatpush2.bf16.msra.mxu0 0
      %2245 = vmatprep.subr.bf16.mxu0 0
      %2246 = vmatpush2.bf16.msra.mxu0 0
      %2247 = vmatprep.mubr.bf16.mxu0 0
      %2248 = vmatmul.mubr.bf16.gmra.mxu0 %v2192
      %v2249 = vpop.f32.mrf.mxu0
      %v2250 = vadd.f32 0.0, %v2249
      %v2251 = vpop.f32.mrf.mxu0
      %v2252 = vpop.f32.mrf.mxu0
      %v2253 = vadd.f32 0.0, %v2252
      %v2254 = vpop.f32.mrf.mxu0
      %2255 = vmatprep.mubr.bf16.mxu0 0
      %2256 = vmatmul.mubr.bf16.gmra.mxu0 %v2195
      %v2257 = vpop.f32.mrf.mxu0
      %v2258 = vadd.f32 0.0, %v2257
      %v2259 = vpop.f32.mrf.mxu0
      %v2260 = vpop.f32.mrf.mxu0
      %v2261 = vadd.f32 0.0, %v2260
      %v2262 = vpop.f32.mrf.mxu0
      %2263 = vmatprep.mubr.bf16.mxu0 0
      %2264 = vmatmul.mubr.bf16.gmra.mxu0 %v2198
      %v2265 = vpop.f32.mrf.mxu0
      %v2266 = vadd.f32 0.0, %v2265
      %v2267 = vpop.f32.mrf.mxu0
      %v2268 = vpop.f32.mrf.mxu0
      %v2269 = vadd.f32 0.0, %v2268
      %v2270 = vpop.f32.mrf.mxu0
      %2271 = vmatprep.mubr.bf16.mxu0 0
      %2272 = vmatmul.mubr.bf16.gmra.mxu0 %v2201
      %v2273 = vpop.f32.mrf.mxu0
      %v2274 = vadd.f32 0.0, %v2273
      %v2275 = vpop.f32.mrf.mxu0
      %v2276 = vpop.f32.mrf.mxu0
      %v2277 = vadd.f32 0.0, %v2276
      %v2278 = vpop.f32.mrf.mxu0
      %2279 = vmatprep.mubr.bf16.mxu0 0
      %2280 = vmatmul.mubr.bf16.gmra.mxu0 %v2204
      %v2281 = vpop.f32.mrf.mxu0
      %v2282 = vadd.f32 0.0, %v2281
      %v2283 = vpop.f32.mrf.mxu0
      %v2284 = vpop.f32.mrf.mxu0
      %v2285 = vadd.f32 0.0, %v2284
      %v2286 = vpop.f32.mrf.mxu0
      %2287 = vmatprep.mubr.bf16.mxu0 0
      %2288 = vmatmul.mubr.bf16.gmra.mxu0 %v2207
      %v2289 = vpop.f32.mrf.mxu0
      %v2290 = vadd.f32 0.0, %v2289
      %v2291 = vpop.f32.mrf.mxu0
      %v2292 = vpop.f32.mrf.mxu0
      %v2293 = vadd.f32 0.0, %v2292
      %v2294 = vpop.f32.mrf.mxu0
      %2295 = vmatprep.mubr.bf16.mxu0 0
      %2296 = vmatmul.mubr.bf16.gmra.mxu0 %v2210
      %v2297 = vpop.f32.mrf.mxu0
      %v2298 = vadd.f32 0.0, %v2297
      %v2299 = vpop.f32.mrf.mxu0
      %v2300 = vpop.f32.mrf.mxu0
      %v2301 = vpop.f32.mrf.mxu0
      %2302 = vdwg.mxu0
      %v2303 = vadd.f32 %v2123, %v2250
      %v2304 = vadd.f32 %v2124, %v2253
      %v2305 = vadd.f32 %v2125, %v2258
      %v2306 = vadd.f32 %v2126, %v2261
      %v2307 = vadd.f32 %v2127, %v2266
      %v2308 = vadd.f32 %v2128, %v2269
      %v2309 = vadd.f32 %v2129, %v2274
      %v2310 = vadd.f32 %v2130, %v2277
      %v2311 = vadd.f32 %v2131, %v2282
      %v2312 = vadd.f32 %v2132, %v2285
      %v2313 = vadd.f32 %v2133, %v2290
      %v2314 = vadd.f32 %v2134, %v2293
      %v2315 = vadd.f32 %v2135, %v2298
      %v2316 = vld [vmem:[%s369] sm:$0xe]
      %s2317 = scalar_lea.vmem %s3, 22
      %v2318 = vld [vmem:[%s2317] sm:$0x3]
      %v2320 = vunpack.c.l.b16 %v2316
      %v2321 = vpack.c.b16 %v1992, %v2320
      %v2322 = vrot.slane %v2321, 1
      %v2323 = vrot.slane %v2005, 1
      %v2324 = vsel %vm729, %v2322, %v2323
      %v2325 = vrot.slane %v2006, 1
      %v2326 = vsel %vm729, %v2323, %v2325
      %v2327 = vrot.slane %v2007, 1
      %v2328 = vsel %vm729, %v2325, %v2327
      %v2329 = vrot.slane %v2008, 1
      %v2330 = vsel %vm729, %v2327, %v2329
      %v2331 = vrot.slane %v2009, 1
      %v2332 = vsel %vm729, %v2329, %v2331
      %v2333 = vrot.slane %v2141, 1
      %v2334 = vsel %vm729, %v2331, %v2333
      %v2336 = vsel %vm500, %v2324, 0
      %v2339 = vsel %vm500, %v2326, 0
      %v2342 = vsel %vm500, %v2328, 0
      %v2345 = vsel %vm500, %v2330, 0
      %v2348 = vsel %vm500, %v2332, 0
      %v2351 = vsel %vm500, %v2334, 0
      %v2354 = vsel %vm500, %v2333, 0
      %v2357 = vsel %vm522, %v2318, 0
      %2359 = vmatprep.subr.bf16.mxu0 0
      %2360 = vmatpush1.bf16.msra.mxu0 0
      %2361 = vmatprep.subr.bf16.mxu0 0
      %2362 = vmatpush1.bf16.msra.mxu0 0
      %2363 = vmatprep.subr.bf16.mxu0 0
      %2364 = vmatpush1.bf16.msra.mxu0 0
      %2365 = vmatprep.subr.bf16.mxu0 0
      %2366 = vmatpush1.bf16.msra.mxu0 0
      %2367 = vmatprep.subr.bf16.mxu0 0
      %2368 = vmatpush1.bf16.msra.mxu0 0
      %2369 = vmatprep.subr.bf16.mxu0 0
      %2370 = vmatpush1.bf16.msra.mxu0 0
      %2371 = vmatprep.subr.bf16.mxu0 0
      %2372 = vmatpush1.bf16.msra.mxu0 0
      %2373 = vmatprep.subr.bf16.mxu0 0
      %2374 = vmatpush1.bf16.msra.mxu0 %v2357
      %2375 = vmatprep.subr.bf16.mxu0 0
      %2376 = vmatpush2.bf16.msra.mxu0 0
      %2377 = vmatprep.subr.bf16.mxu0 0
      %2378 = vmatpush2.bf16.msra.mxu0 0
      %2379 = vmatprep.subr.bf16.mxu0 0
      %2380 = vmatpush2.bf16.msra.mxu0 0
      %2381 = vmatprep.subr.bf16.mxu0 0
      %2382 = vmatpush2.bf16.msra.mxu0 0
      %2383 = vmatprep.subr.bf16.mxu0 0
      %2384 = vmatpush2.bf16.msra.mxu0 0
      %2385 = vmatprep.subr.bf16.mxu0 0
      %2386 = vmatpush2.bf16.msra.mxu0 0
      %2387 = vmatprep.subr.bf16.mxu0 0
      %2388 = vmatpush2.bf16.msra.mxu0 0
      %2389 = vmatprep.subr.bf16.mxu0 0
      %2390 = vmatpush2.bf16.msra.mxu0 0
      %2391 = vmatprep.mubr.bf16.mxu0 0
      %2392 = vmatmul.mubr.bf16.gmra.mxu0 %v2336
      %v2393 = vpop.f32.mrf.mxu0
      %v2394 = vadd.f32 0.0, %v2393
      %v2395 = vpop.f32.mrf.mxu0
      %v2396 = vpop.f32.mrf.mxu0
      %v2397 = vadd.f32 0.0, %v2396
      %v2398 = vpop.f32.mrf.mxu0
      %2399 = vmatprep.mubr.bf16.mxu0 0
      %2400 = vmatmul.mubr.bf16.gmra.mxu0 %v2339
      %v2401 = vpop.f32.mrf.mxu0
      %v2402 = vadd.f32 0.0, %v2401
      %v2403 = vpop.f32.mrf.mxu0
      %v2404 = vpop.f32.mrf.mxu0
      %v2405 = vadd.f32 0.0, %v2404
      %v2406 = vpop.f32.mrf.mxu0
      %2407 = vmatprep.mubr.bf16.mxu0 0
      %2408 = vmatmul.mubr.bf16.gmra.mxu0 %v2342
      %v2409 = vpop.f32.mrf.mxu0
      %v2410 = vadd.f32 0.0, %v2409
      %v2411 = vpop.f32.mrf.mxu0
      %v2412 = vpop.f32.mrf.mxu0
      %v2413 = vadd.f32 0.0, %v2412
      %v2414 = vpop.f32.mrf.mxu0
      %2415 = vmatprep.mubr.bf16.mxu0 0
      %2416 = vmatmul.mubr.bf16.gmra.mxu0 %v2345
      %v2417 = vpop.f32.mrf.mxu0
      %v2418 = vadd.f32 0.0, %v2417
      %v2419 = vpop.f32.mrf.mxu0
      %v2420 = vpop.f32.mrf.mxu0
      %v2421 = vadd.f32 0.0, %v2420
      %v2422 = vpop.f32.mrf.mxu0
      %2423 = vmatprep.mubr.bf16.mxu0 0
      %2424 = vmatmul.mubr.bf16.gmra.mxu0 %v2348
      %v2425 = vpop.f32.mrf.mxu0
      %v2426 = vadd.f32 0.0, %v2425
      %v2427 = vpop.f32.mrf.mxu0
      %v2428 = vpop.f32.mrf.mxu0
      %v2429 = vadd.f32 0.0, %v2428
      %v2430 = vpop.f32.mrf.mxu0
      %2431 = vmatprep.mubr.bf16.mxu0 0
      %2432 = vmatmul.mubr.bf16.gmra.mxu0 %v2351
      %v2433 = vpop.f32.mrf.mxu0
      %v2434 = vadd.f32 0.0, %v2433
      %v2435 = vpop.f32.mrf.mxu0
      %v2436 = vpop.f32.mrf.mxu0
      %v2437 = vadd.f32 0.0, %v2436
      %v2438 = vpop.f32.mrf.mxu0
      %2439 = vmatprep.mubr.bf16.mxu0 0
      %2440 = vmatmul.mubr.bf16.gmra.mxu0 %v2354
      %v2441 = vpop.f32.mrf.mxu0
      %v2442 = vadd.f32 0.0, %v2441
      %v2443 = vpop.f32.mrf.mxu0
      %v2444 = vpop.f32.mrf.mxu0
      %v2445 = vpop.f32.mrf.mxu0
      %2446 = vdwg.mxu0
      %v2447 = vadd.f32 %v2303, %v2394
      %v2448 = vadd.f32 %v2304, %v2397
      %v2449 = vadd.f32 %v2305, %v2402
      %v2450 = vadd.f32 %v2306, %v2405
      %v2451 = vadd.f32 %v2307, %v2410
      %v2452 = vadd.f32 %v2308, %v2413
      %v2453 = vadd.f32 %v2309, %v2418
      %v2454 = vadd.f32 %v2310, %v2421
      %v2455 = vadd.f32 %v2311, %v2426
      %v2456 = vadd.f32 %v2312, %v2429
      %v2457 = vadd.f32 %v2313, %v2434
      %v2458 = vadd.f32 %v2314, %v2437
      %v2459 = vadd.f32 %v2315, %v2442
      %v2460 = vld [vmem:[%s369 + $0x4] sm:$0xe]
      %v2461 = vld [vmem:[%s369 + $0x8] sm:$0xf]
      %v2462 = vld [vmem:[%s369 + $0xc] sm:$0xf]
      %v2463 = vld [vmem:[%s369 + $0x10] sm:$0xf]
      %v2464 = vld [vmem:[%s369 + $0x14] sm:$0xf]
      %v2465 = vld [vmem:[%s369 + $0x18] sm:$0xf]
      %v2466 = vld [vmem:[%s369 + $0x1c] sm:$0xf]
      %v2467 = vld [vmem:[%s369 + $0x20] sm:$0xf]
      %v2468 = vld [vmem:[%s369 + $0x24] sm:$0xf]
      %v2469 = vld [vmem:[%s369 + $0x28] sm:$0xf]
      %v2470 = vld [vmem:[%s369 + $0x2c] sm:$0xf]
      %v2471 = vld [vmem:[%s369 + $0x30] sm:$0xf]
      %v2472 = vld [vmem:[%s369 + $0x34] sm:$0x7]
      %s2473 = scalar_lea.vmem %s3, 24
      %v2474 = vld [vmem:[%s2473] sm:$0x3]
      %v2488 = vunpack.c.l.b16 %v2460
      %v2489 = vunpack.c.l.b16 %v2461
      %v2490 = vunpack.c.l.b16 %v2462
      %v2491 = vunpack.c.l.b16 %v2463
      %v2492 = vunpack.c.l.b16 %v2464
      %v2493 = vunpack.c.l.b16 %v2465
      %v2494 = vunpack.c.l.b16 %v2466
      %v2495 = vunpack.c.l.b16 %v2467
      %v2496 = vunpack.c.l.b16 %v2468
      %v2497 = vunpack.c.l.b16 %v2469
      %v2498 = vunpack.c.l.b16 %v2470
      %v2499 = vunpack.c.l.b16 %v2471
      %v2500 = vunpack.c.l.b16 %v2472
      %v2501 = vpack.c.b16 %v2489, %v2488
      %v2502 = vpack.c.b16 %v2491, %v2490
      %v2503 = vpack.c.b16 %v2493, %v2492
      %v2504 = vpack.c.b16 %v2495, %v2494
      %v2505 = vpack.c.b16 %v2497, %v2496
      %v2506 = vpack.c.b16 %v2499, %v2498
      %v2507 = vpack.c.b16 %v2500, %v2500
      %v2508 = vrot.slane %v2501, 1
      %v2509 = vrot.slane %v2502, 1
      %v2510 = vsel %vm729, %v2508, %v2509
      %v2511 = vrot.slane %v2503, 1
      %v2512 = vsel %vm729, %v2509, %v2511
      %v2513 = vrot.slane %v2504, 1
      %v2514 = vsel %vm729, %v2511, %v2513
      %v2515 = vrot.slane %v2505, 1
      %v2516 = vsel %vm729, %v2513, %v2515
      %v2517 = vrot.slane %v2506, 1
      %v2518 = vsel %vm729, %v2515, %v2517
      %v2519 = vrot.slane %v2507, 1
      %v2520 = vsel %vm729, %v2517, %v2519
      %v2522 = vsel %vm500, %v2510, 0
      %v2525 = vsel %vm500, %v2512, 0
      %v2528 = vsel %vm500, %v2514, 0
      %v2531 = vsel %vm500, %v2516, 0
      %v2534 = vsel %vm500, %v2518, 0
      %v2537 = vsel %vm500, %v2520, 0
      %v2540 = vsel %vm500, %v2519, 0
      %v2543 = vsel %vm522, %v2474, 0
      %2545 = vmatprep.subr.bf16.mxu0 0
      %2546 = vmatpush1.bf16.msra.mxu0 0
      %2547 = vmatprep.subr.bf16.mxu0 0
      %2548 = vmatpush1.bf16.msra.mxu0 0
      %2549 = vmatprep.subr.bf16.mxu0 0
      %2550 = vmatpush1.bf16.msra.mxu0 0
      %2551 = vmatprep.subr.bf16.mxu0 0
      %2552 = vmatpush1.bf16.msra.mxu0 0
      %2553 = vmatprep.subr.bf16.mxu0 0
      %2554 = vmatpush1.bf16.msra.mxu0 0
      %2555 = vmatprep.subr.bf16.mxu0 0
      %2556 = vmatpush1.bf16.msra.mxu0 0
      %2557 = vmatprep.subr.bf16.mxu0 0
      %2558 = vmatpush1.bf16.msra.mxu0 0
      %2559 = vmatprep.subr.bf16.mxu0 0
      %2560 = vmatpush1.bf16.msra.mxu0 %v2543
      %2561 = vmatprep.subr.bf16.mxu0 0
      %2562 = vmatpush2.bf16.msra.mxu0 0
      %2563 = vmatprep.subr.bf16.mxu0 0
      %2564 = vmatpush2.bf16.msra.mxu0 0
      %2565 = vmatprep.subr.bf16.mxu0 0
      %2566 = vmatpush2.bf16.msra.mxu0 0
      %2567 = vmatprep.subr.bf16.mxu0 0
      %2568 = vmatpush2.bf16.msra.mxu0 0
      %2569 = vmatprep.subr.bf16.mxu0 0
      %2570 = vmatpush2.bf16.msra.mxu0 0
      %2571 = vmatprep.subr.bf16.mxu0 0
      %2572 = vmatpush2.bf16.msra.mxu0 0
      %2573 = vmatprep.subr.bf16.mxu0 0
      %2574 = vmatpush2.bf16.msra.mxu0 0
      %2575 = vmatprep.subr.bf16.mxu0 0
      %2576 = vmatpush2.bf16.msra.mxu0 0
      %2577 = vmatprep.mubr.bf16.mxu0 0
      %2578 = vmatmul.mubr.bf16.gmra.mxu0 %v2522
      %v2579 = vpop.f32.mrf.mxu0
      %v2580 = vadd.f32 0.0, %v2579
      %v2581 = vpop.f32.mrf.mxu0
      %v2582 = vpop.f32.mrf.mxu0
      %v2583 = vadd.f32 0.0, %v2582
      %v2584 = vpop.f32.mrf.mxu0
      %2585 = vmatprep.mubr.bf16.mxu0 0
      %2586 = vmatmul.mubr.bf16.gmra.mxu0 %v2525
      %v2587 = vpop.f32.mrf.mxu0
      %v2588 = vadd.f32 0.0, %v2587
      %v2589 = vpop.f32.mrf.mxu0
      %v2590 = vpop.f32.mrf.mxu0
      %v2591 = vadd.f32 0.0, %v2590
      %v2592 = vpop.f32.mrf.mxu0
      %2593 = vmatprep.mubr.bf16.mxu0 0
      %2594 = vmatmul.mubr.bf16.gmra.mxu0 %v2528
      %v2595 = vpop.f32.mrf.mxu0
      %v2596 = vadd.f32 0.0, %v2595
      %v2597 = vpop.f32.mrf.mxu0
      %v2598 = vpop.f32.mrf.mxu0
      %v2599 = vadd.f32 0.0, %v2598
      %v2600 = vpop.f32.mrf.mxu0
      %2601 = vmatprep.mubr.bf16.mxu0 0
      %2602 = vmatmul.mubr.bf16.gmra.mxu0 %v2531
      %v2603 = vpop.f32.mrf.mxu0
      %v2604 = vadd.f32 0.0, %v2603
      %v2605 = vpop.f32.mrf.mxu0
      %v2606 = vpop.f32.mrf.mxu0
      %v2607 = vadd.f32 0.0, %v2606
      %v2608 = vpop.f32.mrf.mxu0
      %2609 = vmatprep.mubr.bf16.mxu0 0
      %2610 = vmatmul.mubr.bf16.gmra.mxu0 %v2534
      %v2611 = vpop.f32.mrf.mxu0
      %v2612 = vadd.f32 0.0, %v2611
      %v2613 = vpop.f32.mrf.mxu0
      %v2614 = vpop.f32.mrf.mxu0
      %v2615 = vadd.f32 0.0, %v2614
      %v2616 = vpop.f32.mrf.mxu0
      %2617 = vmatprep.mubr.bf16.mxu0 0
      %2618 = vmatmul.mubr.bf16.gmra.mxu0 %v2537
      %v2619 = vpop.f32.mrf.mxu0
      %v2620 = vadd.f32 0.0, %v2619
      %v2621 = vpop.f32.mrf.mxu0
      %v2622 = vpop.f32.mrf.mxu0
      %v2623 = vadd.f32 0.0, %v2622
      %v2624 = vpop.f32.mrf.mxu0
      %2625 = vmatprep.mubr.bf16.mxu0 0
      %2626 = vmatmul.mubr.bf16.gmra.mxu0 %v2540
      %v2627 = vpop.f32.mrf.mxu0
      %v2628 = vadd.f32 0.0, %v2627
      %v2629 = vpop.f32.mrf.mxu0
      %v2630 = vpop.f32.mrf.mxu0
      %v2631 = vpop.f32.mrf.mxu0
      %2632 = vdwg.mxu0
      %v2633 = vadd.f32 %v2447, %v2580
      %v2634 = vadd.f32 %v2448, %v2583
      %v2635 = vadd.f32 %v2449, %v2588
      %v2636 = vadd.f32 %v2450, %v2591
      %v2637 = vadd.f32 %v2451, %v2596
      %v2638 = vadd.f32 %v2452, %v2599
      %v2639 = vadd.f32 %v2453, %v2604
      %v2640 = vadd.f32 %v2454, %v2607
      %v2641 = vadd.f32 %v2455, %v2612
      %v2642 = vadd.f32 %v2456, %v2615
      %v2643 = vadd.f32 %v2457, %v2620
      %v2644 = vadd.f32 %v2458, %v2623
      %v2645 = vadd.f32 %v2459, %v2628
      %v2646 = vld [vmem:[%s369 + $0x34] sm:$0xf]
      %s2647 = scalar_lea.vmem %s3, 26
      %v2648 = vld [vmem:[%s2647] sm:$0x3]
      %v2650 = vunpack.c.l.b16 %v2646
      %v2651 = vpack.c.b16 %v2650, %v2650
      %v2653 = vshrl.u32 %v2501, 16
      %v2655 = vrot.slane %v2653, 1
      %v2656 = vshll.u32 %v2501, 16
      %v2658 = vrot.slane %v2656, 2
      %v2659 = vor.u32 %v2655, %v2658
      %v2661 = vshrl.u32 %v2502, 16
      %v2663 = vrot.slane %v2661, 1
      %v2664 = vshll.u32 %v2502, 16
      %v2666 = vrot.slane %v2664, 2
      %v2667 = vor.u32 %v2663, %v2666
      %v2668 = vsel %vm1060, %v2659, %v2667
      %v2670 = vshrl.u32 %v2503, 16
      %v2672 = vrot.slane %v2670, 1
      %v2673 = vshll.u32 %v2503, 16
      %v2675 = vrot.slane %v2673, 2
      %v2676 = vor.u32 %v2672, %v2675
      %v2677 = vsel %vm1060, %v2667, %v2676
      %v2679 = vshrl.u32 %v2504, 16
      %v2681 = vrot.slane %v2679, 1
      %v2682 = vshll.u32 %v2504, 16
      %v2684 = vrot.slane %v2682, 2
      %v2685 = vor.u32 %v2681, %v2684
      %v2686 = vsel %vm1060, %v2676, %v2685
      %v2688 = vshrl.u32 %v2505, 16
      %v2690 = vrot.slane %v2688, 1
      %v2691 = vshll.u32 %v2505, 16
      %v2693 = vrot.slane %v2691, 2
      %v2694 = vor.u32 %v2690, %v2693
      %v2695 = vsel %vm1060, %v2685, %v2694
      %v2697 = vshrl.u32 %v2506, 16
      %v2699 = vrot.slane %v2697, 1
      %v2700 = vshll.u32 %v2506, 16
      %v2702 = vrot.slane %v2700, 2
      %v2703 = vor.u32 %v2699, %v2702
      %v2704 = vsel %vm1060, %v2694, %v2703
      %v2706 = vshrl.u32 %v2651, 16
      %v2708 = vrot.slane %v2706, 1
      %v2709 = vshll.u32 %v2651, 16
      %v2711 = vrot.slane %v2709, 2
      %v2712 = vor.u32 %v2708, %v2711
      %v2713 = vsel %vm1060, %v2703, %v2712
      %v2715 = vsel %vm500, %v2668, 0
      %v2718 = vsel %vm500, %v2677, 0
      %v2721 = vsel %vm500, %v2686, 0
      %v2724 = vsel %vm500, %v2695, 0
      %v2727 = vsel %vm500, %v2704, 0
      %v2730 = vsel %vm500, %v2713, 0
      %v2733 = vsel %vm500, %v2712, 0
      %v2736 = vsel %vm522, %v2648, 0
      %2738 = vmatprep.subr.bf16.mxu0 0
      %2739 = vmatpush1.bf16.msra.mxu0 0
      %2740 = vmatprep.subr.bf16.mxu0 0
      %2741 = vmatpush1.bf16.msra.mxu0 0
      %2742 = vmatprep.subr.bf16.mxu0 0
      %2743 = vmatpush1.bf16.msra.mxu0 0
      %2744 = vmatprep.subr.bf16.mxu0 0
      %2745 = vmatpush1.bf16.msra.mxu0 0
      %2746 = vmatprep.subr.bf16.mxu0 0
      %2747 = vmatpush1.bf16.msra.mxu0 0
      %2748 = vmatprep.subr.bf16.mxu0 0
      %2749 = vmatpush1.bf16.msra.mxu0 0
      %2750 = vmatprep.subr.bf16.mxu0 0
      %2751 = vmatpush1.bf16.msra.mxu0 0
      %2752 = vmatprep.subr.bf16.mxu0 0
      %2753 = vmatpush1.bf16.msra.mxu0 %v2736
      %2754 = vmatprep.subr.bf16.mxu0 0
      %2755 = vmatpush2.bf16.msra.mxu0 0
      %2756 = vmatprep.subr.bf16.mxu0 0
      %2757 = vmatpush2.bf16.msra.mxu0 0
      %2758 = vmatprep.subr.bf16.mxu0 0
      %2759 = vmatpush2.bf16.msra.mxu0 0
      %2760 = vmatprep.subr.bf16.mxu0 0
      %2761 = vmatpush2.bf16.msra.mxu0 0
      %2762 = vmatprep.subr.bf16.mxu0 0
      %2763 = vmatpush2.bf16.msra.mxu0 0
      %2764 = vmatprep.subr.bf16.mxu0 0
      %2765 = vmatpush2.bf16.msra.mxu0 0
      %2766 = vmatprep.subr.bf16.mxu0 0
      %2767 = vmatpush2.bf16.msra.mxu0 0
      %2768 = vmatprep.subr.bf16.mxu0 0
      %2769 = vmatpush2.bf16.msra.mxu0 0
      %2770 = vmatprep.mubr.bf16.mxu0 0
      %2771 = vmatmul.mubr.bf16.gmra.mxu0 %v2715
      %v2772 = vpop.f32.mrf.mxu0
      %v2773 = vadd.f32 0.0, %v2772
      %v2774 = vpop.f32.mrf.mxu0
      %v2775 = vpop.f32.mrf.mxu0
      %v2776 = vadd.f32 0.0, %v2775
      %v2777 = vpop.f32.mrf.mxu0
      %2778 = vmatprep.mubr.bf16.mxu0 0
      %2779 = vmatmul.mubr.bf16.gmra.mxu0 %v2718
      %v2780 = vpop.f32.mrf.mxu0
      %v2781 = vadd.f32 0.0, %v2780
      %v2782 = vpop.f32.mrf.mxu0
      %v2783 = vpop.f32.mrf.mxu0
      %v2784 = vadd.f32 0.0, %v2783
      %v2785 = vpop.f32.mrf.mxu0
      %2786 = vmatprep.mubr.bf16.mxu0 0
      %2787 = vmatmul.mubr.bf16.gmra.mxu0 %v2721
      %v2788 = vpop.f32.mrf.mxu0
      %v2789 = vadd.f32 0.0, %v2788
      %v2790 = vpop.f32.mrf.mxu0
      %v2791 = vpop.f32.mrf.mxu0
      %v2792 = vadd.f32 0.0, %v2791
      %v2793 = vpop.f32.mrf.mxu0
      %2794 = vmatprep.mubr.bf16.mxu0 0
      %2795 = vmatmul.mubr.bf16.gmra.mxu0 %v2724
      %v2796 = vpop.f32.mrf.mxu0
      %v2797 = vadd.f32 0.0, %v2796
      %v2798 = vpop.f32.mrf.mxu0
      %v2799 = vpop.f32.mrf.mxu0
      %v2800 = vadd.f32 0.0, %v2799
      %v2801 = vpop.f32.mrf.mxu0
      %2802 = vmatprep.mubr.bf16.mxu0 0
      %2803 = vmatmul.mubr.bf16.gmra.mxu0 %v2727
      %v2804 = vpop.f32.mrf.mxu0
      %v2805 = vadd.f32 0.0, %v2804
      %v2806 = vpop.f32.mrf.mxu0
      %v2807 = vpop.f32.mrf.mxu0
      %v2808 = vadd.f32 0.0, %v2807
      %v2809 = vpop.f32.mrf.mxu0
      %2810 = vmatprep.mubr.bf16.mxu0 0
      %2811 = vmatmul.mubr.bf16.gmra.mxu0 %v2730
      %v2812 = vpop.f32.mrf.mxu0
      %v2813 = vadd.f32 0.0, %v2812
      %v2814 = vpop.f32.mrf.mxu0
      %v2815 = vpop.f32.mrf.mxu0
      %v2816 = vadd.f32 0.0, %v2815
      %v2817 = vpop.f32.mrf.mxu0
      %2818 = vmatprep.mubr.bf16.mxu0 0
      %2819 = vmatmul.mubr.bf16.gmra.mxu0 %v2733
      %v2820 = vpop.f32.mrf.mxu0
      %v2821 = vadd.f32 0.0, %v2820
      %v2822 = vpop.f32.mrf.mxu0
      %v2823 = vpop.f32.mrf.mxu0
      %v2824 = vpop.f32.mrf.mxu0
      %2825 = vdwg.mxu0
      %v2826 = vadd.f32 %v2633, %v2773
      %v2827 = vadd.f32 %v2634, %v2776
      %v2828 = vadd.f32 %v2635, %v2781
      %v2829 = vadd.f32 %v2636, %v2784
      %v2830 = vadd.f32 %v2637, %v2789
      %v2831 = vadd.f32 %v2638, %v2792
      %v2832 = vadd.f32 %v2639, %v2797
      %v2833 = vadd.f32 %v2640, %v2800
      %v2834 = vadd.f32 %v2641, %v2805
      %v2835 = vadd.f32 %v2642, %v2808
      %v2836 = vadd.f32 %v2643, %v2813
      %v2837 = vadd.f32 %v2644, %v2816
      %v2838 = vadd.f32 %v2645, %v2821
      %v2839 = vld [vmem:[%s369 + $0x4] sm:$0xc]
      %s2840 = scalar_lea.vmem %s3, 28
      %v2841 = vld [vmem:[%s2840] sm:$0x3]
      %v2843 = vunpack.c.l.b16 %v2839
      %v2844 = vpack.c.b16 %v2489, %v2843
      %v2845 = vrot.slane %v2844, 2
      %v2846 = vrot.slane %v2502, 2
      %v2847 = vsel %vm1254, %v2845, %v2846
      %v2848 = vrot.slane %v2503, 2
      %v2849 = vsel %vm1254, %v2846, %v2848
      %v2850 = vrot.slane %v2504, 2
      %v2851 = vsel %vm1254, %v2848, %v2850
      %v2852 = vrot.slane %v2505, 2
      %v2853 = vsel %vm1254, %v2850, %v2852
      %v2854 = vrot.slane %v2506, 2
      %v2855 = vsel %vm1254, %v2852, %v2854
      %v2856 = vrot.slane %v2651, 2
      %v2857 = vsel %vm1254, %v2854, %v2856
      %v2859 = vsel %vm500, %v2847, 0
      %v2862 = vsel %vm500, %v2849, 0
      %v2865 = vsel %vm500, %v2851, 0
      %v2868 = vsel %vm500, %v2853, 0
      %v2871 = vsel %vm500, %v2855, 0
      %v2874 = vsel %vm500, %v2857, 0
      %v2877 = vsel %vm500, %v2856, 0
      %v2880 = vsel %vm522, %v2841, 0
      %2882 = vmatprep.subr.bf16.mxu0 0
      %2883 = vmatpush1.bf16.msra.mxu0 0
      %2884 = vmatprep.subr.bf16.mxu0 0
      %2885 = vmatpush1.bf16.msra.mxu0 0
      %2886 = vmatprep.subr.bf16.mxu0 0
      %2887 = vmatpush1.bf16.msra.mxu0 0
      %2888 = vmatprep.subr.bf16.mxu0 0
      %2889 = vmatpush1.bf16.msra.mxu0 0
      %2890 = vmatprep.subr.bf16.mxu0 0
      %2891 = vmatpush1.bf16.msra.mxu0 0
      %2892 = vmatprep.subr.bf16.mxu0 0
      %2893 = vmatpush1.bf16.msra.mxu0 0
      %2894 = vmatprep.subr.bf16.mxu0 0
      %2895 = vmatpush1.bf16.msra.mxu0 0
      %2896 = vmatprep.subr.bf16.mxu0 0
      %2897 = vmatpush1.bf16.msra.mxu0 %v2880
      %2898 = vmatprep.subr.bf16.mxu0 0
      %2899 = vmatpush2.bf16.msra.mxu0 0
      %2900 = vmatprep.subr.bf16.mxu0 0
      %2901 = vmatpush2.bf16.msra.mxu0 0
      %2902 = vmatprep.subr.bf16.mxu0 0
      %2903 = vmatpush2.bf16.msra.mxu0 0
      %2904 = vmatprep.subr.bf16.mxu0 0
      %2905 = vmatpush2.bf16.msra.mxu0 0
      %2906 = vmatprep.subr.bf16.mxu0 0
      %2907 = vmatpush2.bf16.msra.mxu0 0
      %2908 = vmatprep.subr.bf16.mxu0 0
      %2909 = vmatpush2.bf16.msra.mxu0 0
      %2910 = vmatprep.subr.bf16.mxu0 0
      %2911 = vmatpush2.bf16.msra.mxu0 0
      %2912 = vmatprep.subr.bf16.mxu0 0
      %2913 = vmatpush2.bf16.msra.mxu0 0
      %2914 = vmatprep.mubr.bf16.mxu0 0
      %2915 = vmatmul.mubr.bf16.gmra.mxu0 %v2859
      %v2916 = vpop.f32.mrf.mxu0
      %v2917 = vadd.f32 0.0, %v2916
      %v2918 = vpop.f32.mrf.mxu0
      %v2919 = vpop.f32.mrf.mxu0
      %v2920 = vadd.f32 0.0, %v2919
      %v2921 = vpop.f32.mrf.mxu0
      %2922 = vmatprep.mubr.bf16.mxu0 0
      %2923 = vmatmul.mubr.bf16.gmra.mxu0 %v2862
      %v2924 = vpop.f32.mrf.mxu0
      %v2925 = vadd.f32 0.0, %v2924
      %v2926 = vpop.f32.mrf.mxu0
      %v2927 = vpop.f32.mrf.mxu0
      %v2928 = vadd.f32 0.0, %v2927
      %v2929 = vpop.f32.mrf.mxu0
      %2930 = vmatprep.mubr.bf16.mxu0 0
      %2931 = vmatmul.mubr.bf16.gmra.mxu0 %v2865
      %v2932 = vpop.f32.mrf.mxu0
      %v2933 = vadd.f32 0.0, %v2932
      %v2934 = vpop.f32.mrf.mxu0
      %v2935 = vpop.f32.mrf.mxu0
      %v2936 = vadd.f32 0.0, %v2935
      %v2937 = vpop.f32.mrf.mxu0
      %2938 = vmatprep.mubr.bf16.mxu0 0
      %2939 = vmatmul.mubr.bf16.gmra.mxu0 %v2868
      %v2940 = vpop.f32.mrf.mxu0
      %v2941 = vadd.f32 0.0, %v2940
      %v2942 = vpop.f32.mrf.mxu0
      %v2943 = vpop.f32.mrf.mxu0
      %v2944 = vadd.f32 0.0, %v2943
      %v2945 = vpop.f32.mrf.mxu0
      %2946 = vmatprep.mubr.bf16.mxu0 0
      %2947 = vmatmul.mubr.bf16.gmra.mxu0 %v2871
      %v2948 = vpop.f32.mrf.mxu0
      %v2949 = vadd.f32 0.0, %v2948
      %v2950 = vpop.f32.mrf.mxu0
      %v2951 = vpop.f32.mrf.mxu0
      %v2952 = vadd.f32 0.0, %v2951
      %v2953 = vpop.f32.mrf.mxu0
      %2954 = vmatprep.mubr.bf16.mxu0 0
      %2955 = vmatmul.mubr.bf16.gmra.mxu0 %v2874
      %v2956 = vpop.f32.mrf.mxu0
      %v2957 = vadd.f32 0.0, %v2956
      %v2958 = vpop.f32.mrf.mxu0
      %v2959 = vpop.f32.mrf.mxu0
      %v2960 = vadd.f32 0.0, %v2959
      %v2961 = vpop.f32.mrf.mxu0
      %2962 = vmatprep.mubr.bf16.mxu0 0
      %2963 = vmatmul.mubr.bf16.gmra.mxu0 %v2877
      %v2964 = vpop.f32.mrf.mxu0
      %v2965 = vadd.f32 0.0, %v2964
      %v2966 = vpop.f32.mrf.mxu0
      %v2967 = vpop.f32.mrf.mxu0
      %v2968 = vpop.f32.mrf.mxu0
      %2969 = vdwg.mxu0
      %v2970 = vadd.f32 %v2826, %v2917
      %v2971 = vadd.f32 %v2827, %v2920
      %v2972 = vadd.f32 %v2828, %v2925
      %v2973 = vadd.f32 %v2829, %v2928
      %v2974 = vadd.f32 %v2830, %v2933
      %v2975 = vadd.f32 %v2831, %v2936
      %v2976 = vadd.f32 %v2832, %v2941
      %v2977 = vadd.f32 %v2833, %v2944
      %v2978 = vadd.f32 %v2834, %v2949
      %v2979 = vadd.f32 %v2835, %v2952
      %v2980 = vadd.f32 %v2836, %v2957
      %v2981 = vadd.f32 %v2837, %v2960
      %v2982 = vadd.f32 %v2838, %v2965
      %v2983 = vld [vmem:[%s369 + $0x8] sm:$0xc]
      %v2984 = vld [vmem:[%s369 + $0xc] sm:$0xf]
      %v2985 = vld [vmem:[%s369 + $0x10] sm:$0xf]
      %v2986 = vld [vmem:[%s369 + $0x14] sm:$0xf]
      %v2987 = vld [vmem:[%s369 + $0x18] sm:$0xf]
      %v2988 = vld [vmem:[%s369 + $0x1c] sm:$0xf]
      %v2989 = vld [vmem:[%s369 + $0x20] sm:$0xf]
      %v2990 = vld [vmem:[%s369 + $0x24] sm:$0xf]
      %v2991 = vld [vmem:[%s369 + $0x28] sm:$0xf]
      %v2992 = vld [vmem:[%s369 + $0x2c] sm:$0xf]
      %v2993 = vld [vmem:[%s369 + $0x30] sm:$0xf]
      %v2994 = vld [vmem:[%s369 + $0x34] sm:$0xf]
      %v2995 = vld [vmem:[%s369 + $0x38] sm:$0xf]
      %s2996 = scalar_lea.vmem %s3, 30
      %v2997 = vld [vmem:[%s2996] sm:$0x3]
      %v3011 = vunpack.c.l.b16 %v2983
      %v3012 = vunpack.c.l.b16 %v2984
      %v3013 = vunpack.c.l.b16 %v2985
      %v3014 = vunpack.c.l.b16 %v2986
      %v3015 = vunpack.c.l.b16 %v2987
      %v3016 = vunpack.c.l.b16 %v2988
      %v3017 = vunpack.c.l.b16 %v2989
      %v3018 = vunpack.c.l.b16 %v2990
      %v3019 = vunpack.c.l.b16 %v2991
      %v3020 = vunpack.c.l.b16 %v2992
      %v3021 = vunpack.c.l.b16 %v2993
      %v3022 = vunpack.c.l.b16 %v2994
      %v3023 = vunpack.c.l.b16 %v2995
      %v3024 = vpack.c.b16 %v3012, %v3011
      %v3025 = vpack.c.b16 %v3014, %v3013
      %v3026 = vpack.c.b16 %v3016, %v3015
      %v3027 = vpack.c.b16 %v3018, %v3017
      %v3028 = vpack.c.b16 %v3020, %v3019
      %v3029 = vpack.c.b16 %v3022, %v3021
      %v3030 = vpack.c.b16 %v3023, %v3023
      %v3031 = vrot.slane %v3024, 2
      %v3032 = vrot.slane %v3025, 2
      %v3033 = vsel %vm1254, %v3031, %v3032
      %v3034 = vrot.slane %v3026, 2
      %v3035 = vsel %vm1254, %v3032, %v3034
      %v3036 = vrot.slane %v3027, 2
      %v3037 = vsel %vm1254, %v3034, %v3036
      %v3038 = vrot.slane %v3028, 2
      %v3039 = vsel %vm1254, %v3036, %v3038
      %v3040 = vrot.slane %v3029, 2
      %v3041 = vsel %vm1254, %v3038, %v3040
      %v3042 = vrot.slane %v3030, 2
      %v3043 = vsel %vm1254, %v3040, %v3042
      %v3045 = vsel %vm500, %v3033, 0
      %v3048 = vsel %vm500, %v3035, 0
      %v3051 = vsel %vm500, %v3037, 0
      %v3054 = vsel %vm500, %v3039, 0
      %v3057 = vsel %vm500, %v3041, 0
      %v3060 = vsel %vm500, %v3043, 0
      %v3063 = vsel %vm500, %v3042, 0
      %v3066 = vsel %vm522, %v2997, 0
      %3068 = vmatprep.subr.bf16.mxu0 0
      %3069 = vmatpush1.bf16.msra.mxu0 0
      %3070 = vmatprep.subr.bf16.mxu0 0
      %3071 = vmatpush1.bf16.msra.mxu0 0
      %3072 = vmatprep.subr.bf16.mxu0 0
      %3073 = vmatpush1.bf16.msra.mxu0 0
      %3074 = vmatprep.subr.bf16.mxu0 0
      %3075 = vmatpush1.bf16.msra.mxu0 0
      %3076 = vmatprep.subr.bf16.mxu0 0
      %3077 = vmatpush1.bf16.msra.mxu0 0
      %3078 = vmatprep.subr.bf16.mxu0 0
      %3079 = vmatpush1.bf16.msra.mxu0 0
      %3080 = vmatprep.subr.bf16.mxu0 0
      %3081 = vmatpush1.bf16.msra.mxu0 0
      %3082 = vmatprep.subr.bf16.mxu0 0
      %3083 = vmatpush1.bf16.msra.mxu0 %v3066
      %3084 = vmatprep.subr.bf16.mxu0 0
      %3085 = vmatpush2.bf16.msra.mxu0 0
      %3086 = vmatprep.subr.bf16.mxu0 0
      %3087 = vmatpush2.bf16.msra.mxu0 0
      %3088 = vmatprep.subr.bf16.mxu0 0
      %3089 = vmatpush2.bf16.msra.mxu0 0
      %3090 = vmatprep.subr.bf16.mxu0 0
      %3091 = vmatpush2.bf16.msra.mxu0 0
      %3092 = vmatprep.subr.bf16.mxu0 0
      %3093 = vmatpush2.bf16.msra.mxu0 0
      %3094 = vmatprep.subr.bf16.mxu0 0
      %3095 = vmatpush2.bf16.msra.mxu0 0
      %3096 = vmatprep.subr.bf16.mxu0 0
      %3097 = vmatpush2.bf16.msra.mxu0 0
      %3098 = vmatprep.subr.bf16.mxu0 0
      %3099 = vmatpush2.bf16.msra.mxu0 0
      %3100 = vmatprep.mubr.bf16.mxu0 0
      %3101 = vmatmul.mubr.bf16.gmra.mxu0 %v3045
      %v3102 = vpop.f32.mrf.mxu0
      %v3103 = vadd.f32 0.0, %v3102
      %v3104 = vpop.f32.mrf.mxu0
      %v3105 = vpop.f32.mrf.mxu0
      %v3106 = vadd.f32 0.0, %v3105
      %v3107 = vpop.f32.mrf.mxu0
      %3108 = vmatprep.mubr.bf16.mxu0 0
      %3109 = vmatmul.mubr.bf16.gmra.mxu0 %v3048
      %v3110 = vpop.f32.mrf.mxu0
      %v3111 = vadd.f32 0.0, %v3110
      %v3112 = vpop.f32.mrf.mxu0
      %v3113 = vpop.f32.mrf.mxu0
      %v3114 = vadd.f32 0.0, %v3113
      %v3115 = vpop.f32.mrf.mxu0
      %3116 = vmatprep.mubr.bf16.mxu0 0
      %3117 = vmatmul.mubr.bf16.gmra.mxu0 %v3051
      %v3118 = vpop.f32.mrf.mxu0
      %v3119 = vadd.f32 0.0, %v3118
      %v3120 = vpop.f32.mrf.mxu0
      %v3121 = vpop.f32.mrf.mxu0
      %v3122 = vadd.f32 0.0, %v3121
      %v3123 = vpop.f32.mrf.mxu0
      %3124 = vmatprep.mubr.bf16.mxu0 0
      %3125 = vmatmul.mubr.bf16.gmra.mxu0 %v3054
      %v3126 = vpop.f32.mrf.mxu0
      %v3127 = vadd.f32 0.0, %v3126
      %v3128 = vpop.f32.mrf.mxu0
      %v3129 = vpop.f32.mrf.mxu0
      %v3130 = vadd.f32 0.0, %v3129
      %v3131 = vpop.f32.mrf.mxu0
      %3132 = vmatprep.mubr.bf16.mxu0 0
      %3133 = vmatmul.mubr.bf16.gmra.mxu0 %v3057
      %v3134 = vpop.f32.mrf.mxu0
      %v3135 = vadd.f32 0.0, %v3134
      %v3136 = vpop.f32.mrf.mxu0
      %v3137 = vpop.f32.mrf.mxu0
      %v3138 = vadd.f32 0.0, %v3137
      %v3139 = vpop.f32.mrf.mxu0
      %3140 = vmatprep.mubr.bf16.mxu0 0
      %3141 = vmatmul.mubr.bf16.gmra.mxu0 %v3060
      %v3142 = vpop.f32.mrf.mxu0
      %v3143 = vadd.f32 0.0, %v3142
      %v3144 = vpop.f32.mrf.mxu0
      %v3145 = vpop.f32.mrf.mxu0
      %v3146 = vadd.f32 0.0, %v3145
      %v3147 = vpop.f32.mrf.mxu0
      %3148 = vmatprep.mubr.bf16.mxu0 0
      %3149 = vmatmul.mubr.bf16.gmra.mxu0 %v3063
      %v3150 = vpop.f32.mrf.mxu0
      %v3151 = vadd.f32 0.0, %v3150
      %v3152 = vpop.f32.mrf.mxu0
      %v3153 = vpop.f32.mrf.mxu0
      %v3154 = vpop.f32.mrf.mxu0
      %3155 = vdwg.mxu0
      %v3156 = vadd.f32 %v2970, %v3103
      %v3157 = vadd.f32 %v2971, %v3106
      %v3158 = vadd.f32 %v2972, %v3111
      %v3159 = vadd.f32 %v2973, %v3114
      %v3160 = vadd.f32 %v2974, %v3119
      %v3161 = vadd.f32 %v2975, %v3122
      %v3162 = vadd.f32 %v2976, %v3127
      %v3163 = vadd.f32 %v2977, %v3130
      %v3164 = vadd.f32 %v2978, %v3135
      %v3165 = vadd.f32 %v2979, %v3138
      %v3166 = vadd.f32 %v2980, %v3143
      %v3167 = vadd.f32 %v2981, %v3146
      %v3168 = vadd.f32 %v2982, %v3151
      %v3169 = vld [vmem:[%s369 + $0x8] sm:$0xc]
      %v3170 = vld [vmem:[%s369 + $0xc] sm:$0xf]
      %v3171 = vld [vmem:[%s369 + $0x10] sm:$0xf]
      %v3172 = vld [vmem:[%s369 + $0x14] sm:$0xf]
      %v3173 = vld [vmem:[%s369 + $0x18] sm:$0xf]
      %v3174 = vld [vmem:[%s369 + $0x1c] sm:$0xf]
      %v3175 = vld [vmem:[%s369 + $0x20] sm:$0xf]
      %v3176 = vld [vmem:[%s369 + $0x24] sm:$0xf]
      %v3177 = vld [vmem:[%s369 + $0x28] sm:$0xf]
      %v3178 = vld [vmem:[%s369 + $0x2c] sm:$0xf]
      %v3179 = vld [vmem:[%s369 + $0x30] sm:$0xf]
      %v3180 = vld [vmem:[%s369 + $0x34] sm:$0xf]
      %v3181 = vld [vmem:[%s369 + $0x38] sm:$0xf]
      %v3182 = vld [vmem:[%s369 + $0x3c] sm:$0x1]
      %s3183 = scalar_lea.vmem %s3, 32
      %v3184 = vld [vmem:[%s3183] sm:$0x3]
      %v3199 = vunpack.c.l.b16 %v3169
      %v3200 = vunpack.c.l.b16 %v3170
      %v3201 = vunpack.c.l.b16 %v3171
      %v3202 = vunpack.c.l.b16 %v3172
      %v3203 = vunpack.c.l.b16 %v3173
      %v3204 = vunpack.c.l.b16 %v3174
      %v3205 = vunpack.c.l.b16 %v3175
      %v3206 = vunpack.c.l.b16 %v3176
      %v3207 = vunpack.c.l.b16 %v3177
      %v3208 = vunpack.c.l.b16 %v3178
      %v3209 = vunpack.c.l.b16 %v3179
      %v3210 = vunpack.c.l.b16 %v3180
      %v3211 = vunpack.c.l.b16 %v3181
      %v3212 = vunpack.c.l.b16 %v3182
      %v3213 = vpack.c.b16 %v3200, %v3199
      %v3214 = vpack.c.b16 %v3202, %v3201
      %v3215 = vpack.c.b16 %v3204, %v3203
      %v3216 = vpack.c.b16 %v3206, %v3205
      %v3217 = vpack.c.b16 %v3208, %v3207
      %v3218 = vpack.c.b16 %v3210, %v3209
      %v3219 = vpack.c.b16 %v3212, %v3211
      %v3221 = vshrl.u32 %v3213, 16
      %v3223 = vrot.slane %v3221, 2
      %v3224 = vshll.u32 %v3213, 16
      %v3226 = vrot.slane %v3224, 3
      %v3227 = vor.u32 %v3223, %v3226
      %v3229 = vshrl.u32 %v3214, 16
      %v3231 = vrot.slane %v3229, 2
      %v3232 = vshll.u32 %v3214, 16
      %v3234 = vrot.slane %v3232, 3
      %v3235 = vor.u32 %v3231, %v3234
      %v3236 = vsel %vm1630, %v3227, %v3235
      %v3238 = vshrl.u32 %v3215, 16
      %v3240 = vrot.slane %v3238, 2
      %v3241 = vshll.u32 %v3215, 16
      %v3243 = vrot.slane %v3241, 3
      %v3244 = vor.u32 %v3240, %v3243
      %v3245 = vsel %vm1630, %v3235, %v3244
      %v3247 = vshrl.u32 %v3216, 16
      %v3249 = vrot.slane %v3247, 2
      %v3250 = vshll.u32 %v3216, 16
      %v3252 = vrot.slane %v3250, 3
      %v3253 = vor.u32 %v3249, %v3252
      %v3254 = vsel %vm1630, %v3244, %v3253
      %v3256 = vshrl.u32 %v3217, 16
      %v3258 = vrot.slane %v3256, 2
      %v3259 = vshll.u32 %v3217, 16
      %v3261 = vrot.slane %v3259, 3
      %v3262 = vor.u32 %v3258, %v3261
      %v3263 = vsel %vm1630, %v3253, %v3262
      %v3265 = vshrl.u32 %v3218, 16
      %v3267 = vrot.slane %v3265, 2
      %v3268 = vshll.u32 %v3218, 16
      %v3270 = vrot.slane %v3268, 3
      %v3271 = vor.u32 %v3267, %v3270
      %v3272 = vsel %vm1630, %v3262, %v3271
      %v3274 = vshrl.u32 %v3219, 16
      %v3276 = vrot.slane %v3274, 2
      %v3277 = vshll.u32 %v3219, 16
      %v3279 = vrot.slane %v3277, 3
      %v3280 = vor.u32 %v3276, %v3279
      %v3281 = vsel %vm1630, %v3271, %v3280
      %v3283 = vsel %vm500, %v3236, 0
      %v3286 = vsel %vm500, %v3245, 0
      %v3289 = vsel %vm500, %v3254, 0
      %v3292 = vsel %vm500, %v3263, 0
      %v3295 = vsel %vm500, %v3272, 0
      %v3298 = vsel %vm500, %v3281, 0
      %v3301 = vsel %vm500, %v3280, 0
      %v3304 = vsel %vm522, %v3184, 0
      %3306 = vmatprep.subr.bf16.mxu0 0
      %3307 = vmatpush1.bf16.msra.mxu0 0
      %3308 = vmatprep.subr.bf16.mxu0 0
      %3309 = vmatpush1.bf16.msra.mxu0 0
      %3310 = vmatprep.subr.bf16.mxu0 0
      %3311 = vmatpush1.bf16.msra.mxu0 0
      %3312 = vmatprep.subr.bf16.mxu0 0
      %3313 = vmatpush1.bf16.msra.mxu0 0
      %3314 = vmatprep.subr.bf16.mxu0 0
      %3315 = vmatpush1.bf16.msra.mxu0 0
      %3316 = vmatprep.subr.bf16.mxu0 0
      %3317 = vmatpush1.bf16.msra.mxu0 0
      %3318 = vmatprep.subr.bf16.mxu0 0
      %3319 = vmatpush1.bf16.msra.mxu0 0
      %3320 = vmatprep.subr.bf16.mxu0 0
      %3321 = vmatpush1.bf16.msra.mxu0 %v3304
      %3322 = vmatprep.subr.bf16.mxu0 0
      %3323 = vmatpush2.bf16.msra.mxu0 0
      %3324 = vmatprep.subr.bf16.mxu0 0
      %3325 = vmatpush2.bf16.msra.mxu0 0
      %3326 = vmatprep.subr.bf16.mxu0 0
      %3327 = vmatpush2.bf16.msra.mxu0 0
      %3328 = vmatprep.subr.bf16.mxu0 0
      %3329 = vmatpush2.bf16.msra.mxu0 0
      %3330 = vmatprep.subr.bf16.mxu0 0
      %3331 = vmatpush2.bf16.msra.mxu0 0
      %3332 = vmatprep.subr.bf16.mxu0 0
      %3333 = vmatpush2.bf16.msra.mxu0 0
      %3334 = vmatprep.subr.bf16.mxu0 0
      %3335 = vmatpush2.bf16.msra.mxu0 0
      %3336 = vmatprep.subr.bf16.mxu0 0
      %3337 = vmatpush2.bf16.msra.mxu0 0
      %3338 = vmatprep.mubr.bf16.mxu0 0
      %3339 = vmatmul.mubr.bf16.gmra.mxu0 %v3283
      %v3340 = vpop.f32.mrf.mxu0
      %v3341 = vadd.f32 0.0, %v3340
      %v3342 = vpop.f32.mrf.mxu0
      %v3343 = vpop.f32.mrf.mxu0
      %v3344 = vadd.f32 0.0, %v3343
      %v3345 = vpop.f32.mrf.mxu0
      %3346 = vmatprep.mubr.bf16.mxu0 0
      %3347 = vmatmul.mubr.bf16.gmra.mxu0 %v3286
      %v3348 = vpop.f32.mrf.mxu0
      %v3349 = vadd.f32 0.0, %v3348
      %v3350 = vpop.f32.mrf.mxu0
      %v3351 = vpop.f32.mrf.mxu0
      %v3352 = vadd.f32 0.0, %v3351
      %v3353 = vpop.f32.mrf.mxu0
      %3354 = vmatprep.mubr.bf16.mxu0 0
      %3355 = vmatmul.mubr.bf16.gmra.mxu0 %v3289
      %v3356 = vpop.f32.mrf.mxu0
      %v3357 = vadd.f32 0.0, %v3356
      %v3358 = vpop.f32.mrf.mxu0
      %v3359 = vpop.f32.mrf.mxu0
      %v3360 = vadd.f32 0.0, %v3359
      %v3361 = vpop.f32.mrf.mxu0
      %3362 = vmatprep.mubr.bf16.mxu0 0
      %3363 = vmatmul.mubr.bf16.gmra.mxu0 %v3292
      %v3364 = vpop.f32.mrf.mxu0
      %v3365 = vadd.f32 0.0, %v3364
      %v3366 = vpop.f32.mrf.mxu0
      %v3367 = vpop.f32.mrf.mxu0
      %v3368 = vadd.f32 0.0, %v3367
      %v3369 = vpop.f32.mrf.mxu0
      %3370 = vmatprep.mubr.bf16.mxu0 0
      %3371 = vmatmul.mubr.bf16.gmra.mxu0 %v3295
      %v3372 = vpop.f32.mrf.mxu0
      %v3373 = vadd.f32 0.0, %v3372
      %v3374 = vpop.f32.mrf.mxu0
      %v3375 = vpop.f32.mrf.mxu0
      %v3376 = vadd.f32 0.0, %v3375
      %v3377 = vpop.f32.mrf.mxu0
      %3378 = vmatprep.mubr.bf16.mxu0 0
      %3379 = vmatmul.mubr.bf16.gmra.mxu0 %v3298
      %v3380 = vpop.f32.mrf.mxu0
      %v3381 = vadd.f32 0.0, %v3380
      %v3382 = vpop.f32.mrf.mxu0
      %v3383 = vpop.f32.mrf.mxu0
      %v3384 = vadd.f32 0.0, %v3383
      %v3385 = vpop.f32.mrf.mxu0
      %3386 = vmatprep.mubr.bf16.mxu0 0
      %3387 = vmatmul.mubr.bf16.gmra.mxu0 %v3301
      %v3388 = vpop.f32.mrf.mxu0
      %v3389 = vadd.f32 0.0, %v3388
      %v3390 = vpop.f32.mrf.mxu0
      %v3391 = vpop.f32.mrf.mxu0
      %v3392 = vpop.f32.mrf.mxu0
      %3393 = vdwg.mxu0
      %v3394 = vadd.f32 %v3156, %v3341
      %v3395 = vadd.f32 %v3157, %v3344
      %v3396 = vadd.f32 %v3158, %v3349
      %v3397 = vadd.f32 %v3159, %v3352
      %v3398 = vadd.f32 %v3160, %v3357
      %v3399 = vadd.f32 %v3161, %v3360
      %v3400 = vadd.f32 %v3162, %v3365
      %v3401 = vadd.f32 %v3163, %v3368
      %v3402 = vadd.f32 %v3164, %v3373
      %v3403 = vadd.f32 %v3165, %v3376
      %v3404 = vadd.f32 %v3166, %v3381
      %v3405 = vadd.f32 %v3167, %v3384
      %v3406 = vadd.f32 %v3168, %v3389
      %v3407 = vld [vmem:[%s369 + $0x8] sm:$0x8]
      %s3408 = scalar_lea.vmem %s3, 34
      %v3409 = vld [vmem:[%s3408] sm:$0x3]
      %v3411 = vunpack.c.l.b16 %v3407
      %v3412 = vpack.c.b16 %v3200, %v3411
      %v3413 = vrot.slane %v3412, 3
      %v3414 = vrot.slane %v3214, 3
      %v3415 = vsel %vm1824, %v3413, %v3414
      %v3416 = vrot.slane %v3215, 3
      %v3417 = vsel %vm1824, %v3414, %v3416
      %v3418 = vrot.slane %v3216, 3
      %v3419 = vsel %vm1824, %v3416, %v3418
      %v3420 = vrot.slane %v3217, 3
      %v3421 = vsel %vm1824, %v3418, %v3420
      %v3422 = vrot.slane %v3218, 3
      %v3423 = vsel %vm1824, %v3420, %v3422
      %v3424 = vrot.slane %v3219, 3
      %v3425 = vsel %vm1824, %v3422, %v3424
      %v3427 = vsel %vm500, %v3415, 0
      %v3430 = vsel %vm500, %v3417, 0
      %v3433 = vsel %vm500, %v3419, 0
      %v3436 = vsel %vm500, %v3421, 0
      %v3439 = vsel %vm500, %v3423, 0
      %v3442 = vsel %vm500, %v3425, 0
      %v3445 = vsel %vm500, %v3424, 0
      %v3448 = vsel %vm522, %v3409, 0
      %3450 = vmatprep.subr.bf16.mxu0 0
      %3451 = vmatpush1.bf16.msra.mxu0 0
      %3452 = vmatprep.subr.bf16.mxu0 0
      %3453 = vmatpush1.bf16.msra.mxu0 0
      %3454 = vmatprep.subr.bf16.mxu0 0
      %3455 = vmatpush1.bf16.msra.mxu0 0
      %3456 = vmatprep.subr.bf16.mxu0 0
      %3457 = vmatpush1.bf16.msra.mxu0 0
      %3458 = vmatprep.subr.bf16.mxu0 0
      %3459 = vmatpush1.bf16.msra.mxu0 0
      %3460 = vmatprep.subr.bf16.mxu0 0
      %3461 = vmatpush1.bf16.msra.mxu0 0
      %3462 = vmatprep.subr.bf16.mxu0 0
      %3463 = vmatpush1.bf16.msra.mxu0 0
      %3464 = vmatprep.subr.bf16.mxu0 0
      %3465 = vmatpush1.bf16.msra.mxu0 %v3448
      %3466 = vmatprep.subr.bf16.mxu0 0
      %3467 = vmatpush2.bf16.msra.mxu0 0
      %3468 = vmatprep.subr.bf16.mxu0 0
      %3469 = vmatpush2.bf16.msra.mxu0 0
      %3470 = vmatprep.subr.bf16.mxu0 0
      %3471 = vmatpush2.bf16.msra.mxu0 0
      %3472 = vmatprep.subr.bf16.mxu0 0
      %3473 = vmatpush2.bf16.msra.mxu0 0
      %3474 = vmatprep.subr.bf16.mxu0 0
      %3475 = vmatpush2.bf16.msra.mxu0 0
      %3476 = vmatprep.subr.bf16.mxu0 0
      %3477 = vmatpush2.bf16.msra.mxu0 0
      %3478 = vmatprep.subr.bf16.mxu0 0
      %3479 = vmatpush2.bf16.msra.mxu0 0
      %3480 = vmatprep.subr.bf16.mxu0 0
      %3481 = vmatpush2.bf16.msra.mxu0 0
      %3482 = vmatprep.mubr.bf16.mxu0 0
      %3483 = vmatmul.mubr.bf16.gmra.mxu0 %v3427
      %v3484 = vpop.f32.mrf.mxu0
      %v3485 = vadd.f32 0.0, %v3484
      %v3486 = vpop.f32.mrf.mxu0
      %v3487 = vpop.f32.mrf.mxu0
      %v3488 = vadd.f32 0.0, %v3487
      %v3489 = vpop.f32.mrf.mxu0
      %3490 = vmatprep.mubr.bf16.mxu0 0
      %3491 = vmatmul.mubr.bf16.gmra.mxu0 %v3430
      %v3492 = vpop.f32.mrf.mxu0
      %v3493 = vadd.f32 0.0, %v3492
      %v3494 = vpop.f32.mrf.mxu0
      %v3495 = vpop.f32.mrf.mxu0
      %v3496 = vadd.f32 0.0, %v3495
      %v3497 = vpop.f32.mrf.mxu0
      %3498 = vmatprep.mubr.bf16.mxu0 0
      %3499 = vmatmul.mubr.bf16.gmra.mxu0 %v3433
      %v3500 = vpop.f32.mrf.mxu0
      %v3501 = vadd.f32 0.0, %v3500
      %v3502 = vpop.f32.mrf.mxu0
      %v3503 = vpop.f32.mrf.mxu0
      %v3504 = vadd.f32 0.0, %v3503
      %v3505 = vpop.f32.mrf.mxu0
      %3506 = vmatprep.mubr.bf16.mxu0 0
      %3507 = vmatmul.mubr.bf16.gmra.mxu0 %v3436
      %v3508 = vpop.f32.mrf.mxu0
      %v3509 = vadd.f32 0.0, %v3508
      %v3510 = vpop.f32.mrf.mxu0
      %v3511 = vpop.f32.mrf.mxu0
      %v3512 = vadd.f32 0.0, %v3511
      %v3513 = vpop.f32.mrf.mxu0
      %3514 = vmatprep.mubr.bf16.mxu0 0
      %3515 = vmatmul.mubr.bf16.gmra.mxu0 %v3439
      %v3516 = vpop.f32.mrf.mxu0
      %v3517 = vadd.f32 0.0, %v3516
      %v3518 = vpop.f32.mrf.mxu0
      %v3519 = vpop.f32.mrf.mxu0
      %v3520 = vadd.f32 0.0, %v3519
      %v3521 = vpop.f32.mrf.mxu0
      %3522 = vmatprep.mubr.bf16.mxu0 0
      %3523 = vmatmul.mubr.bf16.gmra.mxu0 %v3442
      %v3524 = vpop.f32.mrf.mxu0
      %v3525 = vadd.f32 0.0, %v3524
      %v3526 = vpop.f32.mrf.mxu0
      %v3527 = vpop.f32.mrf.mxu0
      %v3528 = vadd.f32 0.0, %v3527
      %v3529 = vpop.f32.mrf.mxu0
      %3530 = vmatprep.mubr.bf16.mxu0 0
      %3531 = vmatmul.mubr.bf16.gmra.mxu0 %v3445
      %v3532 = vpop.f32.mrf.mxu0
      %v3533 = vadd.f32 0.0, %v3532
      %v3534 = vpop.f32.mrf.mxu0
      %v3535 = vpop.f32.mrf.mxu0
      %v3536 = vpop.f32.mrf.mxu0
      %3537 = vdwg.mxu0
      %v3538 = vadd.f32 %v3394, %v3485
      %v3539 = vadd.f32 %v3395, %v3488
      %v3540 = vadd.f32 %v3396, %v3493
      %v3541 = vadd.f32 %v3397, %v3496
      %v3542 = vadd.f32 %v3398, %v3501
      %v3543 = vadd.f32 %v3399, %v3504
      %v3544 = vadd.f32 %v3400, %v3509
      %v3545 = vadd.f32 %v3401, %v3512
      %v3546 = vadd.f32 %v3402, %v3517
      %v3547 = vadd.f32 %v3403, %v3520
      %v3548 = vadd.f32 %v3404, %v3525
      %v3549 = vadd.f32 %v3405, %v3528
      %v3550 = vadd.f32 %v3406, %v3533
      %v3551 = vld [vmem:[%s380] sm:$0xf]
      %v3552 = vld [vmem:[%s380 + $0x4] sm:$0xf]
      %v3553 = vld [vmem:[%s380 + $0x8] sm:$0xf]
      %v3554 = vld [vmem:[%s380 + $0xc] sm:$0xf]
      %v3555 = vld [vmem:[%s380 + $0x10] sm:$0xf]
      %v3556 = vld [vmem:[%s380 + $0x14] sm:$0xf]
      %v3557 = vld [vmem:[%s380 + $0x18] sm:$0xf]
      %v3558 = vld [vmem:[%s380 + $0x1c] sm:$0xf]
      %v3559 = vld [vmem:[%s380 + $0x20] sm:$0xf]
      %v3560 = vld [vmem:[%s380 + $0x24] sm:$0xf]
      %v3561 = vld [vmem:[%s380 + $0x28] sm:$0xf]
      %v3562 = vld [vmem:[%s380 + $0x2c] sm:$0xf]
      %v3563 = vld [vmem:[%s380 + $0x30] sm:$0x3]
      %s3564 = scalar_lea.vmem %s3, 36
      %v3565 = vld [vmem:[%s3564] sm:$0x3]
      %v3579 = vunpack.c.l.b16 %v3551
      %v3580 = vunpack.c.l.b16 %v3552
      %v3581 = vunpack.c.l.b16 %v3553
      %v3582 = vunpack.c.l.b16 %v3554
      %v3583 = vunpack.c.l.b16 %v3555
      %v3584 = vunpack.c.l.b16 %v3556
      %v3585 = vunpack.c.l.b16 %v3557
      %v3586 = vunpack.c.l.b16 %v3558
      %v3587 = vunpack.c.l.b16 %v3559
      %v3588 = vunpack.c.l.b16 %v3560
      %v3589 = vunpack.c.l.b16 %v3561
      %v3590 = vunpack.c.l.b16 %v3562
      %v3591 = vunpack.c.l.b16 %v3563
      %v3592 = vpack.c.b16 %v3580, %v3579
      %v3593 = vpack.c.b16 %v3582, %v3581
      %v3594 = vpack.c.b16 %v3584, %v3583
      %v3595 = vpack.c.b16 %v3586, %v3585
      %v3596 = vpack.c.b16 %v3588, %v3587
      %v3597 = vpack.c.b16 %v3590, %v3589
      %v3598 = vpack.c.b16 %v3591, %v3591
      %v3600 = vsel %vm500, %v3592, 0
      %v3603 = vsel %vm500, %v3593, 0
      %v3606 = vsel %vm500, %v3594, 0
      %v3609 = vsel %vm500, %v3595, 0
      %v3612 = vsel %vm500, %v3596, 0
      %v3615 = vsel %vm500, %v3597, 0
      %v3618 = vsel %vm500, %v3598, 0
      %v3621 = vsel %vm522, %v3565, 0
      %3623 = vmatprep.subr.bf16.mxu0 0
      %3624 = vmatpush1.bf16.msra.mxu0 0
      %3625 = vmatprep.subr.bf16.mxu0 0
      %3626 = vmatpush1.bf16.msra.mxu0 0
      %3627 = vmatprep.subr.bf16.mxu0 0
      %3628 = vmatpush1.bf16.msra.mxu0 0
      %3629 = vmatprep.subr.bf16.mxu0 0
      %3630 = vmatpush1.bf16.msra.mxu0 0
      %3631 = vmatprep.subr.bf16.mxu0 0
      %3632 = vmatpush1.bf16.msra.mxu0 0
      %3633 = vmatprep.subr.bf16.mxu0 0
      %3634 = vmatpush1.bf16.msra.mxu0 0
      %3635 = vmatprep.subr.bf16.mxu0 0
      %3636 = vmatpush1.bf16.msra.mxu0 0
      %3637 = vmatprep.subr.bf16.mxu0 0
      %3638 = vmatpush1.bf16.msra.mxu0 %v3621
      %3639 = vmatprep.subr.bf16.mxu0 0
      %3640 = vmatpush2.bf16.msra.mxu0 0
      %3641 = vmatprep.subr.bf16.mxu0 0
      %3642 = vmatpush2.bf16.msra.mxu0 0
      %3643 = vmatprep.subr.bf16.mxu0 0
      %3644 = vmatpush2.bf16.msra.mxu0 0
      %3645 = vmatprep.subr.bf16.mxu0 0
      %3646 = vmatpush2.bf16.msra.mxu0 0
      %3647 = vmatprep.subr.bf16.mxu0 0
      %3648 = vmatpush2.bf16.msra.mxu0 0
      %3649 = vmatprep.subr.bf16.mxu0 0
      %3650 = vmatpush2.bf16.msra.mxu0 0
      %3651 = vmatprep.subr.bf16.mxu0 0
      %3652 = vmatpush2.bf16.msra.mxu0 0
      %3653 = vmatprep.subr.bf16.mxu0 0
      %3654 = vmatpush2.bf16.msra.mxu0 0
      %3655 = vmatprep.mubr.bf16.mxu0 0
      %3656 = vmatmul.mubr.bf16.gmra.mxu0 %v3600
      %v3657 = vpop.f32.mrf.mxu0
      %v3658 = vadd.f32 0.0, %v3657
      %v3659 = vpop.f32.mrf.mxu0
      %v3660 = vpop.f32.mrf.mxu0
      %v3661 = vadd.f32 0.0, %v3660
      %v3662 = vpop.f32.mrf.mxu0
      %3663 = vmatprep.mubr.bf16.mxu0 0
      %3664 = vmatmul.mubr.bf16.gmra.mxu0 %v3603
      %v3665 = vpop.f32.mrf.mxu0
      %v3666 = vadd.f32 0.0, %v3665
      %v3667 = vpop.f32.mrf.mxu0
      %v3668 = vpop.f32.mrf.mxu0
      %v3669 = vadd.f32 0.0, %v3668
      %v3670 = vpop.f32.mrf.mxu0
      %3671 = vmatprep.mubr.bf16.mxu0 0
      %3672 = vmatmul.mubr.bf16.gmra.mxu0 %v3606
      %v3673 = vpop.f32.mrf.mxu0
      %v3674 = vadd.f32 0.0, %v3673
      %v3675 = vpop.f32.mrf.mxu0
      %v3676 = vpop.f32.mrf.mxu0
      %v3677 = vadd.f32 0.0, %v3676
      %v3678 = vpop.f32.mrf.mxu0
      %3679 = vmatprep.mubr.bf16.mxu0 0
      %3680 = vmatmul.mubr.bf16.gmra.mxu0 %v3609
      %v3681 = vpop.f32.mrf.mxu0
      %v3682 = vadd.f32 0.0, %v3681
      %v3683 = vpop.f32.mrf.mxu0
      %v3684 = vpop.f32.mrf.mxu0
      %v3685 = vadd.f32 0.0, %v3684
      %v3686 = vpop.f32.mrf.mxu0
      %3687 = vmatprep.mubr.bf16.mxu0 0
      %3688 = vmatmul.mubr.bf16.gmra.mxu0 %v3612
      %v3689 = vpop.f32.mrf.mxu0
      %v3690 = vadd.f32 0.0, %v3689
      %v3691 = vpop.f32.mrf.mxu0
      %v3692 = vpop.f32.mrf.mxu0
      %v3693 = vadd.f32 0.0, %v3692
      %v3694 = vpop.f32.mrf.mxu0
      %3695 = vmatprep.mubr.bf16.mxu0 0
      %3696 = vmatmul.mubr.bf16.gmra.mxu0 %v3615
      %v3697 = vpop.f32.mrf.mxu0
      %v3698 = vadd.f32 0.0, %v3697
      %v3699 = vpop.f32.mrf.mxu0
      %v3700 = vpop.f32.mrf.mxu0
      %v3701 = vadd.f32 0.0, %v3700
      %v3702 = vpop.f32.mrf.mxu0
      %3703 = vmatprep.mubr.bf16.mxu0 0
      %3704 = vmatmul.mubr.bf16.gmra.mxu0 %v3618
      %v3705 = vpop.f32.mrf.mxu0
      %v3706 = vadd.f32 0.0, %v3705
      %v3707 = vpop.f32.mrf.mxu0
      %v3708 = vpop.f32.mrf.mxu0
      %v3709 = vpop.f32.mrf.mxu0
      %3710 = vdwg.mxu0
      %v3711 = vadd.f32 %v3538, %v3658
      %v3712 = vadd.f32 %v3539, %v3661
      %v3713 = vadd.f32 %v3540, %v3666
      %v3714 = vadd.f32 %v3541, %v3669
      %v3715 = vadd.f32 %v3542, %v3674
      %v3716 = vadd.f32 %v3543, %v3677
      %v3717 = vadd.f32 %v3544, %v3682
      %v3718 = vadd.f32 %v3545, %v3685
      %v3719 = vadd.f32 %v3546, %v3690
      %v3720 = vadd.f32 %v3547, %v3693
      %v3721 = vadd.f32 %v3548, %v3698
      %v3722 = vadd.f32 %v3549, %v3701
      %v3723 = vadd.f32 %v3550, %v3706
      %v3724 = vld [vmem:[%s380 + $0x30] sm:$0x7]
      %s3725 = scalar_lea.vmem %s3, 38
      %v3726 = vld [vmem:[%s3725] sm:$0x3]
      %v3728 = vunpack.c.l.b16 %v3724
      %v3729 = vpack.c.b16 %v3728, %v3728
      %v3730 = vshrl.u32 %v3592, 16
      %v3732 = vshll.u32 %v3592, 16
      %v3734 = vrot.slane %v3732, 1
      %v3735 = vor.u32 %v3730, %v3734
      %v3736 = vshll.u32 %v3593, 16
      %v3738 = vrot.slane %v3736, 1
      %v3739 = vsel %vm444, %v3735, %v3738
      %v3740 = vshrl.u32 %v3593, 16
      %v3742 = vor.u32 %v3740, %v3738
      %v3743 = vshll.u32 %v3594, 16
      %v3745 = vrot.slane %v3743, 1
      %v3746 = vsel %vm444, %v3742, %v3745
      %v3747 = vshrl.u32 %v3594, 16
      %v3749 = vor.u32 %v3747, %v3745
      %v3750 = vshll.u32 %v3595, 16
      %v3752 = vrot.slane %v3750, 1
      %v3753 = vsel %vm444, %v3749, %v3752
      %v3754 = vshrl.u32 %v3595, 16
      %v3756 = vor.u32 %v3754, %v3752
      %v3757 = vshll.u32 %v3596, 16
      %v3759 = vrot.slane %v3757, 1
      %v3760 = vsel %vm444, %v3756, %v3759
      %v3761 = vshrl.u32 %v3596, 16
      %v3763 = vor.u32 %v3761, %v3759
      %v3764 = vshll.u32 %v3597, 16
      %v3766 = vrot.slane %v3764, 1
      %v3767 = vsel %vm444, %v3763, %v3766
      %v3768 = vshrl.u32 %v3597, 16
      %v3770 = vor.u32 %v3768, %v3766
      %v3772 = vshll.u32 %v3729, 16
      %v3774 = vrot.slane %v3772, 1
      %v3775 = vsel %vm444, %v3770, %v3774
      %v3776 = vshrl.u32 %v3729, 16
      %v3778 = vor.u32 %v3776, %v3774
      %v3780 = vsel %vm500, %v3739, 0
      %v3783 = vsel %vm500, %v3746, 0
      %v3786 = vsel %vm500, %v3753, 0
      %v3789 = vsel %vm500, %v3760, 0
      %v3792 = vsel %vm500, %v3767, 0
      %v3795 = vsel %vm500, %v3775, 0
      %v3798 = vsel %vm500, %v3778, 0
      %v3801 = vsel %vm522, %v3726, 0
      %3803 = vmatprep.subr.bf16.mxu0 0
      %3804 = vmatpush1.bf16.msra.mxu0 0
      %3805 = vmatprep.subr.bf16.mxu0 0
      %3806 = vmatpush1.bf16.msra.mxu0 0
      %3807 = vmatprep.subr.bf16.mxu0 0
      %3808 = vmatpush1.bf16.msra.mxu0 0
      %3809 = vmatprep.subr.bf16.mxu0 0
      %3810 = vmatpush1.bf16.msra.mxu0 0
      %3811 = vmatprep.subr.bf16.mxu0 0
      %3812 = vmatpush1.bf16.msra.mxu0 0
      %3813 = vmatprep.subr.bf16.mxu0 0
      %3814 = vmatpush1.bf16.msra.mxu0 0
      %3815 = vmatprep.subr.bf16.mxu0 0
      %3816 = vmatpush1.bf16.msra.mxu0 0
      %3817 = vmatprep.subr.bf16.mxu0 0
      %3818 = vmatpush1.bf16.msra.mxu0 %v3801
      %3819 = vmatprep.subr.bf16.mxu0 0
      %3820 = vmatpush2.bf16.msra.mxu0 0
      %3821 = vmatprep.subr.bf16.mxu0 0
      %3822 = vmatpush2.bf16.msra.mxu0 0
      %3823 = vmatprep.subr.bf16.mxu0 0
      %3824 = vmatpush2.bf16.msra.mxu0 0
      %3825 = vmatprep.subr.bf16.mxu0 0
      %3826 = vmatpush2.bf16.msra.mxu0 0
      %3827 = vmatprep.subr.bf16.mxu0 0
      %3828 = vmatpush2.bf16.msra.mxu0 0
      %3829 = vmatprep.subr.bf16.mxu0 0
      %3830 = vmatpush2.bf16.msra.mxu0 0
      %3831 = vmatprep.subr.bf16.mxu0 0
      %3832 = vmatpush2.bf16.msra.mxu0 0
      %3833 = vmatprep.subr.bf16.mxu0 0
      %3834 = vmatpush2.bf16.msra.mxu0 0
      %3835 = vmatprep.mubr.bf16.mxu0 0
      %3836 = vmatmul.mubr.bf16.gmra.mxu0 %v3780
      %v3837 = vpop.f32.mrf.mxu0
      %v3838 = vadd.f32 0.0, %v3837
      %v3839 = vpop.f32.mrf.mxu0
      %v3840 = vpop.f32.mrf.mxu0
      %v3841 = vadd.f32 0.0, %v3840
      %v3842 = vpop.f32.mrf.mxu0
      %3843 = vmatprep.mubr.bf16.mxu0 0
      %3844 = vmatmul.mubr.bf16.gmra.mxu0 %v3783
      %v3845 = vpop.f32.mrf.mxu0
      %v3846 = vadd.f32 0.0, %v3845
      %v3847 = vpop.f32.mrf.mxu0
      %v3848 = vpop.f32.mrf.mxu0
      %v3849 = vadd.f32 0.0, %v3848
      %v3850 = vpop.f32.mrf.mxu0
      %3851 = vmatprep.mubr.bf16.mxu0 0
      %3852 = vmatmul.mubr.bf16.gmra.mxu0 %v3786
      %v3853 = vpop.f32.mrf.mxu0
      %v3854 = vadd.f32 0.0, %v3853
      %v3855 = vpop.f32.mrf.mxu0
      %v3856 = vpop.f32.mrf.mxu0
      %v3857 = vadd.f32 0.0, %v3856
      %v3858 = vpop.f32.mrf.mxu0
      %3859 = vmatprep.mubr.bf16.mxu0 0
      %3860 = vmatmul.mubr.bf16.gmra.mxu0 %v3789
      %v3861 = vpop.f32.mrf.mxu0
      %v3862 = vadd.f32 0.0, %v3861
      %v3863 = vpop.f32.mrf.mxu0
      %v3864 = vpop.f32.mrf.mxu0
      %v3865 = vadd.f32 0.0, %v3864
      %v3866 = vpop.f32.mrf.mxu0
      %3867 = vmatprep.mubr.bf16.mxu0 0
      %3868 = vmatmul.mubr.bf16.gmra.mxu0 %v3792
      %v3869 = vpop.f32.mrf.mxu0
      %v3870 = vadd.f32 0.0, %v3869
      %v3871 = vpop.f32.mrf.mxu0
      %v3872 = vpop.f32.mrf.mxu0
      %v3873 = vadd.f32 0.0, %v3872
      %v3874 = vpop.f32.mrf.mxu0
      %3875 = vmatprep.mubr.bf16.mxu0 0
      %3876 = vmatmul.mubr.bf16.gmra.mxu0 %v3795
      %v3877 = vpop.f32.mrf.mxu0
      %v3878 = vadd.f32 0.0, %v3877
      %v3879 = vpop.f32.mrf.mxu0
      %v3880 = vpop.f32.mrf.mxu0
      %v3881 = vadd.f32 0.0, %v3880
      %v3882 = vpop.f32.mrf.mxu0
      %3883 = vmatprep.mubr.bf16.mxu0 0
      %3884 = vmatmul.mubr.bf16.gmra.mxu0 %v3798
      %v3885 = vpop.f32.mrf.mxu0
      %v3886 = vadd.f32 0.0, %v3885
      %v3887 = vpop.f32.mrf.mxu0
      %v3888 = vpop.f32.mrf.mxu0
      %v3889 = vpop.f32.mrf.mxu0
      %3890 = vdwg.mxu0
      %v3891 = vadd.f32 %v3711, %v3838
      %v3892 = vadd.f32 %v3712, %v3841
      %v3893 = vadd.f32 %v3713, %v3846
      %v3894 = vadd.f32 %v3714, %v3849
      %v3895 = vadd.f32 %v3715, %v3854
      %v3896 = vadd.f32 %v3716, %v3857
      %v3897 = vadd.f32 %v3717, %v3862
      %v3898 = vadd.f32 %v3718, %v3865
      %v3899 = vadd.f32 %v3719, %v3870
      %v3900 = vadd.f32 %v3720, %v3873
      %v3901 = vadd.f32 %v3721, %v3878
      %v3902 = vadd.f32 %v3722, %v3881
      %v3903 = vadd.f32 %v3723, %v3886
      %v3904 = vld [vmem:[%s380] sm:$0xe]
      %s3905 = scalar_lea.vmem %s3, 40
      %v3906 = vld [vmem:[%s3905] sm:$0x3]
      %v3908 = vunpack.c.l.b16 %v3904
      %v3909 = vpack.c.b16 %v3580, %v3908
      %v3910 = vrot.slane %v3909, 1
      %v3911 = vrot.slane %v3593, 1
      %v3912 = vsel %vm729, %v3910, %v3911
      %v3913 = vrot.slane %v3594, 1
      %v3914 = vsel %vm729, %v3911, %v3913
      %v3915 = vrot.slane %v3595, 1
      %v3916 = vsel %vm729, %v3913, %v3915
      %v3917 = vrot.slane %v3596, 1
      %v3918 = vsel %vm729, %v3915, %v3917
      %v3919 = vrot.slane %v3597, 1
      %v3920 = vsel %vm729, %v3917, %v3919
      %v3921 = vrot.slane %v3729, 1
      %v3922 = vsel %vm729, %v3919, %v3921
      %v3924 = vsel %vm500, %v3912, 0
      %v3927 = vsel %vm500, %v3914, 0
      %v3930 = vsel %vm500, %v3916, 0
      %v3933 = vsel %vm500, %v3918, 0
      %v3936 = vsel %vm500, %v3920, 0
      %v3939 = vsel %vm500, %v3922, 0
      %v3942 = vsel %vm500, %v3921, 0
      %v3945 = vsel %vm522, %v3906, 0
      %3947 = vmatprep.subr.bf16.mxu0 0
      %3948 = vmatpush1.bf16.msra.mxu0 0
      %3949 = vmatprep.subr.bf16.mxu0 0
      %3950 = vmatpush1.bf16.msra.mxu0 0
      %3951 = vmatprep.subr.bf16.mxu0 0
      %3952 = vmatpush1.bf16.msra.mxu0 0
      %3953 = vmatprep.subr.bf16.mxu0 0
      %3954 = vmatpush1.bf16.msra.mxu0 0
      %3955 = vmatprep.subr.bf16.mxu0 0
      %3956 = vmatpush1.bf16.msra.mxu0 0
      %3957 = vmatprep.subr.bf16.mxu0 0
      %3958 = vmatpush1.bf16.msra.mxu0 0
      %3959 = vmatprep.subr.bf16.mxu0 0
      %3960 = vmatpush1.bf16.msra.mxu0 0
      %3961 = vmatprep.subr.bf16.mxu0 0
      %3962 = vmatpush1.bf16.msra.mxu0 %v3945
      %3963 = vmatprep.subr.bf16.mxu0 0
      %3964 = vmatpush2.bf16.msra.mxu0 0
      %3965 = vmatprep.subr.bf16.mxu0 0
      %3966 = vmatpush2.bf16.msra.mxu0 0
      %3967 = vmatprep.subr.bf16.mxu0 0
      %3968 = vmatpush2.bf16.msra.mxu0 0
      %3969 = vmatprep.subr.bf16.mxu0 0
      %3970 = vmatpush2.bf16.msra.mxu0 0
      %3971 = vmatprep.subr.bf16.mxu0 0
      %3972 = vmatpush2.bf16.msra.mxu0 0
      %3973 = vmatprep.subr.bf16.mxu0 0
      %3974 = vmatpush2.bf16.msra.mxu0 0
      %3975 = vmatprep.subr.bf16.mxu0 0
      %3976 = vmatpush2.bf16.msra.mxu0 0
      %3977 = vmatprep.subr.bf16.mxu0 0
      %3978 = vmatpush2.bf16.msra.mxu0 0
      %3979 = vmatprep.mubr.bf16.mxu0 0
      %3980 = vmatmul.mubr.bf16.gmra.mxu0 %v3924
      %v3981 = vpop.f32.mrf.mxu0
      %v3982 = vadd.f32 0.0, %v3981
      %v3983 = vpop.f32.mrf.mxu0
      %v3984 = vpop.f32.mrf.mxu0
      %v3985 = vadd.f32 0.0, %v3984
      %v3986 = vpop.f32.mrf.mxu0
      %3987 = vmatprep.mubr.bf16.mxu0 0
      %3988 = vmatmul.mubr.bf16.gmra.mxu0 %v3927
      %v3989 = vpop.f32.mrf.mxu0
      %v3990 = vadd.f32 0.0, %v3989
      %v3991 = vpop.f32.mrf.mxu0
      %v3992 = vpop.f32.mrf.mxu0
      %v3993 = vadd.f32 0.0, %v3992
      %v3994 = vpop.f32.mrf.mxu0
      %3995 = vmatprep.mubr.bf16.mxu0 0
      %3996 = vmatmul.mubr.bf16.gmra.mxu0 %v3930
      %v3997 = vpop.f32.mrf.mxu0
      %v3998 = vadd.f32 0.0, %v3997
      %v3999 = vpop.f32.mrf.mxu0
      %v4000 = vpop.f32.mrf.mxu0
      %v4001 = vadd.f32 0.0, %v4000
      %v4002 = vpop.f32.mrf.mxu0
      %4003 = vmatprep.mubr.bf16.mxu0 0
      %4004 = vmatmul.mubr.bf16.gmra.mxu0 %v3933
      %v4005 = vpop.f32.mrf.mxu0
      %v4006 = vadd.f32 0.0, %v4005
      %v4007 = vpop.f32.mrf.mxu0
      %v4008 = vpop.f32.mrf.mxu0
      %v4009 = vadd.f32 0.0, %v4008
      %v4010 = vpop.f32.mrf.mxu0
      %4011 = vmatprep.mubr.bf16.mxu0 0
      %4012 = vmatmul.mubr.bf16.gmra.mxu0 %v3936
      %v4013 = vpop.f32.mrf.mxu0
      %v4014 = vadd.f32 0.0, %v4013
      %v4015 = vpop.f32.mrf.mxu0
      %v4016 = vpop.f32.mrf.mxu0
      %v4017 = vadd.f32 0.0, %v4016
      %v4018 = vpop.f32.mrf.mxu0
      %4019 = vmatprep.mubr.bf16.mxu0 0
      %4020 = vmatmul.mubr.bf16.gmra.mxu0 %v3939
      %v4021 = vpop.f32.mrf.mxu0
      %v4022 = vadd.f32 0.0, %v4021
      %v4023 = vpop.f32.mrf.mxu0
      %v4024 = vpop.f32.mrf.mxu0
      %v4025 = vadd.f32 0.0, %v4024
      %v4026 = vpop.f32.mrf.mxu0
      %4027 = vmatprep.mubr.bf16.mxu0 0
      %4028 = vmatmul.mubr.bf16.gmra.mxu0 %v3942
      %v4029 = vpop.f32.mrf.mxu0
      %v4030 = vadd.f32 0.0, %v4029
      %v4031 = vpop.f32.mrf.mxu0
      %v4032 = vpop.f32.mrf.mxu0
      %v4033 = vpop.f32.mrf.mxu0
      %4034 = vdwg.mxu0
      %v4035 = vadd.f32 %v3891, %v3982
      %v4036 = vadd.f32 %v3892, %v3985
      %v4037 = vadd.f32 %v3893, %v3990
      %v4038 = vadd.f32 %v3894, %v3993
      %v4039 = vadd.f32 %v3895, %v3998
      %v4040 = vadd.f32 %v3896, %v4001
      %v4041 = vadd.f32 %v3897, %v4006
      %v4042 = vadd.f32 %v3898, %v4009
      %v4043 = vadd.f32 %v3899, %v4014
      %v4044 = vadd.f32 %v3900, %v4017
      %v4045 = vadd.f32 %v3901, %v4022
      %v4046 = vadd.f32 %v3902, %v4025
      %v4047 = vadd.f32 %v3903, %v4030
      %v4048 = vld [vmem:[%s380 + $0x4] sm:$0xe]
      %v4049 = vld [vmem:[%s380 + $0x8] sm:$0xf]
      %v4050 = vld [vmem:[%s380 + $0xc] sm:$0xf]
      %v4051 = vld [vmem:[%s380 + $0x10] sm:$0xf]
      %v4052 = vld [vmem:[%s380 + $0x14] sm:$0xf]
      %v4053 = vld [vmem:[%s380 + $0x18] sm:$0xf]
      %v4054 = vld [vmem:[%s380 + $0x1c] sm:$0xf]
      %v4055 = vld [vmem:[%s380 + $0x20] sm:$0xf]
      %v4056 = vld [vmem:[%s380 + $0x24] sm:$0xf]
      %v4057 = vld [vmem:[%s380 + $0x28] sm:$0xf]
      %v4058 = vld [vmem:[%s380 + $0x2c] sm:$0xf]
      %v4059 = vld [vmem:[%s380 + $0x30] sm:$0xf]
      %v4060 = vld [vmem:[%s380 + $0x34] sm:$0x7]
      %s4061 = scalar_lea.vmem %s3, 42
      %v4062 = vld [vmem:[%s4061] sm:$0x3]
      %v4076 = vunpack.c.l.b16 %v4048
      %v4077 = vunpack.c.l.b16 %v4049
      %v4078 = vunpack.c.l.b16 %v4050
      %v4079 = vunpack.c.l.b16 %v4051
      %v4080 = vunpack.c.l.b16 %v4052
      %v4081 = vunpack.c.l.b16 %v4053
      %v4082 = vunpack.c.l.b16 %v4054
      %v4083 = vunpack.c.l.b16 %v4055
      %v4084 = vunpack.c.l.b16 %v4056
      %v4085 = vunpack.c.l.b16 %v4057
      %v4086 = vunpack.c.l.b16 %v4058
      %v4087 = vunpack.c.l.b16 %v4059
      %v4088 = vunpack.c.l.b16 %v4060
      %v4089 = vpack.c.b16 %v4077, %v4076
      %v4090 = vpack.c.b16 %v4079, %v4078
      %v4091 = vpack.c.b16 %v4081, %v4080
      %v4092 = vpack.c.b16 %v4083, %v4082
      %v4093 = vpack.c.b16 %v4085, %v4084
      %v4094 = vpack.c.b16 %v4087, %v4086
      %v4095 = vpack.c.b16 %v4088, %v4088
      %v4096 = vrot.slane %v4089, 1
      %v4097 = vrot.slane %v4090, 1
      %v4098 = vsel %vm729, %v4096, %v4097
      %v4099 = vrot.slane %v4091, 1
      %v4100 = vsel %vm729, %v4097, %v4099
      %v4101 = vrot.slane %v4092, 1
      %v4102 = vsel %vm729, %v4099, %v4101
      %v4103 = vrot.slane %v4093, 1
      %v4104 = vsel %vm729, %v4101, %v4103
      %v4105 = vrot.slane %v4094, 1
      %v4106 = vsel %vm729, %v4103, %v4105
      %v4107 = vrot.slane %v4095, 1
      %v4108 = vsel %vm729, %v4105, %v4107
      %v4110 = vsel %vm500, %v4098, 0
      %v4113 = vsel %vm500, %v4100, 0
      %v4116 = vsel %vm500, %v4102, 0
      %v4119 = vsel %vm500, %v4104, 0
      %v4122 = vsel %vm500, %v4106, 0
      %v4125 = vsel %vm500, %v4108, 0
      %v4128 = vsel %vm500, %v4107, 0
      %v4131 = vsel %vm522, %v4062, 0
      %4133 = vmatprep.subr.bf16.mxu0 0
      %4134 = vmatpush1.bf16.msra.mxu0 0
      %4135 = vmatprep.subr.bf16.mxu0 0
      %4136 = vmatpush1.bf16.msra.mxu0 0
      %4137 = vmatprep.subr.bf16.mxu0 0
      %4138 = vmatpush1.bf16.msra.mxu0 0
      %4139 = vmatprep.subr.bf16.mxu0 0
      %4140 = vmatpush1.bf16.msra.mxu0 0
      %4141 = vmatprep.subr.bf16.mxu0 0
      %4142 = vmatpush1.bf16.msra.mxu0 0
      %4143 = vmatprep.subr.bf16.mxu0 0
      %4144 = vmatpush1.bf16.msra.mxu0 0
      %4145 = vmatprep.subr.bf16.mxu0 0
      %4146 = vmatpush1.bf16.msra.mxu0 0
      %4147 = vmatprep.subr.bf16.mxu0 0
      %4148 = vmatpush1.bf16.msra.mxu0 %v4131
      %4149 = vmatprep.subr.bf16.mxu0 0
      %4150 = vmatpush2.bf16.msra.mxu0 0
      %4151 = vmatprep.subr.bf16.mxu0 0
      %4152 = vmatpush2.bf16.msra.mxu0 0
      %4153 = vmatprep.subr.bf16.mxu0 0
      %4154 = vmatpush2.bf16.msra.mxu0 0
      %4155 = vmatprep.subr.bf16.mxu0 0
      %4156 = vmatpush2.bf16.msra.mxu0 0
      %4157 = vmatprep.subr.bf16.mxu0 0
      %4158 = vmatpush2.bf16.msra.mxu0 0
      %4159 = vmatprep.subr.bf16.mxu0 0
      %4160 = vmatpush2.bf16.msra.mxu0 0
      %4161 = vmatprep.subr.bf16.mxu0 0
      %4162 = vmatpush2.bf16.msra.mxu0 0
      %4163 = vmatprep.subr.bf16.mxu0 0
      %4164 = vmatpush2.bf16.msra.mxu0 0
      %4165 = vmatprep.mubr.bf16.mxu0 0
      %4166 = vmatmul.mubr.bf16.gmra.mxu0 %v4110
      %v4167 = vpop.f32.mrf.mxu0
      %v4168 = vadd.f32 0.0, %v4167
      %v4169 = vpop.f32.mrf.mxu0
      %v4170 = vpop.f32.mrf.mxu0
      %v4171 = vadd.f32 0.0, %v4170
      %v4172 = vpop.f32.mrf.mxu0
      %4173 = vmatprep.mubr.bf16.mxu0 0
      %4174 = vmatmul.mubr.bf16.gmra.mxu0 %v4113
      %v4175 = vpop.f32.mrf.mxu0
      %v4176 = vadd.f32 0.0, %v4175
      %v4177 = vpop.f32.mrf.mxu0
      %v4178 = vpop.f32.mrf.mxu0
      %v4179 = vadd.f32 0.0, %v4178
      %v4180 = vpop.f32.mrf.mxu0
      %4181 = vmatprep.mubr.bf16.mxu0 0
      %4182 = vmatmul.mubr.bf16.gmra.mxu0 %v4116
      %v4183 = vpop.f32.mrf.mxu0
      %v4184 = vadd.f32 0.0, %v4183
      %v4185 = vpop.f32.mrf.mxu0
      %v4186 = vpop.f32.mrf.mxu0
      %v4187 = vadd.f32 0.0, %v4186
      %v4188 = vpop.f32.mrf.mxu0
      %4189 = vmatprep.mubr.bf16.mxu0 0
      %4190 = vmatmul.mubr.bf16.gmra.mxu0 %v4119
      %v4191 = vpop.f32.mrf.mxu0
      %v4192 = vadd.f32 0.0, %v4191
      %v4193 = vpop.f32.mrf.mxu0
      %v4194 = vpop.f32.mrf.mxu0
      %v4195 = vadd.f32 0.0, %v4194
      %v4196 = vpop.f32.mrf.mxu0
      %4197 = vmatprep.mubr.bf16.mxu0 0
      %4198 = vmatmul.mubr.bf16.gmra.mxu0 %v4122
      %v4199 = vpop.f32.mrf.mxu0
      %v4200 = vadd.f32 0.0, %v4199
      %v4201 = vpop.f32.mrf.mxu0
      %v4202 = vpop.f32.mrf.mxu0
      %v4203 = vadd.f32 0.0, %v4202
      %v4204 = vpop.f32.mrf.mxu0
      %4205 = vmatprep.mubr.bf16.mxu0 0
      %4206 = vmatmul.mubr.bf16.gmra.mxu0 %v4125
      %v4207 = vpop.f32.mrf.mxu0
      %v4208 = vadd.f32 0.0, %v4207
      %v4209 = vpop.f32.mrf.mxu0
      %v4210 = vpop.f32.mrf.mxu0
      %v4211 = vadd.f32 0.0, %v4210
      %v4212 = vpop.f32.mrf.mxu0
      %4213 = vmatprep.mubr.bf16.mxu0 0
      %4214 = vmatmul.mubr.bf16.gmra.mxu0 %v4128
      %v4215 = vpop.f32.mrf.mxu0
      %v4216 = vadd.f32 0.0, %v4215
      %v4217 = vpop.f32.mrf.mxu0
      %v4218 = vpop.f32.mrf.mxu0
      %v4219 = vpop.f32.mrf.mxu0
      %4220 = vdwg.mxu0
      %v4221 = vadd.f32 %v4035, %v4168
      %v4222 = vadd.f32 %v4036, %v4171
      %v4223 = vadd.f32 %v4037, %v4176
      %v4224 = vadd.f32 %v4038, %v4179
      %v4225 = vadd.f32 %v4039, %v4184
      %v4226 = vadd.f32 %v4040, %v4187
      %v4227 = vadd.f32 %v4041, %v4192
      %v4228 = vadd.f32 %v4042, %v4195
      %v4229 = vadd.f32 %v4043, %v4200
      %v4230 = vadd.f32 %v4044, %v4203
      %v4231 = vadd.f32 %v4045, %v4208
      %v4232 = vadd.f32 %v4046, %v4211
      %v4233 = vadd.f32 %v4047, %v4216
      %v4234 = vld [vmem:[%s380 + $0x34] sm:$0xf]
      %s4235 = scalar_lea.vmem %s3, 44
      %v4236 = vld [vmem:[%s4235] sm:$0x3]
      %v4238 = vunpack.c.l.b16 %v4234
      %v4239 = vpack.c.b16 %v4238, %v4238
      %v4241 = vshrl.u32 %v4089, 16
      %v4243 = vrot.slane %v4241, 1
      %v4244 = vshll.u32 %v4089, 16
      %v4246 = vrot.slane %v4244, 2
      %v4247 = vor.u32 %v4243, %v4246
      %v4249 = vshrl.u32 %v4090, 16
      %v4251 = vrot.slane %v4249, 1
      %v4252 = vshll.u32 %v4090, 16
      %v4254 = vrot.slane %v4252, 2
      %v4255 = vor.u32 %v4251, %v4254
      %v4256 = vsel %vm1060, %v4247, %v4255
      %v4258 = vshrl.u32 %v4091, 16
      %v4260 = vrot.slane %v4258, 1
      %v4261 = vshll.u32 %v4091, 16
      %v4263 = vrot.slane %v4261, 2
      %v4264 = vor.u32 %v4260, %v4263
      %v4265 = vsel %vm1060, %v4255, %v4264
      %v4267 = vshrl.u32 %v4092, 16
      %v4269 = vrot.slane %v4267, 1
      %v4270 = vshll.u32 %v4092, 16
      %v4272 = vrot.slane %v4270, 2
      %v4273 = vor.u32 %v4269, %v4272
      %v4274 = vsel %vm1060, %v4264, %v4273
      %v4276 = vshrl.u32 %v4093, 16
      %v4278 = vrot.slane %v4276, 1
      %v4279 = vshll.u32 %v4093, 16
      %v4281 = vrot.slane %v4279, 2
      %v4282 = vor.u32 %v4278, %v4281
      %v4283 = vsel %vm1060, %v4273, %v4282
      %v4285 = vshrl.u32 %v4094, 16
      %v4287 = vrot.slane %v4285, 1
      %v4288 = vshll.u32 %v4094, 16
      %v4290 = vrot.slane %v4288, 2
      %v4291 = vor.u32 %v4287, %v4290
      %v4292 = vsel %vm1060, %v4282, %v4291
      %v4294 = vshrl.u32 %v4239, 16
      %v4296 = vrot.slane %v4294, 1
      %v4297 = vshll.u32 %v4239, 16
      %v4299 = vrot.slane %v4297, 2
      %v4300 = vor.u32 %v4296, %v4299
      %v4301 = vsel %vm1060, %v4291, %v4300
      %v4303 = vsel %vm500, %v4256, 0
      %v4306 = vsel %vm500, %v4265, 0
      %v4309 = vsel %vm500, %v4274, 0
      %v4312 = vsel %vm500, %v4283, 0
      %v4315 = vsel %vm500, %v4292, 0
      %v4318 = vsel %vm500, %v4301, 0
      %v4321 = vsel %vm500, %v4300, 0
      %v4324 = vsel %vm522, %v4236, 0
      %4326 = vmatprep.subr.bf16.mxu0 0
      %4327 = vmatpush1.bf16.msra.mxu0 0
      %4328 = vmatprep.subr.bf16.mxu0 0
      %4329 = vmatpush1.bf16.msra.mxu0 0
      %4330 = vmatprep.subr.bf16.mxu0 0
      %4331 = vmatpush1.bf16.msra.mxu0 0
      %4332 = vmatprep.subr.bf16.mxu0 0
      %4333 = vmatpush1.bf16.msra.mxu0 0
      %4334 = vmatprep.subr.bf16.mxu0 0
      %4335 = vmatpush1.bf16.msra.mxu0 0
      %4336 = vmatprep.subr.bf16.mxu0 0
      %4337 = vmatpush1.bf16.msra.mxu0 0
      %4338 = vmatprep.subr.bf16.mxu0 0
      %4339 = vmatpush1.bf16.msra.mxu0 0
      %4340 = vmatprep.subr.bf16.mxu0 0
      %4341 = vmatpush1.bf16.msra.mxu0 %v4324
      %4342 = vmatprep.subr.bf16.mxu0 0
      %4343 = vmatpush2.bf16.msra.mxu0 0
      %4344 = vmatprep.subr.bf16.mxu0 0
      %4345 = vmatpush2.bf16.msra.mxu0 0
      %4346 = vmatprep.subr.bf16.mxu0 0
      %4347 = vmatpush2.bf16.msra.mxu0 0
      %4348 = vmatprep.subr.bf16.mxu0 0
      %4349 = vmatpush2.bf16.msra.mxu0 0
      %4350 = vmatprep.subr.bf16.mxu0 0
      %4351 = vmatpush2.bf16.msra.mxu0 0
      %4352 = vmatprep.subr.bf16.mxu0 0
      %4353 = vmatpush2.bf16.msra.mxu0 0
      %4354 = vmatprep.subr.bf16.mxu0 0
      %4355 = vmatpush2.bf16.msra.mxu0 0
      %4356 = vmatprep.subr.bf16.mxu0 0
      %4357 = vmatpush2.bf16.msra.mxu0 0
      %4358 = vmatprep.mubr.bf16.mxu0 0
      %4359 = vmatmul.mubr.bf16.gmra.mxu0 %v4303
      %v4360 = vpop.f32.mrf.mxu0
      %v4361 = vadd.f32 0.0, %v4360
      %v4362 = vpop.f32.mrf.mxu0
      %v4363 = vpop.f32.mrf.mxu0
      %v4364 = vadd.f32 0.0, %v4363
      %v4365 = vpop.f32.mrf.mxu0
      %4366 = vmatprep.mubr.bf16.mxu0 0
      %4367 = vmatmul.mubr.bf16.gmra.mxu0 %v4306
      %v4368 = vpop.f32.mrf.mxu0
      %v4369 = vadd.f32 0.0, %v4368
      %v4370 = vpop.f32.mrf.mxu0
      %v4371 = vpop.f32.mrf.mxu0
      %v4372 = vadd.f32 0.0, %v4371
      %v4373 = vpop.f32.mrf.mxu0
      %4374 = vmatprep.mubr.bf16.mxu0 0
      %4375 = vmatmul.mubr.bf16.gmra.mxu0 %v4309
      %v4376 = vpop.f32.mrf.mxu0
      %v4377 = vadd.f32 0.0, %v4376
      %v4378 = vpop.f32.mrf.mxu0
      %v4379 = vpop.f32.mrf.mxu0
      %v4380 = vadd.f32 0.0, %v4379
      %v4381 = vpop.f32.mrf.mxu0
      %4382 = vmatprep.mubr.bf16.mxu0 0
      %4383 = vmatmul.mubr.bf16.gmra.mxu0 %v4312
      %v4384 = vpop.f32.mrf.mxu0
      %v4385 = vadd.f32 0.0, %v4384
      %v4386 = vpop.f32.mrf.mxu0
      %v4387 = vpop.f32.mrf.mxu0
      %v4388 = vadd.f32 0.0, %v4387
      %v4389 = vpop.f32.mrf.mxu0
      %4390 = vmatprep.mubr.bf16.mxu0 0
      %4391 = vmatmul.mubr.bf16.gmra.mxu0 %v4315
      %v4392 = vpop.f32.mrf.mxu0
      %v4393 = vadd.f32 0.0, %v4392
      %v4394 = vpop.f32.mrf.mxu0
      %v4395 = vpop.f32.mrf.mxu0
      %v4396 = vadd.f32 0.0, %v4395
      %v4397 = vpop.f32.mrf.mxu0
      %4398 = vmatprep.mubr.bf16.mxu0 0
      %4399 = vmatmul.mubr.bf16.gmra.mxu0 %v4318
      %v4400 = vpop.f32.mrf.mxu0
      %v4401 = vadd.f32 0.0, %v4400
      %v4402 = vpop.f32.mrf.mxu0
      %v4403 = vpop.f32.mrf.mxu0
      %v4404 = vadd.f32 0.0, %v4403
      %v4405 = vpop.f32.mrf.mxu0
      %4406 = vmatprep.mubr.bf16.mxu0 0
      %4407 = vmatmul.mubr.bf16.gmra.mxu0 %v4321
      %v4408 = vpop.f32.mrf.mxu0
      %v4409 = vadd.f32 0.0, %v4408
      %v4410 = vpop.f32.mrf.mxu0
      %v4411 = vpop.f32.mrf.mxu0
      %v4412 = vpop.f32.mrf.mxu0
      %4413 = vdwg.mxu0
      %v4414 = vadd.f32 %v4221, %v4361
      %v4415 = vadd.f32 %v4222, %v4364
      %v4416 = vadd.f32 %v4223, %v4369
      %v4417 = vadd.f32 %v4224, %v4372
      %v4418 = vadd.f32 %v4225, %v4377
      %v4419 = vadd.f32 %v4226, %v4380
      %v4420 = vadd.f32 %v4227, %v4385
      %v4421 = vadd.f32 %v4228, %v4388
      %v4422 = vadd.f32 %v4229, %v4393
      %v4423 = vadd.f32 %v4230, %v4396
      %v4424 = vadd.f32 %v4231, %v4401
      %v4425 = vadd.f32 %v4232, %v4404
      %v4426 = vadd.f32 %v4233, %v4409
      %v4427 = vld [vmem:[%s380 + $0x4] sm:$0xc]
      %s4428 = scalar_lea.vmem %s3, 46
      %v4429 = vld [vmem:[%s4428] sm:$0x3]
      %v4431 = vunpack.c.l.b16 %v4427
      %v4432 = vpack.c.b16 %v4077, %v4431
      %v4433 = vrot.slane %v4432, 2
      %v4434 = vrot.slane %v4090, 2
      %v4435 = vsel %vm1254, %v4433, %v4434
      %v4436 = vrot.slane %v4091, 2
      %v4437 = vsel %vm1254, %v4434, %v4436
      %v4438 = vrot.slane %v4092, 2
      %v4439 = vsel %vm1254, %v4436, %v4438
      %v4440 = vrot.slane %v4093, 2
      %v4441 = vsel %vm1254, %v4438, %v4440
      %v4442 = vrot.slane %v4094, 2
      %v4443 = vsel %vm1254, %v4440, %v4442
      %v4444 = vrot.slane %v4239, 2
      %v4445 = vsel %vm1254, %v4442, %v4444
      %v4447 = vsel %vm500, %v4435, 0
      %v4450 = vsel %vm500, %v4437, 0
      %v4453 = vsel %vm500, %v4439, 0
      %v4456 = vsel %vm500, %v4441, 0
      %v4459 = vsel %vm500, %v4443, 0
      %v4462 = vsel %vm500, %v4445, 0
      %v4465 = vsel %vm500, %v4444, 0
      %v4468 = vsel %vm522, %v4429, 0
      %4470 = vmatprep.subr.bf16.mxu0 0
      %4471 = vmatpush1.bf16.msra.mxu0 0
      %4472 = vmatprep.subr.bf16.mxu0 0
      %4473 = vmatpush1.bf16.msra.mxu0 0
      %4474 = vmatprep.subr.bf16.mxu0 0
      %4475 = vmatpush1.bf16.msra.mxu0 0
      %4476 = vmatprep.subr.bf16.mxu0 0
      %4477 = vmatpush1.bf16.msra.mxu0 0
      %4478 = vmatprep.subr.bf16.mxu0 0
      %4479 = vmatpush1.bf16.msra.mxu0 0
      %4480 = vmatprep.subr.bf16.mxu0 0
      %4481 = vmatpush1.bf16.msra.mxu0 0
      %4482 = vmatprep.subr.bf16.mxu0 0
      %4483 = vmatpush1.bf16.msra.mxu0 0
      %4484 = vmatprep.subr.bf16.mxu0 0
      %4485 = vmatpush1.bf16.msra.mxu0 %v4468
      %4486 = vmatprep.subr.bf16.mxu0 0
      %4487 = vmatpush2.bf16.msra.mxu0 0
      %4488 = vmatprep.subr.bf16.mxu0 0
      %4489 = vmatpush2.bf16.msra.mxu0 0
      %4490 = vmatprep.subr.bf16.mxu0 0
      %4491 = vmatpush2.bf16.msra.mxu0 0
      %4492 = vmatprep.subr.bf16.mxu0 0
      %4493 = vmatpush2.bf16.msra.mxu0 0
      %4494 = vmatprep.subr.bf16.mxu0 0
      %4495 = vmatpush2.bf16.msra.mxu0 0
      %4496 = vmatprep.subr.bf16.mxu0 0
      %4497 = vmatpush2.bf16.msra.mxu0 0
      %4498 = vmatprep.subr.bf16.mxu0 0
      %4499 = vmatpush2.bf16.msra.mxu0 0
      %4500 = vmatprep.subr.bf16.mxu0 0
      %4501 = vmatpush2.bf16.msra.mxu0 0
      %4502 = vmatprep.mubr.bf16.mxu0 0
      %4503 = vmatmul.mubr.bf16.gmra.mxu0 %v4447
      %v4504 = vpop.f32.mrf.mxu0
      %v4505 = vadd.f32 0.0, %v4504
      %v4506 = vpop.f32.mrf.mxu0
      %v4507 = vpop.f32.mrf.mxu0
      %v4508 = vadd.f32 0.0, %v4507
      %v4509 = vpop.f32.mrf.mxu0
      %4510 = vmatprep.mubr.bf16.mxu0 0
      %4511 = vmatmul.mubr.bf16.gmra.mxu0 %v4450
      %v4512 = vpop.f32.mrf.mxu0
      %v4513 = vadd.f32 0.0, %v4512
      %v4514 = vpop.f32.mrf.mxu0
      %v4515 = vpop.f32.mrf.mxu0
      %v4516 = vadd.f32 0.0, %v4515
      %v4517 = vpop.f32.mrf.mxu0
      %4518 = vmatprep.mubr.bf16.mxu0 0
      %4519 = vmatmul.mubr.bf16.gmra.mxu0 %v4453
      %v4520 = vpop.f32.mrf.mxu0
      %v4521 = vadd.f32 0.0, %v4520
      %v4522 = vpop.f32.mrf.mxu0
      %v4523 = vpop.f32.mrf.mxu0
      %v4524 = vadd.f32 0.0, %v4523
      %v4525 = vpop.f32.mrf.mxu0
      %4526 = vmatprep.mubr.bf16.mxu0 0
      %4527 = vmatmul.mubr.bf16.gmra.mxu0 %v4456
      %v4528 = vpop.f32.mrf.mxu0
      %v4529 = vadd.f32 0.0, %v4528
      %v4530 = vpop.f32.mrf.mxu0
      %v4531 = vpop.f32.mrf.mxu0
      %v4532 = vadd.f32 0.0, %v4531
      %v4533 = vpop.f32.mrf.mxu0
      %4534 = vmatprep.mubr.bf16.mxu0 0
      %4535 = vmatmul.mubr.bf16.gmra.mxu0 %v4459
      %v4536 = vpop.f32.mrf.mxu0
      %v4537 = vadd.f32 0.0, %v4536
      %v4538 = vpop.f32.mrf.mxu0
      %v4539 = vpop.f32.mrf.mxu0
      %v4540 = vadd.f32 0.0, %v4539
      %v4541 = vpop.f32.mrf.mxu0
      %4542 = vmatprep.mubr.bf16.mxu0 0
      %4543 = vmatmul.mubr.bf16.gmra.mxu0 %v4462
      %v4544 = vpop.f32.mrf.mxu0
      %v4545 = vadd.f32 0.0, %v4544
      %v4546 = vpop.f32.mrf.mxu0
      %v4547 = vpop.f32.mrf.mxu0
      %v4548 = vadd.f32 0.0, %v4547
      %v4549 = vpop.f32.mrf.mxu0
      %4550 = vmatprep.mubr.bf16.mxu0 0
      %4551 = vmatmul.mubr.bf16.gmra.mxu0 %v4465
      %v4552 = vpop.f32.mrf.mxu0
      %v4553 = vadd.f32 0.0, %v4552
      %v4554 = vpop.f32.mrf.mxu0
      %v4555 = vpop.f32.mrf.mxu0
      %v4556 = vpop.f32.mrf.mxu0
      %4557 = vdwg.mxu0
      %v4558 = vadd.f32 %v4414, %v4505
      %v4559 = vadd.f32 %v4415, %v4508
      %v4560 = vadd.f32 %v4416, %v4513
      %v4561 = vadd.f32 %v4417, %v4516
      %v4562 = vadd.f32 %v4418, %v4521
      %v4563 = vadd.f32 %v4419, %v4524
      %v4564 = vadd.f32 %v4420, %v4529
      %v4565 = vadd.f32 %v4421, %v4532
      %v4566 = vadd.f32 %v4422, %v4537
      %v4567 = vadd.f32 %v4423, %v4540
      %v4568 = vadd.f32 %v4424, %v4545
      %v4569 = vadd.f32 %v4425, %v4548
      %v4570 = vadd.f32 %v4426, %v4553
      %v4571 = vld [vmem:[%s380 + $0x8] sm:$0xc]
      %v4572 = vld [vmem:[%s380 + $0xc] sm:$0xf]
      %v4573 = vld [vmem:[%s380 + $0x10] sm:$0xf]
      %v4574 = vld [vmem:[%s380 + $0x14] sm:$0xf]
      %v4575 = vld [vmem:[%s380 + $0x18] sm:$0xf]
      %v4576 = vld [vmem:[%s380 + $0x1c] sm:$0xf]
      %v4577 = vld [vmem:[%s380 + $0x20] sm:$0xf]
      %v4578 = vld [vmem:[%s380 + $0x24] sm:$0xf]
      %v4579 = vld [vmem:[%s380 + $0x28] sm:$0xf]
      %v4580 = vld [vmem:[%s380 + $0x2c] sm:$0xf]
      %v4581 = vld [vmem:[%s380 + $0x30] sm:$0xf]
      %v4582 = vld [vmem:[%s380 + $0x34] sm:$0xf]
      %v4583 = vld [vmem:[%s380 + $0x38] sm:$0xf]
      %s4584 = scalar_lea.vmem %s3, 48
      %v4585 = vld [vmem:[%s4584] sm:$0x3]
      %v4599 = vunpack.c.l.b16 %v4571
      %v4600 = vunpack.c.l.b16 %v4572
      %v4601 = vunpack.c.l.b16 %v4573
      %v4602 = vunpack.c.l.b16 %v4574
      %v4603 = vunpack.c.l.b16 %v4575
      %v4604 = vunpack.c.l.b16 %v4576
      %v4605 = vunpack.c.l.b16 %v4577
      %v4606 = vunpack.c.l.b16 %v4578
      %v4607 = vunpack.c.l.b16 %v4579
      %v4608 = vunpack.c.l.b16 %v4580
      %v4609 = vunpack.c.l.b16 %v4581
      %v4610 = vunpack.c.l.b16 %v4582
      %v4611 = vunpack.c.l.b16 %v4583
      %v4612 = vpack.c.b16 %v4600, %v4599
      %v4613 = vpack.c.b16 %v4602, %v4601
      %v4614 = vpack.c.b16 %v4604, %v4603
      %v4615 = vpack.c.b16 %v4606, %v4605
      %v4616 = vpack.c.b16 %v4608, %v4607
      %v4617 = vpack.c.b16 %v4610, %v4609
      %v4618 = vpack.c.b16 %v4611, %v4611
      %v4619 = vrot.slane %v4612, 2
      %v4620 = vrot.slane %v4613, 2
      %v4621 = vsel %vm1254, %v4619, %v4620
      %v4622 = vrot.slane %v4614, 2
      %v4623 = vsel %vm1254, %v4620, %v4622
      %v4624 = vrot.slane %v4615, 2
      %v4625 = vsel %vm1254, %v4622, %v4624
      %v4626 = vrot.slane %v4616, 2
      %v4627 = vsel %vm1254, %v4624, %v4626
      %v4628 = vrot.slane %v4617, 2
      %v4629 = vsel %vm1254, %v4626, %v4628
      %v4630 = vrot.slane %v4618, 2
      %v4631 = vsel %vm1254, %v4628, %v4630
      %v4633 = vsel %vm500, %v4621, 0
      %v4636 = vsel %vm500, %v4623, 0
      %v4639 = vsel %vm500, %v4625, 0
      %v4642 = vsel %vm500, %v4627, 0
      %v4645 = vsel %vm500, %v4629, 0
      %v4648 = vsel %vm500, %v4631, 0
      %v4651 = vsel %vm500, %v4630, 0
      %v4654 = vsel %vm522, %v4585, 0
      %4656 = vmatprep.subr.bf16.mxu0 0
      %4657 = vmatpush1.bf16.msra.mxu0 0
      %4658 = vmatprep.subr.bf16.mxu0 0
      %4659 = vmatpush1.bf16.msra.mxu0 0
      %4660 = vmatprep.subr.bf16.mxu0 0
      %4661 = vmatpush1.bf16.msra.mxu0 0
      %4662 = vmatprep.subr.bf16.mxu0 0
      %4663 = vmatpush1.bf16.msra.mxu0 0
      %4664 = vmatprep.subr.bf16.mxu0 0
      %4665 = vmatpush1.bf16.msra.mxu0 0
      %4666 = vmatprep.subr.bf16.mxu0 0
      %4667 = vmatpush1.bf16.msra.mxu0 0
      %4668 = vmatprep.subr.bf16.mxu0 0
      %4669 = vmatpush1.bf16.msra.mxu0 0
      %4670 = vmatprep.subr.bf16.mxu0 0
      %4671 = vmatpush1.bf16.msra.mxu0 %v4654
      %4672 = vmatprep.subr.bf16.mxu0 0
      %4673 = vmatpush2.bf16.msra.mxu0 0
      %4674 = vmatprep.subr.bf16.mxu0 0
      %4675 = vmatpush2.bf16.msra.mxu0 0
      %4676 = vmatprep.subr.bf16.mxu0 0
      %4677 = vmatpush2.bf16.msra.mxu0 0
      %4678 = vmatprep.subr.bf16.mxu0 0
      %4679 = vmatpush2.bf16.msra.mxu0 0
      %4680 = vmatprep.subr.bf16.mxu0 0
      %4681 = vmatpush2.bf16.msra.mxu0 0
      %4682 = vmatprep.subr.bf16.mxu0 0
      %4683 = vmatpush2.bf16.msra.mxu0 0
      %4684 = vmatprep.subr.bf16.mxu0 0
      %4685 = vmatpush2.bf16.msra.mxu0 0
      %4686 = vmatprep.subr.bf16.mxu0 0
      %4687 = vmatpush2.bf16.msra.mxu0 0
      %4688 = vmatprep.mubr.bf16.mxu0 0
      %4689 = vmatmul.mubr.bf16.gmra.mxu0 %v4633
      %v4690 = vpop.f32.mrf.mxu0
      %v4691 = vadd.f32 0.0, %v4690
      %v4692 = vpop.f32.mrf.mxu0
      %v4693 = vpop.f32.mrf.mxu0
      %v4694 = vadd.f32 0.0, %v4693
      %v4695 = vpop.f32.mrf.mxu0
      %4696 = vmatprep.mubr.bf16.mxu0 0
      %4697 = vmatmul.mubr.bf16.gmra.mxu0 %v4636
      %v4698 = vpop.f32.mrf.mxu0
      %v4699 = vadd.f32 0.0, %v4698
      %v4700 = vpop.f32.mrf.mxu0
      %v4701 = vpop.f32.mrf.mxu0
      %v4702 = vadd.f32 0.0, %v4701
      %v4703 = vpop.f32.mrf.mxu0
      %4704 = vmatprep.mubr.bf16.mxu0 0
      %4705 = vmatmul.mubr.bf16.gmra.mxu0 %v4639
      %v4706 = vpop.f32.mrf.mxu0
      %v4707 = vadd.f32 0.0, %v4706
      %v4708 = vpop.f32.mrf.mxu0
      %v4709 = vpop.f32.mrf.mxu0
      %v4710 = vadd.f32 0.0, %v4709
      %v4711 = vpop.f32.mrf.mxu0
      %4712 = vmatprep.mubr.bf16.mxu0 0
      %4713 = vmatmul.mubr.bf16.gmra.mxu0 %v4642
      %v4714 = vpop.f32.mrf.mxu0
      %v4715 = vadd.f32 0.0, %v4714
      %v4716 = vpop.f32.mrf.mxu0
      %v4717 = vpop.f32.mrf.mxu0
      %v4718 = vadd.f32 0.0, %v4717
      %v4719 = vpop.f32.mrf.mxu0
      %4720 = vmatprep.mubr.bf16.mxu0 0
      %4721 = vmatmul.mubr.bf16.gmra.mxu0 %v4645
      %v4722 = vpop.f32.mrf.mxu0
      %v4723 = vadd.f32 0.0, %v4722
      %v4724 = vpop.f32.mrf.mxu0
      %v4725 = vpop.f32.mrf.mxu0
      %v4726 = vadd.f32 0.0, %v4725
      %v4727 = vpop.f32.mrf.mxu0
      %4728 = vmatprep.mubr.bf16.mxu0 0
      %4729 = vmatmul.mubr.bf16.gmra.mxu0 %v4648
      %v4730 = vpop.f32.mrf.mxu0
      %v4731 = vadd.f32 0.0, %v4730
      %v4732 = vpop.f32.mrf.mxu0
      %v4733 = vpop.f32.mrf.mxu0
      %v4734 = vadd.f32 0.0, %v4733
      %v4735 = vpop.f32.mrf.mxu0
      %4736 = vmatprep.mubr.bf16.mxu0 0
      %4737 = vmatmul.mubr.bf16.gmra.mxu0 %v4651
      %v4738 = vpop.f32.mrf.mxu0
      %v4739 = vadd.f32 0.0, %v4738
      %v4740 = vpop.f32.mrf.mxu0
      %v4741 = vpop.f32.mrf.mxu0
      %v4742 = vpop.f32.mrf.mxu0
      %4743 = vdwg.mxu0
      %v4744 = vadd.f32 %v4558, %v4691
      %v4745 = vadd.f32 %v4559, %v4694
      %v4746 = vadd.f32 %v4560, %v4699
      %v4747 = vadd.f32 %v4561, %v4702
      %v4748 = vadd.f32 %v4562, %v4707
      %v4749 = vadd.f32 %v4563, %v4710
      %v4750 = vadd.f32 %v4564, %v4715
      %v4751 = vadd.f32 %v4565, %v4718
      %v4752 = vadd.f32 %v4566, %v4723
      %v4753 = vadd.f32 %v4567, %v4726
      %v4754 = vadd.f32 %v4568, %v4731
      %v4755 = vadd.f32 %v4569, %v4734
      %v4756 = vadd.f32 %v4570, %v4739
      %v4757 = vld [vmem:[%s380 + $0x8] sm:$0xc]
      %v4758 = vld [vmem:[%s380 + $0xc] sm:$0xf]
      %v4759 = vld [vmem:[%s380 + $0x10] sm:$0xf]
      %v4760 = vld [vmem:[%s380 + $0x14] sm:$0xf]
      %v4761 = vld [vmem:[%s380 + $0x18] sm:$0xf]
      %v4762 = vld [vmem:[%s380 + $0x1c] sm:$0xf]
      %v4763 = vld [vmem:[%s380 + $0x20] sm:$0xf]
      %v4764 = vld [vmem:[%s380 + $0x24] sm:$0xf]
      %v4765 = vld [vmem:[%s380 + $0x28] sm:$0xf]
      %v4766 = vld [vmem:[%s380 + $0x2c] sm:$0xf]
      %v4767 = vld [vmem:[%s380 + $0x30] sm:$0xf]
      %v4768 = vld [vmem:[%s380 + $0x34] sm:$0xf]
      %v4769 = vld [vmem:[%s380 + $0x38] sm:$0xf]
      %v4770 = vld [vmem:[%s380 + $0x3c] sm:$0x1]
      %s4771 = scalar_lea.vmem %s3, 50
      %v4772 = vld [vmem:[%s4771] sm:$0x3]
      %v4787 = vunpack.c.l.b16 %v4757
      %v4788 = vunpack.c.l.b16 %v4758
      %v4789 = vunpack.c.l.b16 %v4759
      %v4790 = vunpack.c.l.b16 %v4760
      %v4791 = vunpack.c.l.b16 %v4761
      %v4792 = vunpack.c.l.b16 %v4762
      %v4793 = vunpack.c.l.b16 %v4763
      %v4794 = vunpack.c.l.b16 %v4764
      %v4795 = vunpack.c.l.b16 %v4765
      %v4796 = vunpack.c.l.b16 %v4766
      %v4797 = vunpack.c.l.b16 %v4767
      %v4798 = vunpack.c.l.b16 %v4768
      %v4799 = vunpack.c.l.b16 %v4769
      %v4800 = vunpack.c.l.b16 %v4770
      %v4801 = vpack.c.b16 %v4788, %v4787
      %v4802 = vpack.c.b16 %v4790, %v4789
      %v4803 = vpack.c.b16 %v4792, %v4791
      %v4804 = vpack.c.b16 %v4794, %v4793
      %v4805 = vpack.c.b16 %v4796, %v4795
      %v4806 = vpack.c.b16 %v4798, %v4797
      %v4807 = vpack.c.b16 %v4800, %v4799
      %v4809 = vshrl.u32 %v4801, 16
      %v4811 = vrot.slane %v4809, 2
      %v4812 = vshll.u32 %v4801, 16
      %v4814 = vrot.slane %v4812, 3
      %v4815 = vor.u32 %v4811, %v4814
      %v4817 = vshrl.u32 %v4802, 16
      %v4819 = vrot.slane %v4817, 2
      %v4820 = vshll.u32 %v4802, 16
      %v4822 = vrot.slane %v4820, 3
      %v4823 = vor.u32 %v4819, %v4822
      %v4824 = vsel %vm1630, %v4815, %v4823
      %v4826 = vshrl.u32 %v4803, 16
      %v4828 = vrot.slane %v4826, 2
      %v4829 = vshll.u32 %v4803, 16
      %v4831 = vrot.slane %v4829, 3
      %v4832 = vor.u32 %v4828, %v4831
      %v4833 = vsel %vm1630, %v4823, %v4832
      %v4835 = vshrl.u32 %v4804, 16
      %v4837 = vrot.slane %v4835, 2
      %v4838 = vshll.u32 %v4804, 16
      %v4840 = vrot.slane %v4838, 3
      %v4841 = vor.u32 %v4837, %v4840
      %v4842 = vsel %vm1630, %v4832, %v4841
      %v4844 = vshrl.u32 %v4805, 16
      %v4846 = vrot.slane %v4844, 2
      %v4847 = vshll.u32 %v4805, 16
      %v4849 = vrot.slane %v4847, 3
      %v4850 = vor.u32 %v4846, %v4849
      %v4851 = vsel %vm1630, %v4841, %v4850
      %v4853 = vshrl.u32 %v4806, 16
      %v4855 = vrot.slane %v4853, 2
      %v4856 = vshll.u32 %v4806, 16
      %v4858 = vrot.slane %v4856, 3
      %v4859 = vor.u32 %v4855, %v4858
      %v4860 = vsel %vm1630, %v4850, %v4859
      %v4862 = vshrl.u32 %v4807, 16
      %v4864 = vrot.slane %v4862, 2
      %v4865 = vshll.u32 %v4807, 16
      %v4867 = vrot.slane %v4865, 3
      %v4868 = vor.u32 %v4864, %v4867
      %v4869 = vsel %vm1630, %v4859, %v4868
      %v4871 = vsel %vm500, %v4824, 0
      %v4874 = vsel %vm500, %v4833, 0
      %v4877 = vsel %vm500, %v4842, 0
      %v4880 = vsel %vm500, %v4851, 0
      %v4883 = vsel %vm500, %v4860, 0
      %v4886 = vsel %vm500, %v4869, 0
      %v4889 = vsel %vm500, %v4868, 0
      %v4892 = vsel %vm522, %v4772, 0
      %4894 = vmatprep.subr.bf16.mxu0 0
      %4895 = vmatpush1.bf16.msra.mxu0 0
      %4896 = vmatprep.subr.bf16.mxu0 0
      %4897 = vmatpush1.bf16.msra.mxu0 0
      %4898 = vmatprep.subr.bf16.mxu0 0
      %4899 = vmatpush1.bf16.msra.mxu0 0
      %4900 = vmatprep.subr.bf16.mxu0 0
      %4901 = vmatpush1.bf16.msra.mxu0 0
      %4902 = vmatprep.subr.bf16.mxu0 0
      %4903 = vmatpush1.bf16.msra.mxu0 0
      %4904 = vmatprep.subr.bf16.mxu0 0
      %4905 = vmatpush1.bf16.msra.mxu0 0
      %4906 = vmatprep.subr.bf16.mxu0 0
      %4907 = vmatpush1.bf16.msra.mxu0 0
      %4908 = vmatprep.subr.bf16.mxu0 0
      %4909 = vmatpush1.bf16.msra.mxu0 %v4892
      %4910 = vmatprep.subr.bf16.mxu0 0
      %4911 = vmatpush2.bf16.msra.mxu0 0
      %4912 = vmatprep.subr.bf16.mxu0 0
      %4913 = vmatpush2.bf16.msra.mxu0 0
      %4914 = vmatprep.subr.bf16.mxu0 0
      %4915 = vmatpush2.bf16.msra.mxu0 0
      %4916 = vmatprep.subr.bf16.mxu0 0
      %4917 = vmatpush2.bf16.msra.mxu0 0
      %4918 = vmatprep.subr.bf16.mxu0 0
      %4919 = vmatpush2.bf16.msra.mxu0 0
      %4920 = vmatprep.subr.bf16.mxu0 0
      %4921 = vmatpush2.bf16.msra.mxu0 0
      %4922 = vmatprep.subr.bf16.mxu0 0
      %4923 = vmatpush2.bf16.msra.mxu0 0
      %4924 = vmatprep.subr.bf16.mxu0 0
      %4925 = vmatpush2.bf16.msra.mxu0 0
      %4926 = vmatprep.mubr.bf16.mxu0 0
      %4927 = vmatmul.mubr.bf16.gmra.mxu0 %v4871
      %v4928 = vpop.f32.mrf.mxu0
      %v4929 = vadd.f32 0.0, %v4928
      %v4930 = vpop.f32.mrf.mxu0
      %v4931 = vpop.f32.mrf.mxu0
      %v4932 = vadd.f32 0.0, %v4931
      %v4933 = vpop.f32.mrf.mxu0
      %4934 = vmatprep.mubr.bf16.mxu0 0
      %4935 = vmatmul.mubr.bf16.gmra.mxu0 %v4874
      %v4936 = vpop.f32.mrf.mxu0
      %v4937 = vadd.f32 0.0, %v4936
      %v4938 = vpop.f32.mrf.mxu0
      %v4939 = vpop.f32.mrf.mxu0
      %v4940 = vadd.f32 0.0, %v4939
      %v4941 = vpop.f32.mrf.mxu0
      %4942 = vmatprep.mubr.bf16.mxu0 0
      %4943 = vmatmul.mubr.bf16.gmra.mxu0 %v4877
      %v4944 = vpop.f32.mrf.mxu0
      %v4945 = vadd.f32 0.0, %v4944
      %v4946 = vpop.f32.mrf.mxu0
      %v4947 = vpop.f32.mrf.mxu0
      %v4948 = vadd.f32 0.0, %v4947
      %v4949 = vpop.f32.mrf.mxu0
      %4950 = vmatprep.mubr.bf16.mxu0 0
      %4951 = vmatmul.mubr.bf16.gmra.mxu0 %v4880
      %v4952 = vpop.f32.mrf.mxu0
      %v4953 = vadd.f32 0.0, %v4952
      %v4954 = vpop.f32.mrf.mxu0
      %v4955 = vpop.f32.mrf.mxu0
      %v4956 = vadd.f32 0.0, %v4955
      %v4957 = vpop.f32.mrf.mxu0
      %4958 = vmatprep.mubr.bf16.mxu0 0
      %4959 = vmatmul.mubr.bf16.gmra.mxu0 %v4883
      %v4960 = vpop.f32.mrf.mxu0
      %v4961 = vadd.f32 0.0, %v4960
      %v4962 = vpop.f32.mrf.mxu0
      %v4963 = vpop.f32.mrf.mxu0
      %v4964 = vadd.f32 0.0, %v4963
      %v4965 = vpop.f32.mrf.mxu0
      %4966 = vmatprep.mubr.bf16.mxu0 0
      %4967 = vmatmul.mubr.bf16.gmra.mxu0 %v4886
      %v4968 = vpop.f32.mrf.mxu0
      %v4969 = vadd.f32 0.0, %v4968
      %v4970 = vpop.f32.mrf.mxu0
      %v4971 = vpop.f32.mrf.mxu0
      %v4972 = vadd.f32 0.0, %v4971
      %v4973 = vpop.f32.mrf.mxu0
      %4974 = vmatprep.mubr.bf16.mxu0 0
      %4975 = vmatmul.mubr.bf16.gmra.mxu0 %v4889
      %v4976 = vpop.f32.mrf.mxu0
      %v4977 = vadd.f32 0.0, %v4976
      %v4978 = vpop.f32.mrf.mxu0
      %v4979 = vpop.f32.mrf.mxu0
      %v4980 = vpop.f32.mrf.mxu0
      %4981 = vdwg.mxu0
      %v4982 = vadd.f32 %v4744, %v4929
      %v4983 = vadd.f32 %v4745, %v4932
      %v4984 = vadd.f32 %v4746, %v4937
      %v4985 = vadd.f32 %v4747, %v4940
      %v4986 = vadd.f32 %v4748, %v4945
      %v4987 = vadd.f32 %v4749, %v4948
      %v4988 = vadd.f32 %v4750, %v4953
      %v4989 = vadd.f32 %v4751, %v4956
      %v4990 = vadd.f32 %v4752, %v4961
      %v4991 = vadd.f32 %v4753, %v4964
      %v4992 = vadd.f32 %v4754, %v4969
      %v4993 = vadd.f32 %v4755, %v4972
      %v4994 = vadd.f32 %v4756, %v4977
      %v4995 = vld [vmem:[%s380 + $0x8] sm:$0x8]
      %s4996 = scalar_lea.vmem %s3, 52
      %v4997 = vld [vmem:[%s4996] sm:$0x3]
      %v4999 = vunpack.c.l.b16 %v4995
      %v5000 = vpack.c.b16 %v4788, %v4999
      %v5001 = vrot.slane %v5000, 3
      %v5002 = vrot.slane %v4802, 3
      %v5003 = vsel %vm1824, %v5001, %v5002
      %v5004 = vrot.slane %v4803, 3
      %v5005 = vsel %vm1824, %v5002, %v5004
      %v5006 = vrot.slane %v4804, 3
      %v5007 = vsel %vm1824, %v5004, %v5006
      %v5008 = vrot.slane %v4805, 3
      %v5009 = vsel %vm1824, %v5006, %v5008
      %v5010 = vrot.slane %v4806, 3
      %v5011 = vsel %vm1824, %v5008, %v5010
      %v5012 = vrot.slane %v4807, 3
      %v5013 = vsel %vm1824, %v5010, %v5012
      %v5015 = vsel %vm500, %v5003, 0
      %v5018 = vsel %vm500, %v5005, 0
      %v5021 = vsel %vm500, %v5007, 0
      %v5024 = vsel %vm500, %v5009, 0
      %v5027 = vsel %vm500, %v5011, 0
      %v5030 = vsel %vm500, %v5013, 0
      %v5033 = vsel %vm500, %v5012, 0
      %v5036 = vsel %vm522, %v4997, 0
      %5038 = vmatprep.subr.bf16.mxu0 0
      %5039 = vmatpush1.bf16.msra.mxu0 0
      %5040 = vmatprep.subr.bf16.mxu0 0
      %5041 = vmatpush1.bf16.msra.mxu0 0
      %5042 = vmatprep.subr.bf16.mxu0 0
      %5043 = vmatpush1.bf16.msra.mxu0 0
      %5044 = vmatprep.subr.bf16.mxu0 0
      %5045 = vmatpush1.bf16.msra.mxu0 0
      %5046 = vmatprep.subr.bf16.mxu0 0
      %5047 = vmatpush1.bf16.msra.mxu0 0
      %5048 = vmatprep.subr.bf16.mxu0 0
      %5049 = vmatpush1.bf16.msra.mxu0 0
      %5050 = vmatprep.subr.bf16.mxu0 0
      %5051 = vmatpush1.bf16.msra.mxu0 0
      %5052 = vmatprep.subr.bf16.mxu0 0
      %5053 = vmatpush1.bf16.msra.mxu0 %v5036
      %5054 = vmatprep.subr.bf16.mxu0 0
      %5055 = vmatpush2.bf16.msra.mxu0 0
      %5056 = vmatprep.subr.bf16.mxu0 0
      %5057 = vmatpush2.bf16.msra.mxu0 0
      %5058 = vmatprep.subr.bf16.mxu0 0
      %5059 = vmatpush2.bf16.msra.mxu0 0
      %5060 = vmatprep.subr.bf16.mxu0 0
      %5061 = vmatpush2.bf16.msra.mxu0 0
      %5062 = vmatprep.subr.bf16.mxu0 0
      %5063 = vmatpush2.bf16.msra.mxu0 0
      %5064 = vmatprep.subr.bf16.mxu0 0
      %5065 = vmatpush2.bf16.msra.mxu0 0
      %5066 = vmatprep.subr.bf16.mxu0 0
      %5067 = vmatpush2.bf16.msra.mxu0 0
      %5068 = vmatprep.subr.bf16.mxu0 0
      %5069 = vmatpush2.bf16.msra.mxu0 0
      %5070 = vmatprep.mubr.bf16.mxu0 0
      %5071 = vmatmul.mubr.bf16.gmra.mxu0 %v5015
      %v5072 = vpop.f32.mrf.mxu0
      %v5073 = vadd.f32 0.0, %v5072
      %v5074 = vpop.f32.mrf.mxu0
      %v5075 = vpop.f32.mrf.mxu0
      %v5076 = vadd.f32 0.0, %v5075
      %v5077 = vpop.f32.mrf.mxu0
      %5078 = vmatprep.mubr.bf16.mxu0 0
      %5079 = vmatmul.mubr.bf16.gmra.mxu0 %v5018
      %v5080 = vpop.f32.mrf.mxu0
      %v5081 = vadd.f32 0.0, %v5080
      %v5082 = vpop.f32.mrf.mxu0
      %v5083 = vpop.f32.mrf.mxu0
      %v5084 = vadd.f32 0.0, %v5083
      %v5085 = vpop.f32.mrf.mxu0
      %5086 = vmatprep.mubr.bf16.mxu0 0
      %5087 = vmatmul.mubr.bf16.gmra.mxu0 %v5021
      %v5088 = vpop.f32.mrf.mxu0
      %v5089 = vadd.f32 0.0, %v5088
      %v5090 = vpop.f32.mrf.mxu0
      %v5091 = vpop.f32.mrf.mxu0
      %v5092 = vadd.f32 0.0, %v5091
      %v5093 = vpop.f32.mrf.mxu0
      %5094 = vmatprep.mubr.bf16.mxu0 0
      %5095 = vmatmul.mubr.bf16.gmra.mxu0 %v5024
      %v5096 = vpop.f32.mrf.mxu0
      %v5097 = vadd.f32 0.0, %v5096
      %v5098 = vpop.f32.mrf.mxu0
      %v5099 = vpop.f32.mrf.mxu0
      %v5100 = vadd.f32 0.0, %v5099
      %v5101 = vpop.f32.mrf.mxu0
      %5102 = vmatprep.mubr.bf16.mxu0 0
      %5103 = vmatmul.mubr.bf16.gmra.mxu0 %v5027
      %v5104 = vpop.f32.mrf.mxu0
      %v5105 = vadd.f32 0.0, %v5104
      %v5106 = vpop.f32.mrf.mxu0
      %v5107 = vpop.f32.mrf.mxu0
      %v5108 = vadd.f32 0.0, %v5107
      %v5109 = vpop.f32.mrf.mxu0
      %5110 = vmatprep.mubr.bf16.mxu0 0
      %5111 = vmatmul.mubr.bf16.gmra.mxu0 %v5030
      %v5112 = vpop.f32.mrf.mxu0
      %v5113 = vadd.f32 0.0, %v5112
      %v5114 = vpop.f32.mrf.mxu0
      %v5115 = vpop.f32.mrf.mxu0
      %v5116 = vadd.f32 0.0, %v5115
      %v5117 = vpop.f32.mrf.mxu0
      %5118 = vmatprep.mubr.bf16.mxu0 0
      %5119 = vmatmul.mubr.bf16.gmra.mxu0 %v5033
      %v5120 = vpop.f32.mrf.mxu0
      %v5121 = vadd.f32 0.0, %v5120
      %v5122 = vpop.f32.mrf.mxu0
      %v5123 = vpop.f32.mrf.mxu0
      %v5124 = vpop.f32.mrf.mxu0
      %5125 = vdwg.mxu0
      %v5126 = vadd.f32 %v4982, %v5073
      %v5127 = vadd.f32 %v4983, %v5076
      %v5128 = vadd.f32 %v4984, %v5081
      %v5129 = vadd.f32 %v4985, %v5084
      %v5130 = vadd.f32 %v4986, %v5089
      %v5131 = vadd.f32 %v4987, %v5092
      %v5132 = vadd.f32 %v4988, %v5097
      %v5133 = vadd.f32 %v4989, %v5100
      %v5134 = vadd.f32 %v4990, %v5105
      %v5135 = vadd.f32 %v4991, %v5108
      %v5136 = vadd.f32 %v4992, %v5113
      %v5137 = vadd.f32 %v4993, %v5116
      %v5138 = vadd.f32 %v4994, %v5121
      %s5139 = smul.u32 %s23, 104
      %s5140 = scalar_lea.vmem %s386, %s5139
      %5141 = vst [vmem:[%s5140] sm:$0xff] %v5126
      %5142 = vst [vmem:[%s5140 + $0x8] sm:$0xff] %v5127
      %5143 = vst [vmem:[%s5140 + $0x10] sm:$0xff] %v5128
      %5144 = vst [vmem:[%s5140 + $0x18] sm:$0xff] %v5129
      %5145 = vst [vmem:[%s5140 + $0x20] sm:$0xff] %v5130
      %5146 = vst [vmem:[%s5140 + $0x28] sm:$0xff] %v5131
      %5147 = vst [vmem:[%s5140 + $0x30] sm:$0xff] %v5132
      %5148 = vst [vmem:[%s5140 + $0x38] sm:$0xff] %v5133
      %5149 = vst [vmem:[%s5140 + $0x40] sm:$0xff] %v5134
      %5150 = vst [vmem:[%s5140 + $0x48] sm:$0xff] %v5135
      %5151 = vst [vmem:[%s5140 + $0x50] sm:$0xff] %v5136
      %5152 = vst [vmem:[%s5140 + $0x58] sm:$0xff] %v5137
      %5153 = vst [vmem:[%s5140 + $0x60] sm:$0xf] %v5138
      %v5154 = vld [vmem:[%s4] sm:$0x1]
      %v5155 = vld [vmem:[#allocation2] sm:$0x1]
      %vm5156 = vcmask 818176
      %v5158 = vsel %vm5156, %v5154, 0
      %vm5160 = vcmask 1043456
      %v5162 = vsel %vm5160, %v5138, 0
      %5164 = vmatprep.subr.mxu0 0.0
      %5165 = vmatpush1.msra.mxu0 0.0
      %5166 = vmatprep.subr.mxu0 0.0
      %5167 = vmatpush1.msra.mxu0 0.0
      %5168 = vmatprep.subr.mxu0 0.0
      %5169 = vmatpush1.msra.mxu0 0.0
      %5170 = vmatprep.subr.mxu0 0.0
      %5171 = vmatpush1.msra.mxu0 %v5162
      %5172 = vmatprep.subr.mxu0 0.0
      %5173 = vmatpush1.msra.mxu0 %v5137
      %5174 = vmatprep.subr.mxu0 0.0
      %5175 = vmatpush1.msra.mxu0 %v5136
      %5176 = vmatprep.subr.mxu0 0.0
      %5177 = vmatpush1.msra.mxu0 %v5135
      %5178 = vmatprep.subr.mxu0 0.0
      %5179 = vmatpush1.msra.mxu0 %v5134
      %5180 = vmatprep.subr.mxu0 0.0
      %5181 = vmatpush1.msra.mxu0 %v5133
      %5182 = vmatprep.subr.mxu0 0.0
      %5183 = vmatpush1.msra.mxu0 %v5132
      %5184 = vmatprep.subr.mxu0 0.0
      %5185 = vmatpush1.msra.mxu0 %v5131
      %5186 = vmatprep.subr.mxu0 0.0
      %5187 = vmatpush1.msra.mxu0 %v5130
      %5188 = vmatprep.subr.mxu0 0.0
      %5189 = vmatpush1.msra.mxu0 %v5129
      %5190 = vmatprep.subr.mxu0 0.0
      %5191 = vmatpush1.msra.mxu0 %v5128
      %5192 = vmatprep.subr.mxu0 0.0
      %5193 = vmatpush1.msra.mxu0 %v5127
      %5194 = vmatprep.subr.mxu0 0.0
      %5195 = vmatpush1.msra.mxu0 %v5126
      %5196 = vmatprep.subr.mxu0 0.0
      %5197 = vmatpush2.msra.mxu0 0.0
      %5198 = vmatprep.subr.mxu0 0.0
      %5199 = vmatpush2.msra.mxu0 0.0
      %5200 = vmatprep.subr.mxu0 0.0
      %5201 = vmatpush2.msra.mxu0 0.0
      %5202 = vmatprep.subr.mxu0 0.0
      %5203 = vmatpush2.msra.mxu0 0.0
      %5204 = vmatprep.subr.mxu0 0.0
      %5205 = vmatpush2.msra.mxu0 0.0
      %5206 = vmatprep.subr.mxu0 0.0
      %5207 = vmatpush2.msra.mxu0 0.0
      %5208 = vmatprep.subr.mxu0 0.0
      %5209 = vmatpush2.msra.mxu0 0.0
      %5210 = vmatprep.subr.mxu0 0.0
      %5211 = vmatpush2.msra.mxu0 0.0
      %5212 = vmatprep.subr.mxu0 0.0
      %5213 = vmatpush2.msra.mxu0 0.0
      %5214 = vmatprep.subr.mxu0 0.0
      %5215 = vmatpush2.msra.mxu0 0.0
      %5216 = vmatprep.subr.mxu0 0.0
      %5217 = vmatpush2.msra.mxu0 0.0
      %5218 = vmatprep.subr.mxu0 0.0
      %5219 = vmatpush2.msra.mxu0 0.0
      %5220 = vmatprep.subr.mxu0 0.0
      %5221 = vmatpush2.msra.mxu0 0.0
      %5222 = vmatprep.subr.mxu0 0.0
      %5223 = vmatpush2.msra.mxu0 0.0
      %5224 = vmatprep.subr.mxu0 0.0
      %5225 = vmatpush2.msra.mxu0 0.0
      %5226 = vmatprep.subr.mxu0 0.0
      %5227 = vmatpush2.msra.mxu0 0.0
      %5228 = vmatprep.mubr.f32.mxu0 0.0
      %5229 = vmatmul.mubr.f32.gmra.mxu0 %v5158
      %v5230 = vpop.f32.mrf.mxu0
      %v5231 = vadd.f32 0.0, %v5230
      %v5232 = vpop.f32.mrf.mxu0
      %5233 = vdwg.mxu0
      %v5234 = vadd.f32 %v5155, %v5231
      %5235 = vst [vmem:[#allocation2] sm:$0x1] %v5234
      %v5236 = vld [vmem:[#allocation3] sm:$0x1]
      %v5237 = vmul.f32 %v5126, %v5126
      %v5238 = vmul.f32 %v5127, %v5127
      %v5239 = vmul.f32 %v5128, %v5128
      %v5240 = vmul.f32 %v5129, %v5129
      %v5241 = vmul.f32 %v5130, %v5130
      %v5242 = vmul.f32 %v5131, %v5131
      %v5243 = vmul.f32 %v5132, %v5132
      %v5244 = vmul.f32 %v5133, %v5133
      %v5245 = vmul.f32 %v5134, %v5134
      %v5246 = vmul.f32 %v5135, %v5135
      %v5247 = vmul.f32 %v5136, %v5136
      %v5248 = vmul.f32 %v5137, %v5137
      %v5249 = vmul.f32 %v5138, %v5138
      %v5251 = vsel %vm5160, %v5249, 0
      %5253 = vmatprep.subr.mxu0 0.0
      %5254 = vmatpush1.msra.mxu0 0.0
      %5255 = vmatprep.subr.mxu0 0.0
      %5256 = vmatpush1.msra.mxu0 0.0
      %5257 = vmatprep.subr.mxu0 0.0
      %5258 = vmatpush1.msra.mxu0 0.0
      %5259 = vmatprep.subr.mxu0 0.0
      %5260 = vmatpush1.msra.mxu0 %v5251
      %5261 = vmatprep.subr.mxu0 0.0
      %5262 = vmatpush1.msra.mxu0 %v5248
      %5263 = vmatprep.subr.mxu0 0.0
      %5264 = vmatpush1.msra.mxu0 %v5247
      %5265 = vmatprep.subr.mxu0 0.0
      %5266 = vmatpush1.msra.mxu0 %v5246
      %5267 = vmatprep.subr.mxu0 0.0
      %5268 = vmatpush1.msra.mxu0 %v5245
      %5269 = vmatprep.subr.mxu0 0.0
      %5270 = vmatpush1.msra.mxu0 %v5244
      %5271 = vmatprep.subr.mxu0 0.0
      %5272 = vmatpush1.msra.mxu0 %v5243
      %5273 = vmatprep.subr.mxu0 0.0
      %5274 = vmatpush1.msra.mxu0 %v5242
      %5275 = vmatprep.subr.mxu0 0.0
      %5276 = vmatpush1.msra.mxu0 %v5241
      %5277 = vmatprep.subr.mxu0 0.0
      %5278 = vmatpush1.msra.mxu0 %v5240
      %5279 = vmatprep.subr.mxu0 0.0
      %5280 = vmatpush1.msra.mxu0 %v5239
      %5281 = vmatprep.subr.mxu0 0.0
      %5282 = vmatpush1.msra.mxu0 %v5238
      %5283 = vmatprep.subr.mxu0 0.0
      %5284 = vmatpush1.msra.mxu0 %v5237
      %5285 = vmatprep.subr.mxu0 0.0
      %5286 = vmatpush2.msra.mxu0 0.0
      %5287 = vmatprep.subr.mxu0 0.0
      %5288 = vmatpush2.msra.mxu0 0.0
      %5289 = vmatprep.subr.mxu0 0.0
      %5290 = vmatpush2.msra.mxu0 0.0
      %5291 = vmatprep.subr.mxu0 0.0
      %5292 = vmatpush2.msra.mxu0 0.0
      %5293 = vmatprep.subr.mxu0 0.0
      %5294 = vmatpush2.msra.mxu0 0.0
      %5295 = vmatprep.subr.mxu0 0.0
      %5296 = vmatpush2.msra.mxu0 0.0
      %5297 = vmatprep.subr.mxu0 0.0
      %5298 = vmatpush2.msra.mxu0 0.0
      %5299 = vmatprep.subr.mxu0 0.0
      %5300 = vmatpush2.msra.mxu0 0.0
      %5301 = vmatprep.subr.mxu0 0.0
      %5302 = vmatpush2.msra.mxu0 0.0
      %5303 = vmatprep.subr.mxu0 0.0
      %5304 = vmatpush2.msra.mxu0 0.0
      %5305 = vmatprep.subr.mxu0 0.0
      %5306 = vmatpush2.msra.mxu0 0.0
      %5307 = vmatprep.subr.mxu0 0.0
      %5308 = vmatpush2.msra.mxu0 0.0
      %5309 = vmatprep.subr.mxu0 0.0
      %5310 = vmatpush2.msra.mxu0 0.0
      %5311 = vmatprep.subr.mxu0 0.0
      %5312 = vmatpush2.msra.mxu0 0.0
      %5313 = vmatprep.subr.mxu0 0.0
      %5314 = vmatpush2.msra.mxu0 0.0
      %5315 = vmatprep.subr.mxu0 0.0
      %5316 = vmatpush2.msra.mxu0 0.0
      %5317 = vmatprep.mubr.f32.mxu0 0.0
      %5318 = vmatmul.mubr.f32.gmra.mxu0 %v5158
      %v5319 = vpop.f32.mrf.mxu0
      %v5320 = vadd.f32 0.0, %v5319
      %v5321 = vpop.f32.mrf.mxu0
      %5322 = vdwg.mxu0
      %v5323 = vadd.f32 %v5236, %v5320
      %5324 = vst [vmem:[#allocation3] sm:$0x1] %v5323
      %p5325 = scmp.eq.s32.totalorder %s23, 7
      // Predicated region
      $region53: #{tpu_custom_call.1} parent=47 // pred_check
        %p5326 = pneg %p5325
      $region54: #{tpu_custom_call.1} parent=47 // pred_check_branch
        %5328 = sbr.rel (%p5326) target = $region56
      $region55: #{tpu_custom_call.1} parent=47 // pred_region
        %v5329 = vld [vmem:[#allocation2] sm:$0x1]
        %v5330 = vrcp.pop 512.0
        %v5331 = vmul.f32 %v5329, %v5330
        %v5332 = vld [vmem:[#allocation3] sm:$0x1]
        %v5333 = vmul.f32 %v5332, %v5330
        %v5334 = vmul.f32 %v5331, %v5331
        %v5335 = vsub.f32 %v5333, %v5334
        %v5336 = vmax.f32 %v5335, 0.0
        %v5337 = vld [vmem:[%s5] sm:$0x1]
        %v5338 = vadd.f32 %v5336, 1e-05
        %v5339 = vrsqrt.pop %v5338
        %v5340 = vmul.f32 %v5337, %v5339
        %v5341 = vld [vmem:[%s6] sm:$0x1]
        %v5342 = vmul.f32 %v5331, %v5340
        %v5343 = vsub.f32 %v5341, %v5342
        loop: start=0, step=1, limit=8
        $region57: #{tpu_custom_call.1} parent=55 // loop_pre_header
          _
        $region58: #{tpu_custom_call.1} parent=55 // loop_header
          %s5345 = sphi 0, %s5349
          %p5346 = scmp.ge.s32.totalorder %s5345, 8
        $region59: #{tpu_custom_call.1} parent=55 // loop_header_branch
          %5348 = sbr.rel (%p5346) target = $region63
        $region60: #{tpu_custom_call.1} parent=55 // loop_body
          %s5350 = smul.u32 %s5345, 104
          %s5351 = scalar_lea.vmem %s386, %s5350
          %v5352 = vld [vmem:[%s5351] sm:$0xff]
          %v5353 = vld [vmem:[%s5351 + $0x8] sm:$0xff]
          %v5354 = vld [vmem:[%s5351 + $0x10] sm:$0xff]
          %v5355 = vld [vmem:[%s5351 + $0x18] sm:$0xff]
          %v5356 = vld [vmem:[%s5351 + $0x20] sm:$0xff]
          %v5357 = vld [vmem:[%s5351 + $0x28] sm:$0xff]
          %v5358 = vld [vmem:[%s5351 + $0x30] sm:$0xff]
          %v5359 = vld [vmem:[%s5351 + $0x38] sm:$0xff]
          %v5360 = vld [vmem:[%s5351 + $0x40] sm:$0xff]
          %v5361 = vld [vmem:[%s5351 + $0x48] sm:$0xff]
          %v5362 = vld [vmem:[%s5351 + $0x50] sm:$0xff]
          %v5363 = vld [vmem:[%s5351 + $0x58] sm:$0xff]
          %v5364 = vld [vmem:[%s5351 + $0x60] sm:$0xf]
          %v5366 = vlaneseq
          %v5367 = vshrl.u32 %v5366, 7
          %v5368 = vsub.s32 0, %v5367
          %v5369 = vrot.slane %v5340, %v5368
          %v5371 = vmul.f32 %v5352, %v5369
          %v5372 = vmul.f32 %v5353, %v5369
          %v5373 = vmul.f32 %v5354, %v5369
          %v5374 = vmul.f32 %v5355, %v5369
          %v5375 = vmul.f32 %v5356, %v5369
          %v5376 = vmul.f32 %v5357, %v5369
          %v5377 = vmul.f32 %v5358, %v5369
          %v5378 = vmul.f32 %v5359, %v5369
          %v5379 = vmul.f32 %v5360, %v5369
          %v5380 = vmul.f32 %v5361, %v5369
          %v5381 = vmul.f32 %v5362, %v5369
          %v5382 = vmul.f32 %v5363, %v5369
          %v5383 = vmul.f32 %v5364, %v5369
          %v5385 = vlaneseq
          %v5386 = vshrl.u32 %v5385, 7
          %v5387 = vsub.s32 0, %v5386
          %v5388 = vrot.slane %v5343, %v5387
          %v5390 = vadd.f32 %v5371, %v5388
          %v5391 = vadd.f32 %v5372, %v5388
          %v5392 = vadd.f32 %v5373, %v5388
          %v5393 = vadd.f32 %v5374, %v5388
          %v5394 = vadd.f32 %v5375, %v5388
          %v5395 = vadd.f32 %v5376, %v5388
          %v5396 = vadd.f32 %v5377, %v5388
          %v5397 = vadd.f32 %v5378, %v5388
          %v5398 = vadd.f32 %v5379, %v5388
          %v5399 = vadd.f32 %v5380, %v5388
          %v5400 = vadd.f32 %v5381, %v5388
          %v5401 = vadd.f32 %v5382, %v5388
          %v5402 = vadd.f32 %v5383, %v5388
          %vm5403 = vcmp.ge.f32.partialorder %v5390, 0.0
          %vm5404 = vcmp.ge.f32.partialorder %v5391, 0.0
          %vm5405 = vcmp.ge.f32.partialorder %v5392, 0.0
          %vm5406 = vcmp.ge.f32.partialorder %v5393, 0.0
          %vm5407 = vcmp.ge.f32.partialorder %v5394, 0.0
          %vm5408 = vcmp.ge.f32.partialorder %v5395, 0.0
          %vm5409 = vcmp.ge.f32.partialorder %v5396, 0.0
          %vm5410 = vcmp.ge.f32.partialorder %v5397, 0.0
          %vm5411 = vcmp.ge.f32.partialorder %v5398, 0.0
          %vm5412 = vcmp.ge.f32.partialorder %v5399, 0.0
          %vm5413 = vcmp.ge.f32.partialorder %v5400, 0.0
          %vm5414 = vcmp.ge.f32.partialorder %v5401, 0.0
          %vm5415 = vcmp.ge.f32.partialorder %v5402, 0.0
          %v5416 = vmul.f32 %v5390, 0.01
          %v5417 = vmul.f32 %v5391, 0.01
          %v5418 = vmul.f32 %v5392, 0.01
          %v5419 = vmul.f32 %v5393, 0.01
          %v5420 = vmul.f32 %v5394, 0.01
          %v5421 = vmul.f32 %v5395, 0.01
          %v5422 = vmul.f32 %v5396, 0.01
          %v5423 = vmul.f32 %v5397, 0.01
          %v5424 = vmul.f32 %v5398, 0.01
          %v5425 = vmul.f32 %v5399, 0.01
          %v5426 = vmul.f32 %v5400, 0.01
          %v5427 = vmul.f32 %v5401, 0.01
          %v5428 = vmul.f32 %v5402, 0.01
          %v5429 = vsel %vm5403, %v5390, %v5416
          %v5430 = vsel %vm5404, %v5391, %v5417
          %v5431 = vsel %vm5405, %v5392, %v5418
          %v5432 = vsel %vm5406, %v5393, %v5419
          %v5433 = vsel %vm5407, %v5394, %v5420
          %v5434 = vsel %vm5408, %v5395, %v5421
          %v5435 = vsel %vm5409, %v5396, %v5422
          %v5436 = vsel %vm5410, %v5397, %v5423
          %v5437 = vsel %vm5411, %v5398, %v5424
          %v5438 = vsel %vm5412, %v5399, %v5425
          %v5439 = vsel %vm5413, %v5400, %v5426
          %v5440 = vsel %vm5414, %v5401, %v5427
          %v5441 = vsel %vm5415, %v5402, %v5428
          %5442 = vst [vmem:[%s5351] sm:$0xff] %v5429
          %5443 = vst [vmem:[%s5351 + $0x8] sm:$0xff] %v5430
          %5444 = vst [vmem:[%s5351 + $0x10] sm:$0xff] %v5431
          %5445 = vst [vmem:[%s5351 + $0x18] sm:$0xff] %v5432
          %5446 = vst [vmem:[%s5351 + $0x20] sm:$0xff] %v5433
          %5447 = vst [vmem:[%s5351 + $0x28] sm:$0xff] %v5434
          %5448 = vst [vmem:[%s5351 + $0x30] sm:$0xff] %v5435
          %5449 = vst [vmem:[%s5351 + $0x38] sm:$0xff] %v5436
          %5450 = vst [vmem:[%s5351 + $0x40] sm:$0xff] %v5437
          %5451 = vst [vmem:[%s5351 + $0x48] sm:$0xff] %v5438
          %5452 = vst [vmem:[%s5351 + $0x50] sm:$0xff] %v5439
          %5453 = vst [vmem:[%s5351 + $0x58] sm:$0xff] %v5440
          %5454 = vst [vmem:[%s5351 + $0x60] sm:$0xf] %v5441
        $region61: #{tpu_custom_call.1} parent=55 // loop_footer
          %s5349 = sadd.s32 1, %s5345
        $region62: #{tpu_custom_call.1} parent=55 // loop_footer_branch
          %5344 = sbr.rel target = $region58
        $region63: #{tpu_custom_call.1} parent=55 // loop_exit
          _
      $region56: #{tpu_custom_call.1} parent=47 // pred_fallthru
        _
      %p5455 = scmp.lt.s32.totalorder %s22, 1
      %s5456 = scalar_select %p5455, %s22, 1
      %s5457 = smul.addr %s5456, 104
      %s5458 = smul.addr %s5457, 8
      %s5459 = scalar_lea.vmem %s7, %s5458
      // Predicated region
      $region64: #{tpu_custom_call.1} parent=47 // pred_check
        %p5460 = pneg %p220
      $region65: #{tpu_custom_call.1} parent=47 // pred_check_branch
        %5462 = sbr.rel (%p5460) target = $region67
      $region66: #{tpu_custom_call.1} parent=47 // pred_region
        _
      $region67: #{tpu_custom_call.1} parent=47 // pred_fallthru
        _
    $region48: #{tpu_custom_call.1} parent=5 // pred_fallthru
      _
    %p5463 = scmp.le.s32.totalorder 2, %s13
    // Predicated region
    $region68: #{tpu_custom_call.1} parent=5 // pred_check
      %p5464 = pneg %p5463
    $region69: #{tpu_custom_call.1} parent=5 // pred_check_branch
      %5466 = sbr.rel (%p5464) target = $region71
    $region70: #{tpu_custom_call.1} parent=5 // pred_region
      %s5467 = ssub.s32 %s13, 2
      // Predicated region
      $region72: #{tpu_custom_call.1} parent=70 // pred_check
        %p5468 = pneg %p226
      $region73: #{tpu_custom_call.1} parent=70 // pred_check_branch
        %5470 = sbr.rel (%p5468) target = $region75
      $region74: #{tpu_custom_call.1} parent=70 // pred_region
        %p5471 = scmp.lt.s32.totalorder %s24, 1
        %s5472 = scalar_select %p5471, %s24, 1
        %s5473 = smul.addr %s5472, 104
        %s5474 = smul.addr %s5473, 8
        %s5475 = scalar_lea.vmem %s7, %s5474
      $region75: #{tpu_custom_call.1} parent=70 // pred_fallthru
        _
    $region71: #{tpu_custom_call.1} parent=5 // pred_fallthru
      _
  $region6: #{tpu_custom_call.1} parent=0 // loop_footer
    %s17 = sadd.s32 1, %s13
  $region7: #{tpu_custom_call.1} parent=0 // loop_footer_branch
    %12 = sbr.rel target = $region3
  $region8: #{tpu_custom_call.1} parent=0 // loop_exit
    _

</llo_original>
